<compile_context>
chip_gen: v6e
topology: v6e:2x2x1
jax: 0.10.0
libtpu: 0.0.40
codegen_flags: <defaults>
</compile_context>

<pallas_src>
import functools
import math

import numpy as np

import jax
import jax.numpy as jnp
from jax.experimental import pallas as pl
from jax.experimental.pallas import tpu as pltpu


def _round_up(x, m):
    return ((x + m - 1) // m) * m


_CONV_CFG = ((8, 8, 4), (4, 4, 2), (3, 3, 1))          # (kh, kw, stride) per layer


def conv_geometry(h, w):
    geo = []
    for kh, kw, s in _CONV_CFG:
        oh = (h - kh) // s + 1
        ow = (w - kw) // s + 1
        geo.append(dict(kh=kh, kw=kw, s=s, hin=h, win=w, oh=oh, ow=ow))
        h, w = oh, ow
    return geo


# ----------------------------------------------------------------------------
# The fused kernel: conv1 -> conv2 -> conv3 -> fc1 -> fc2, one batch tile per
# grid step.  Activations are (rows = tb * spatial, lanes = 128 channels).
# ----------------------------------------------------------------------------
def _dqn_fused_kernel(p_ref, w1_ref, s1_ref,
                      w2_ref, s2_ref, g2_ref,
                      w3_ref, s3_ref, g3_ref,
                      wf1_ref, bf1_ref, gf_ref,
                      wf2_ref, bf2_ref,
                      o_ref, *, tb, r1, r2, r3, kk2, kk3):
    f32 = jnp.float32
    bf16 = jnp.bfloat16

    def gathered_layer(a, w_ref, shift_ref, g_ref, kk, r_out, r_in):
        """y[r] = shift + sum_o a[gmap[o, r]] @ W[o-block]   (conv as gather+matmul).

        The row gather is a one-hot (r_out, r_in) selection matmul built from a
        broadcasted iota and a per-offset int32 gather map.  It is exact: each
        selector row has a single 1 and `a` is already bf16, so the f32 gather
        product round-trips to bf16 losslessly."""
        cin = w_ref.shape[0] // kk
        cols = jax.lax.broadcasted_iota(jnp.int32, (r_out, r_in), 1)   # hoisted
        acc = jnp.zeros((r_out, w_ref.shape[1]), f32)
        for o in range(kk):
            sel = jnp.where(cols == g_ref[o], 1.0, 0.0).astype(bf16)   # (r_out, r_in)
            rows = jnp.dot(sel, a, preferred_element_type=f32).astype(bf16)
            acc = acc + jnp.dot(rows, w_ref[o * cin:(o + 1) * cin, :],
                                preferred_element_type=f32)
        return acc + shift_ref[...]

    # conv1 (+BN+ReLU): patch rows were built at the boundary -> plain matmul.
    a = jnp.dot(p_ref[...], w1_ref[...], preferred_element_type=f32)
    a = jnp.maximum(a + s1_ref[...], 0.0).astype(bf16)                 # (tb*r1, 128)

    # conv2 (+BN+ReLU)
    a = gathered_layer(a, w2_ref, s2_ref, g2_ref, kk2, tb * r2, tb * r1)
    a = jnp.maximum(a, 0.0).astype(bf16)                               # (tb*r2, 128)

    # conv3 (+BN+ReLU)
    a = gathered_layer(a, w3_ref, s3_ref, g3_ref, kk3, tb * r3, tb * r2)
    a = jnp.maximum(a, 0.0).astype(bf16)                               # (tb*r3, 128)

    # fc1 (+ReLU): same gather machinery with the "kernel" covering the whole
    # final spatial map (identity gather when r3 == 1).
    h = gathered_layer(a, wf1_ref, bf1_ref, gf_ref, r3, tb, tb * r3)
    h = jnp.maximum(h, 0.0).astype(bf16)                               # (tb, 512)

    # fc2
    q = jnp.dot(h, wf2_ref[...], preferred_element_type=f32) + bf2_ref[...]
    o_ref[0] = q.astype(o_ref.dtype)                                   # (tb, NAp)


# ----------------------------------------------------------------------------
# Boundary glue (XLA): conv1 im2col in NHWC, patch cols ordered (kh, kw, c).
# ----------------------------------------------------------------------------
def im2col_nhwc(x, kh, kw, stride):
    n, h, w, c = x.shape
    oh = (h - kh) // stride + 1
    ow = (w - kw) // stride + 1
    cols = []
    for i in range(kh):
        for j in range(kw):
            cols.append(x[:, i:i + stride * oh:stride, j:j + stride * ow:stride, :])
    p = jnp.stack(cols, axis=3)                       # (N, OH, OW, KH*KW, C)
    return p.reshape(n * oh * ow, kh * kw * c), oh, ow


def _gather_map(tb, g):
    """int32 (KK, tb*OH*OW, 1): source row (block-local) for each kernel
    offset and each output row (t, y, x)."""
    kk = g["kh"] * g["kw"]
    rout = tb * g["oh"] * g["ow"]
    m = np.empty((kk, rout, 1), np.int32)
    for i in range(g["kh"]):
        for j in range(g["kw"]):
            o = i * g["kw"] + j
            r = 0
            for t in range(tb):
                for y in range(g["oh"]):
                    for x in range(g["ow"]):
                        m[o, r, 0] = (t * g["hin"] * g["win"]
                                      + (y * g["s"] + i) * g["win"]
                                      + (x * g["s"] + j))
                        r += 1
    return jnp.asarray(m)


# ----------------------------------------------------------------------------
# Deterministic parameter init (PyTorch layouts) + one-time prep: fold BN into
# conv weights, build per-offset 128-aligned weight blocks, permute fc1 rows
# into the kernel's activation order, lane-pad outputs, cast MXU operands bf16.
# ----------------------------------------------------------------------------
def init_params(key, in_channels, num_actions, conv_out_size):
    ks = jax.random.split(key, 10)

    def kaiming(k, shape, fan_in):
        return jax.random.normal(k, shape, jnp.float32) * math.sqrt(2.0 / fan_in)

    def xavier_u(k, shape, fan_in, fan_out):
        lim = math.sqrt(6.0 / (fan_in + fan_out))
        return jax.random.uniform(k, shape, jnp.float32, -lim, lim)

    p = {}
    p["w1"] = kaiming(ks[0], (32, in_channels, 8, 8), in_channels * 64)
    p["b1"] = jax.random.uniform(ks[1], (32,), jnp.float32, -0.01, 0.01)
    p["w2"] = kaiming(ks[2], (64, 32, 4, 4), 32 * 16)
    p["b2"] = jax.random.uniform(ks[3], (64,), jnp.float32, -0.01, 0.01)
    p["w3"] = kaiming(ks[4], (64, 64, 3, 3), 64 * 9)
    p["b3"] = jax.random.uniform(ks[5], (64,), jnp.float32, -0.01, 0.01)
    for i, c in ((1, 32), (2, 64), (3, 64)):
        p[f"bn{i}_gamma"] = jnp.ones((c,), jnp.float32)
        p[f"bn{i}_beta"] = jnp.zeros((c,), jnp.float32)
        p[f"bn{i}_mean"] = jnp.zeros((c,), jnp.float32)
        p[f"bn{i}_var"] = jnp.ones((c,), jnp.float32)
    p["fcw1"] = kaiming(ks[6], (512, conv_out_size), conv_out_size)
    p["fcb1"] = jax.random.uniform(ks[7], (512,), jnp.float32, -0.01, 0.01)
    p["fcw2"] = xavier_u(ks[8], (num_actions, 512), 512, num_actions)
    p["fcb2"] = jax.random.uniform(ks[9], (num_actions,), jnp.float32, -0.01, 0.01)
    return p


def prepare_params(raw, num_actions, input_hw, eps=1e-5):
    geo = conv_geometry(*input_hw)
    prep = {"num_actions": num_actions, "geo": geo}

    for li, (wk, bk, bn) in enumerate((("w1", "b1", "bn1"),
                                       ("w2", "b2", "bn2"),
                                       ("w3", "b3", "bn3"))):
        w, b = raw[wk], raw[bk]                        # w: (OutC, InC, KH, KW)
        gamma, beta = raw[f"{bn}_gamma"], raw[f"{bn}_beta"]
        rmean, rvar = raw[f"{bn}_mean"], raw[f"{bn}_var"]
        outc, inc, kh, kw = w.shape
        scale = gamma / jnp.sqrt(rvar + eps)           # BN scale folded into w
        wf = jnp.transpose(w, (2, 3, 1, 0)) * scale    # (kh, kw, inc, outc)
        shift = (b - rmean) * scale + beta             # conv bias + BN shift
        if li == 0:
            # conv1: flat (kh*kw*inc, outc) weight for the boundary patch
            # matmul; K lane-padded to a multiple of 128.
            k1 = kh * kw * inc
            k1p = _round_up(k1, 128)
            wmat = jnp.pad(wf.reshape(k1, outc),
                           ((0, k1p - k1), (0, 128 - outc)))
        else:
            # conv2/conv3: one 128-row block per kernel offset; padded input
            # channels -> zero rows, padded output channels -> zero columns.
            wmat = jnp.pad(wf, ((0, 0), (0, 0), (0, 128 - inc), (0, 128 - outc)))
            wmat = wmat.reshape(kh * kw * 128, 128)
        prep[f"cw{li}"] = wmat.astype(jnp.bfloat16)
        prep[f"cs{li}"] = (jnp.pad(shift, (0, 128 - outc))
                           .astype(jnp.float32).reshape(1, 128))

    # fc1: permute K rows from PyTorch NCHW-flatten (c, y, x) order into the
    # kernel's (spatial position, 128-padded channel) order -> no activation
    # transpose/reshape before the FC head.
    oh3, ow3 = geo[2]["oh"], geo[2]["ow"]
    r3 = oh3 * ow3
    c3 = raw["w3"].shape[0]
    hdim = raw["fcw1"].shape[0]
    wfc1 = raw["fcw1"].reshape(hdim, c3, r3)
    wfc1 = jnp.transpose(wfc1, (2, 1, 0))              # (pos, c, hidden)
    wfc1 = jnp.pad(wfc1, ((0, 0), (0, 128 - c3), (0, 0))).reshape(r3 * 128, hdim)
    prep["wf1"] = wfc1.astype(jnp.bfloat16)
    prep["bf1"] = raw["fcb1"].astype(jnp.float32).reshape(1, hdim)

    na = raw["fcw2"].shape[0]
    nap = _round_up(na, 128)
    prep["wf2"] = jnp.pad(raw["fcw2"].T, ((0, 0), (0, nap - na))).astype(jnp.bfloat16)
    prep["bf2"] = jnp.pad(raw["fcb2"], (0, nap - na)).astype(jnp.float32).reshape(1, nap)
    return prep


# ----------------------------------------------------------------------------
# Full forward pass (DQN.forward): one pallas_call for the whole network.
# ----------------------------------------------------------------------------
def dqn_forward(prep, x_nchw, *, tb=None):
    geo = prep["geo"]
    n = x_nchw.shape[0]
    if tb is None:
        # Keep grid >= 2 so v7x's two TensorCores both get work; raise tb
        # (16-32) for big batches on v5e/v6e to amortize per-step overhead.
        tb = max(1, min(8, n // 2))
    nblocks = pl.cdiv(n, tb)

    r1 = geo[0]["oh"] * geo[0]["ow"]
    r2 = geo[1]["oh"] * geo[1]["ow"]
    r3 = geo[2]["oh"] * geo[2]["ow"]
    assert (tb * r1) % 8 == 0, "conv1 block rows must be sublane-aligned"

    # Boundary work in XLA (single pass over the tiny input): NCHW->NHWC, bf16
    # cast, and conv1's im2col patch matrix (rows (n,y,x), cols (kh,kw,c)).
    x = jnp.transpose(x_nchw.astype(jnp.float32), (0, 2, 3, 1)).astype(jnp.bfloat16)
    patches, _, _ = im2col_nhwc(x, geo[0]["kh"], geo[0]["kw"], geo[0]["s"])
    k1p = prep["cw0"].shape[0]
    k1 = patches.shape[1]
    if k1p != k1:
        patches = jnp.pad(patches, ((0, 0), (0, k1p - k1)))

    # Per-offset row gather maps (block-local sample indices), tiny int32.
    g2 = _gather_map(tb, geo[1])
    g3 = _gather_map(tb, geo[2])
    gf = _gather_map(tb, dict(hin=geo[2]["oh"], win=geo[2]["ow"],
                              kh=geo[2]["oh"], kw=geo[2]["ow"], s=1, oh=1, ow=1))

    nap = prep["wf2"].shape[1]
    kernel = functools.partial(_dqn_fused_kernel, tb=tb, r1=r1, r2=r2, r3=r3,
                               kk2=geo[1]["kh"] * geo[1]["kw"],
                               kk3=geo[2]["kh"] * geo[2]["kw"])

    const2 = lambda b: (0, 0)
    const3 = lambda b: (0, 0, 0)
    out = pl.pallas_call(
        kernel,
        out_shape=jax.ShapeDtypeStruct((nblocks, tb, nap), jnp.float32),
        grid=(nblocks,),
        in_specs=[
            # streamed per-batch-tile input (double-buffered by Pallas)
            pl.BlockSpec((tb * r1, k1p), lambda b: (b, 0)),
            # Weights / shifts / gather maps: constant block index -> DMA'd
            # once and kept resident across grid steps (ample VMEM headroom,
            # so no explicit pl.Buffered(1) trimming is needed here).
            pl.BlockSpec(prep["cw0"].shape, const2),
            pl.BlockSpec(prep["cs0"].shape, const2),
            pl.BlockSpec(prep["cw1"].shape, const2),
            pl.BlockSpec(prep["cs1"].shape, const2),
            pl.BlockSpec(g2.shape, const3),
            pl.BlockSpec(prep["cw2"].shape, const2),
            pl.BlockSpec(prep["cs2"].shape, const2),
            pl.BlockSpec(g3.shape, const3),
            pl.BlockSpec(prep["wf1"].shape, const2),
            pl.BlockSpec(prep["bf1"].shape, const2),
            pl.BlockSpec(gf.shape, const3),
            pl.BlockSpec(prep["wf2"].shape, const2),
            pl.BlockSpec(prep["bf2"].shape, const2),
        ],
        out_specs=pl.BlockSpec((1, tb, nap), lambda b: (b, 0, 0)),
        compiler_params=pltpu.CompilerParams(
            dimension_semantics=("parallel",),
            vmem_limit_bytes=32 * 1024 * 1024),
    )(patches, prep["cw0"], prep["cs0"], prep["cw1"], prep["cs1"], g2,
      prep["cw2"], prep["cs2"], g3, prep["wf1"], prep["bf1"], gf,
      prep["wf2"], prep["bf2"])

    out = out.reshape(nblocks * tb, nap)
    return out[:n, :prep["num_actions"]]


if __name__ == "__main__":
    # Smallest spatial size that yields a valid conv stack: 36 -> 8 -> 3 -> 1.
    N, C, H, W = 2, 4, 36, 36
    NUM_ACTIONS = 6

    key = jax.random.PRNGKey(0)
    kx, kp = jax.random.split(key)
    x = jax.random.normal(kx, (N, C, H, W), jnp.float32)

    geo = conv_geometry(H, W)
    conv_out_size = 64 * geo[-1]["oh"] * geo[-1]["ow"]     # 64 * 1 * 1
    raw_params = init_params(kp, C, NUM_ACTIONS, conv_out_size)
    prep = prepare_params(raw_params, NUM_ACTIONS, (H, W))

    out = dqn_forward(prep, x)
    out = jax.block_until_ready(out)
    assert out.shape == (N, NUM_ACTIONS), out.shape
    assert out.dtype == jnp.float32
    print("KERNEL_OK")
</pallas_src>

<mosaic_0001>
module attributes {stable_mosaic.version = 11 : i64} {
  func.func @_dqn_fused_kernel(%arg0: i32, %arg1: memref<64x256xbf16, #tpu.memory_space<vmem>>, %arg2: memref<256x128xbf16, #tpu.memory_space<vmem>>, %arg3: memref<1x128xf32, #tpu.memory_space<vmem>>, %arg4: memref<2048x128xbf16, #tpu.memory_space<vmem>>, %arg5: memref<1x128xf32, #tpu.memory_space<vmem>>, %arg6: memref<16x9x1xi32, #tpu.memory_space<vmem>>, %arg7: memref<1152x128xbf16, #tpu.memory_space<vmem>>, %arg8: memref<1x128xf32, #tpu.memory_space<vmem>>, %arg9: memref<9x1x1xi32, #tpu.memory_space<vmem>>, %arg10: memref<128x512xbf16, #tpu.memory_space<vmem>>, %arg11: memref<1x512xf32, #tpu.memory_space<vmem>>, %arg12: memref<1x1x1xi32, #tpu.memory_space<vmem>>, %arg13: memref<512x128xbf16, #tpu.memory_space<vmem>>, %arg14: memref<1x128xf32, #tpu.memory_space<vmem>>, %arg15: memref<1x1x128xf32, #tpu.memory_space<vmem>>) attributes {dimension_semantics = [#tpu.dimension_semantics<parallel>], iteration_bounds = array<i64: 2>, scalar_prefetch = 0 : i64, scratch_operands = 0 : i64, tpu.core_type = #tpu.core_type<tc>, window_params = [{transform_indices = @transform_0, window_bounds = array<i64: 64, 256>}, {pipeline_mode = #tpu.pipeline_mode<synchronous>, transform_indices = @transform_1, window_bounds = array<i64: 256, 128>}, {pipeline_mode = #tpu.pipeline_mode<synchronous>, transform_indices = @transform_2, window_bounds = array<i64: 1, 128>}, {pipeline_mode = #tpu.pipeline_mode<synchronous>, transform_indices = @transform_3, window_bounds = array<i64: 2048, 128>}, {pipeline_mode = #tpu.pipeline_mode<synchronous>, transform_indices = @transform_4, window_bounds = array<i64: 1, 128>}, {pipeline_mode = #tpu.pipeline_mode<synchronous>, transform_indices = @transform_5, window_bounds = array<i64: 16, 9, 1>}, {pipeline_mode = #tpu.pipeline_mode<synchronous>, transform_indices = @transform_6, window_bounds = array<i64: 1152, 128>}, {pipeline_mode = #tpu.pipeline_mode<synchronous>, transform_indices = @transform_7, window_bounds = array<i64: 1, 128>}, {pipeline_mode = #tpu.pipeline_mode<synchronous>, transform_indices = @transform_8, window_bounds = array<i64: 9, 1, 1>}, {pipeline_mode = #tpu.pipeline_mode<synchronous>, transform_indices = @transform_9, window_bounds = array<i64: 128, 512>}, {pipeline_mode = #tpu.pipeline_mode<synchronous>, transform_indices = @transform_10, window_bounds = array<i64: 1, 512>}, {pipeline_mode = #tpu.pipeline_mode<synchronous>, transform_indices = @transform_11, window_bounds = array<i64: 1, 1, 1>}, {pipeline_mode = #tpu.pipeline_mode<synchronous>, transform_indices = @transform_12, window_bounds = array<i64: 512, 128>}, {pipeline_mode = #tpu.pipeline_mode<synchronous>, transform_indices = @transform_13, window_bounds = array<i64: 1, 128>}, {transform_indices = @transform_14, window_bounds = array<i64: 1, 1, 128>}]} {
    %c0 = arith.constant 0 : index
    %c0_0 = arith.constant 0 : index
    %0 = vector.load %arg1[%c0, %c0_0] : memref<64x256xbf16, #tpu.memory_space<vmem>>, vector<64x256xbf16>
    %c0_1 = arith.constant 0 : index
    %c0_2 = arith.constant 0 : index
    %1 = vector.load %arg2[%c0_1, %c0_2] : memref<256x128xbf16, #tpu.memory_space<vmem>>, vector<256x128xbf16>
    %cst = arith.constant dense<0.000000e+00> : vector<64x128xf32>
    %2 = tpu.matmul %0, %1, %cst {dimension_numbers = #tpu.dot_dimension_numbers<[1], [0], [0], [1], [0, 0, 1, 1], [], []>} : vector<64x256xbf16>, vector<256x128xbf16>, vector<64x128xf32> -> vector<64x128xf32>
    %c0_3 = arith.constant 0 : index
    %c0_4 = arith.constant 0 : index
    %3 = vector.load %arg3[%c0_3, %c0_4] : memref<1x128xf32, #tpu.memory_space<vmem>>, vector<1x128xf32>
    %4 = vector.broadcast %3 : vector<1x128xf32> to vector<64x128xf32>
    %5 = arith.addf %2, %4 : vector<64x128xf32>
    %cst_5 = arith.constant 0.000000e+00 : f32
    %6 = vector.broadcast %cst_5 : f32 to vector<64x128xf32>
    %7 = arith.maximumf %5, %6 : vector<64x128xf32>
    %8 = arith.truncf %7 : vector<64x128xf32> to vector<64x128xbf16>
    %9 = tpu.iota {dimensions = array<i32: 1>} : vector<9x64xi32>
    %cst_6 = arith.constant 0.000000e+00 : f32
    %10 = vector.broadcast %cst_6 : f32 to vector<9x128xf32>
    %c0_7 = arith.constant 0 : index
    %c0_8 = arith.constant 0 : index
    %c0_9 = arith.constant 0 : index
    %11 = vector.load %arg6[%c0_7, %c0_8, %c0_9] : memref<16x9x1xi32, #tpu.memory_space<vmem>>, vector<1x9x1xi32>
    %12 = vector.shape_cast %11 : vector<1x9x1xi32> to vector<9x1xi32>
    %13 = vector.broadcast %12 : vector<9x1xi32> to vector<9x64xi32>
    %14 = arith.cmpi eq, %9, %13 : vector<9x64xi32>
    %cst_10 = arith.constant 1.000000e+00 : f32
    %cst_11 = arith.constant 0.000000e+00 : f32
    %15 = vector.broadcast %cst_10 : f32 to vector<9x64xf32>
    %16 = vector.broadcast %cst_11 : f32 to vector<9x64xf32>
    %17 = arith.select %14, %15, %16 : vector<9x64xi1>, vector<9x64xf32>
    %18 = arith.truncf %17 : vector<9x64xf32> to vector<9x64xbf16>
    %cst_12 = arith.constant dense<0.000000e+00> : vector<9x128xf32>
    %19 = tpu.matmul %18, %8, %cst_12 {dimension_numbers = #tpu.dot_dimension_numbers<[1], [0], [0], [1], [0, 0, 1, 1], [], []>} : vector<9x64xbf16>, vector<64x128xbf16>, vector<9x128xf32> -> vector<9x128xf32>
    %20 = arith.truncf %19 : vector<9x128xf32> to vector<9x128xbf16>
    %c0_13 = arith.constant 0 : index
    %c0_14 = arith.constant 0 : index
    %21 = vector.load %arg4[%c0_13, %c0_14] : memref<2048x128xbf16, #tpu.memory_space<vmem>>, vector<128x128xbf16>
    %cst_15 = arith.constant dense<0.000000e+00> : vector<9x128xf32>
    %22 = tpu.matmul %20, %21, %cst_15 {dimension_numbers = #tpu.dot_dimension_numbers<[1], [0], [0], [1], [0, 0, 1, 1], [], []>} : vector<9x128xbf16>, vector<128x128xbf16>, vector<9x128xf32> -> vector<9x128xf32>
    %23 = arith.addf %10, %22 : vector<9x128xf32>
    %c1 = arith.constant 1 : index
    %c0_16 = arith.constant 0 : index
    %c0_17 = arith.constant 0 : index
    %24 = vector.load %arg6[%c1, %c0_16, %c0_17] : memref<16x9x1xi32, #tpu.memory_space<vmem>>, vector<1x9x1xi32>
    %25 = vector.shape_cast %24 : vector<1x9x1xi32> to vector<9x1xi32>
    %26 = vector.broadcast %25 : vector<9x1xi32> to vector<9x64xi32>
    %27 = arith.cmpi eq, %9, %26 : vector<9x64xi32>
    %cst_18 = arith.constant 1.000000e+00 : f32
    %cst_19 = arith.constant 0.000000e+00 : f32
    %28 = vector.broadcast %cst_18 : f32 to vector<9x64xf32>
    %29 = vector.broadcast %cst_19 : f32 to vector<9x64xf32>
    %30 = arith.select %27, %28, %29 : vector<9x64xi1>, vector<9x64xf32>
    %31 = arith.truncf %30 : vector<9x64xf32> to vector<9x64xbf16>
    %cst_20 = arith.constant dense<0.000000e+00> : vector<9x128xf32>
    %32 = tpu.matmul %31, %8, %cst_20 {dimension_numbers = #tpu.dot_dimension_numbers<[1], [0], [0], [1], [0, 0, 1, 1], [], []>} : vector<9x64xbf16>, vector<64x128xbf16>, vector<9x128xf32> -> vector<9x128xf32>
    %33 = arith.truncf %32 : vector<9x128xf32> to vector<9x128xbf16>
    %c128 = arith.constant 128 : index
    %c0_21 = arith.constant 0 : index
    %34 = vector.load %arg4[%c128, %c0_21] : memref<2048x128xbf16, #tpu.memory_space<vmem>>, vector<128x128xbf16>
    %cst_22 = arith.constant dense<0.000000e+00> : vector<9x128xf32>
    %35 = tpu.matmul %33, %34, %cst_22 {dimension_numbers = #tpu.dot_dimension_numbers<[1], [0], [0], [1], [0, 0, 1, 1], [], []>} : vector<9x128xbf16>, vector<128x128xbf16>, vector<9x128xf32> -> vector<9x128xf32>
    %36 = arith.addf %23, %35 : vector<9x128xf32>
    %c2 = arith.constant 2 : index
    %c0_23 = arith.constant 0 : index
    %c0_24 = arith.constant 0 : index
    %37 = vector.load %arg6[%c2, %c0_23, %c0_24] : memref<16x9x1xi32, #tpu.memory_space<vmem>>, vector<1x9x1xi32>
    %38 = vector.shape_cast %37 : vector<1x9x1xi32> to vector<9x1xi32>
    %39 = vector.broadcast %38 : vector<9x1xi32> to vector<9x64xi32>
    %40 = arith.cmpi eq, %9, %39 : vector<9x64xi32>
    %cst_25 = arith.constant 1.000000e+00 : f32
    %cst_26 = arith.constant 0.000000e+00 : f32
    %41 = vector.broadcast %cst_25 : f32 to vector<9x64xf32>
    %42 = vector.broadcast %cst_26 : f32 to vector<9x64xf32>
    %43 = arith.select %40, %41, %42 : vector<9x64xi1>, vector<9x64xf32>
    %44 = arith.truncf %43 : vector<9x64xf32> to vector<9x64xbf16>
    %cst_27 = arith.constant dense<0.000000e+00> : vector<9x128xf32>
    %45 = tpu.matmul %44, %8, %cst_27 {dimension_numbers = #tpu.dot_dimension_numbers<[1], [0], [0], [1], [0, 0, 1, 1], [], []>} : vector<9x64xbf16>, vector<64x128xbf16>, vector<9x128xf32> -> vector<9x128xf32>
    %46 = arith.truncf %45 : vector<9x128xf32> to vector<9x128xbf16>
    %c256 = arith.constant 256 : index
    %c0_28 = arith.constant 0 : index
    %47 = vector.load %arg4[%c256, %c0_28] : memref<2048x128xbf16, #tpu.memory_space<vmem>>, vector<128x128xbf16>
    %cst_29 = arith.constant dense<0.000000e+00> : vector<9x128xf32>
    %48 = tpu.matmul %46, %47, %cst_29 {dimension_numbers = #tpu.dot_dimension_numbers<[1], [0], [0], [1], [0, 0, 1, 1], [], []>} : vector<9x128xbf16>, vector<128x128xbf16>, vector<9x128xf32> -> vector<9x128xf32>
    %49 = arith.addf %36, %48 : vector<9x128xf32>
    %c3 = arith.constant 3 : index
    %c0_30 = arith.constant 0 : index
    %c0_31 = arith.constant 0 : index
    %50 = vector.load %arg6[%c3, %c0_30, %c0_31] : memref<16x9x1xi32, #tpu.memory_space<vmem>>, vector<1x9x1xi32>
    %51 = vector.shape_cast %50 : vector<1x9x1xi32> to vector<9x1xi32>
    %52 = vector.broadcast %51 : vector<9x1xi32> to vector<9x64xi32>
    %53 = arith.cmpi eq, %9, %52 : vector<9x64xi32>
    %cst_32 = arith.constant 1.000000e+00 : f32
    %cst_33 = arith.constant 0.000000e+00 : f32
    %54 = vector.broadcast %cst_32 : f32 to vector<9x64xf32>
    %55 = vector.broadcast %cst_33 : f32 to vector<9x64xf32>
    %56 = arith.select %53, %54, %55 : vector<9x64xi1>, vector<9x64xf32>
    %57 = arith.truncf %56 : vector<9x64xf32> to vector<9x64xbf16>
    %cst_34 = arith.constant dense<0.000000e+00> : vector<9x128xf32>
    %58 = tpu.matmul %57, %8, %cst_34 {dimension_numbers = #tpu.dot_dimension_numbers<[1], [0], [0], [1], [0, 0, 1, 1], [], []>} : vector<9x64xbf16>, vector<64x128xbf16>, vector<9x128xf32> -> vector<9x128xf32>
    %59 = arith.truncf %58 : vector<9x128xf32> to vector<9x128xbf16>
    %c384 = arith.constant 384 : index
    %c0_35 = arith.constant 0 : index
    %60 = vector.load %arg4[%c384, %c0_35] : memref<2048x128xbf16, #tpu.memory_space<vmem>>, vector<128x128xbf16>
    %cst_36 = arith.constant dense<0.000000e+00> : vector<9x128xf32>
    %61 = tpu.matmul %59, %60, %cst_36 {dimension_numbers = #tpu.dot_dimension_numbers<[1], [0], [0], [1], [0, 0, 1, 1], [], []>} : vector<9x128xbf16>, vector<128x128xbf16>, vector<9x128xf32> -> vector<9x128xf32>
    %62 = arith.addf %49, %61 : vector<9x128xf32>
    %c4 = arith.constant 4 : index
    %c0_37 = arith.constant 0 : index
    %c0_38 = arith.constant 0 : index
    %63 = vector.load %arg6[%c4, %c0_37, %c0_38] : memref<16x9x1xi32, #tpu.memory_space<vmem>>, vector<1x9x1xi32>
    %64 = vector.shape_cast %63 : vector<1x9x1xi32> to vector<9x1xi32>
    %65 = vector.broadcast %64 : vector<9x1xi32> to vector<9x64xi32>
    %66 = arith.cmpi eq, %9, %65 : vector<9x64xi32>
    %cst_39 = arith.constant 1.000000e+00 : f32
    %cst_40 = arith.constant 0.000000e+00 : f32
    %67 = vector.broadcast %cst_39 : f32 to vector<9x64xf32>
    %68 = vector.broadcast %cst_40 : f32 to vector<9x64xf32>
    %69 = arith.select %66, %67, %68 : vector<9x64xi1>, vector<9x64xf32>
    %70 = arith.truncf %69 : vector<9x64xf32> to vector<9x64xbf16>
    %cst_41 = arith.constant dense<0.000000e+00> : vector<9x128xf32>
    %71 = tpu.matmul %70, %8, %cst_41 {dimension_numbers = #tpu.dot_dimension_numbers<[1], [0], [0], [1], [0, 0, 1, 1], [], []>} : vector<9x64xbf16>, vector<64x128xbf16>, vector<9x128xf32> -> vector<9x128xf32>
    %72 = arith.truncf %71 : vector<9x128xf32> to vector<9x128xbf16>
    %c512 = arith.constant 512 : index
    %c0_42 = arith.constant 0 : index
    %73 = vector.load %arg4[%c512, %c0_42] : memref<2048x128xbf16, #tpu.memory_space<vmem>>, vector<128x128xbf16>
    %cst_43 = arith.constant dense<0.000000e+00> : vector<9x128xf32>
    %74 = tpu.matmul %72, %73, %cst_43 {dimension_numbers = #tpu.dot_dimension_numbers<[1], [0], [0], [1], [0, 0, 1, 1], [], []>} : vector<9x128xbf16>, vector<128x128xbf16>, vector<9x128xf32> -> vector<9x128xf32>
    %75 = arith.addf %62, %74 : vector<9x128xf32>
    %c5 = arith.constant 5 : index
    %c0_44 = arith.constant 0 : index
    %c0_45 = arith.constant 0 : index
    %76 = vector.load %arg6[%c5, %c0_44, %c0_45] : memref<16x9x1xi32, #tpu.memory_space<vmem>>, vector<1x9x1xi32>
    %77 = vector.shape_cast %76 : vector<1x9x1xi32> to vector<9x1xi32>
    %78 = vector.broadcast %77 : vector<9x1xi32> to vector<9x64xi32>
    %79 = arith.cmpi eq, %9, %78 : vector<9x64xi32>
    %cst_46 = arith.constant 1.000000e+00 : f32
    %cst_47 = arith.constant 0.000000e+00 : f32
    %80 = vector.broadcast %cst_46 : f32 to vector<9x64xf32>
    %81 = vector.broadcast %cst_47 : f32 to vector<9x64xf32>
    %82 = arith.select %79, %80, %81 : vector<9x64xi1>, vector<9x64xf32>
    %83 = arith.truncf %82 : vector<9x64xf32> to vector<9x64xbf16>
    %cst_48 = arith.constant dense<0.000000e+00> : vector<9x128xf32>
    %84 = tpu.matmul %83, %8, %cst_48 {dimension_numbers = #tpu.dot_dimension_numbers<[1], [0], [0], [1], [0, 0, 1, 1], [], []>} : vector<9x64xbf16>, vector<64x128xbf16>, vector<9x128xf32> -> vector<9x128xf32>
    %85 = arith.truncf %84 : vector<9x128xf32> to vector<9x128xbf16>
    %c640 = arith.constant 640 : index
    %c0_49 = arith.constant 0 : index
    %86 = vector.load %arg4[%c640, %c0_49] : memref<2048x128xbf16, #tpu.memory_space<vmem>>, vector<128x128xbf16>
    %cst_50 = arith.constant dense<0.000000e+00> : vector<9x128xf32>
    %87 = tpu.matmul %85, %86, %cst_50 {dimension_numbers = #tpu.dot_dimension_numbers<[1], [0], [0], [1], [0, 0, 1, 1], [], []>} : vector<9x128xbf16>, vector<128x128xbf16>, vector<9x128xf32> -> vector<9x128xf32>
    %88 = arith.addf %75, %87 : vector<9x128xf32>
    %c6 = arith.constant 6 : index
    %c0_51 = arith.constant 0 : index
    %c0_52 = arith.constant 0 : index
    %89 = vector.load %arg6[%c6, %c0_51, %c0_52] : memref<16x9x1xi32, #tpu.memory_space<vmem>>, vector<1x9x1xi32>
    %90 = vector.shape_cast %89 : vector<1x9x1xi32> to vector<9x1xi32>
    %91 = vector.broadcast %90 : vector<9x1xi32> to vector<9x64xi32>
    %92 = arith.cmpi eq, %9, %91 : vector<9x64xi32>
    %cst_53 = arith.constant 1.000000e+00 : f32
    %cst_54 = arith.constant 0.000000e+00 : f32
    %93 = vector.broadcast %cst_53 : f32 to vector<9x64xf32>
    %94 = vector.broadcast %cst_54 : f32 to vector<9x64xf32>
    %95 = arith.select %92, %93, %94 : vector<9x64xi1>, vector<9x64xf32>
    %96 = arith.truncf %95 : vector<9x64xf32> to vector<9x64xbf16>
    %cst_55 = arith.constant dense<0.000000e+00> : vector<9x128xf32>
    %97 = tpu.matmul %96, %8, %cst_55 {dimension_numbers = #tpu.dot_dimension_numbers<[1], [0], [0], [1], [0, 0, 1, 1], [], []>} : vector<9x64xbf16>, vector<64x128xbf16>, vector<9x128xf32> -> vector<9x128xf32>
    %98 = arith.truncf %97 : vector<9x128xf32> to vector<9x128xbf16>
    %c768 = arith.constant 768 : index
    %c0_56 = arith.constant 0 : index
    %99 = vector.load %arg4[%c768, %c0_56] : memref<2048x128xbf16, #tpu.memory_space<vmem>>, vector<128x128xbf16>
    %cst_57 = arith.constant dense<0.000000e+00> : vector<9x128xf32>
    %100 = tpu.matmul %98, %99, %cst_57 {dimension_numbers = #tpu.dot_dimension_numbers<[1], [0], [0], [1], [0, 0, 1, 1], [], []>} : vector<9x128xbf16>, vector<128x128xbf16>, vector<9x128xf32> -> vector<9x128xf32>
    %101 = arith.addf %88, %100 : vector<9x128xf32>
    %c7 = arith.constant 7 : index
    %c0_58 = arith.constant 0 : index
    %c0_59 = arith.constant 0 : index
    %102 = vector.load %arg6[%c7, %c0_58, %c0_59] : memref<16x9x1xi32, #tpu.memory_space<vmem>>, vector<1x9x1xi32>
    %103 = vector.shape_cast %102 : vector<1x9x1xi32> to vector<9x1xi32>
    %104 = vector.broadcast %103 : vector<9x1xi32> to vector<9x64xi32>
    %105 = arith.cmpi eq, %9, %104 : vector<9x64xi32>
    %cst_60 = arith.constant 1.000000e+00 : f32
    %cst_61 = arith.constant 0.000000e+00 : f32
    %106 = vector.broadcast %cst_60 : f32 to vector<9x64xf32>
    %107 = vector.broadcast %cst_61 : f32 to vector<9x64xf32>
    %108 = arith.select %105, %106, %107 : vector<9x64xi1>, vector<9x64xf32>
    %109 = arith.truncf %108 : vector<9x64xf32> to vector<9x64xbf16>
    %cst_62 = arith.constant dense<0.000000e+00> : vector<9x128xf32>
    %110 = tpu.matmul %109, %8, %cst_62 {dimension_numbers = #tpu.dot_dimension_numbers<[1], [0], [0], [1], [0, 0, 1, 1], [], []>} : vector<9x64xbf16>, vector<64x128xbf16>, vector<9x128xf32> -> vector<9x128xf32>
    %111 = arith.truncf %110 : vector<9x128xf32> to vector<9x128xbf16>
    %c896 = arith.constant 896 : index
    %c0_63 = arith.constant 0 : index
    %112 = vector.load %arg4[%c896, %c0_63] : memref<2048x128xbf16, #tpu.memory_space<vmem>>, vector<128x128xbf16>
    %cst_64 = arith.constant dense<0.000000e+00> : vector<9x128xf32>
    %113 = tpu.matmul %111, %112, %cst_64 {dimension_numbers = #tpu.dot_dimension_numbers<[1], [0], [0], [1], [0, 0, 1, 1], [], []>} : vector<9x128xbf16>, vector<128x128xbf16>, vector<9x128xf32> -> vector<9x128xf32>
    %114 = arith.addf %101, %113 : vector<9x128xf32>
    %c8 = arith.constant 8 : index
    %c0_65 = arith.constant 0 : index
    %c0_66 = arith.constant 0 : index
    %115 = vector.load %arg6[%c8, %c0_65, %c0_66] : memref<16x9x1xi32, #tpu.memory_space<vmem>>, vector<1x9x1xi32>
    %116 = vector.shape_cast %115 : vector<1x9x1xi32> to vector<9x1xi32>
    %117 = vector.broadcast %116 : vector<9x1xi32> to vector<9x64xi32>
    %118 = arith.cmpi eq, %9, %117 : vector<9x64xi32>
    %cst_67 = arith.constant 1.000000e+00 : f32
    %cst_68 = arith.constant 0.000000e+00 : f32
    %119 = vector.broadcast %cst_67 : f32 to vector<9x64xf32>
    %120 = vector.broadcast %cst_68 : f32 to vector<9x64xf32>
    %121 = arith.select %118, %119, %120 : vector<9x64xi1>, vector<9x64xf32>
    %122 = arith.truncf %121 : vector<9x64xf32> to vector<9x64xbf16>
    %cst_69 = arith.constant dense<0.000000e+00> : vector<9x128xf32>
    %123 = tpu.matmul %122, %8, %cst_69 {dimension_numbers = #tpu.dot_dimension_numbers<[1], [0], [0], [1], [0, 0, 1, 1], [], []>} : vector<9x64xbf16>, vector<64x128xbf16>, vector<9x128xf32> -> vector<9x128xf32>
    %124 = arith.truncf %123 : vector<9x128xf32> to vector<9x128xbf16>
    %c1024 = arith.constant 1024 : index
    %c0_70 = arith.constant 0 : index
    %125 = vector.load %arg4[%c1024, %c0_70] : memref<2048x128xbf16, #tpu.memory_space<vmem>>, vector<128x128xbf16>
    %cst_71 = arith.constant dense<0.000000e+00> : vector<9x128xf32>
    %126 = tpu.matmul %124, %125, %cst_71 {dimension_numbers = #tpu.dot_dimension_numbers<[1], [0], [0], [1], [0, 0, 1, 1], [], []>} : vector<9x128xbf16>, vector<128x128xbf16>, vector<9x128xf32> -> vector<9x128xf32>
    %127 = arith.addf %114, %126 : vector<9x128xf32>
    %c9 = arith.constant 9 : index
    %c0_72 = arith.constant 0 : index
    %c0_73 = arith.constant 0 : index
    %128 = vector.load %arg6[%c9, %c0_72, %c0_73] : memref<16x9x1xi32, #tpu.memory_space<vmem>>, vector<1x9x1xi32>
    %129 = vector.shape_cast %128 : vector<1x9x1xi32> to vector<9x1xi32>
    %130 = vector.broadcast %129 : vector<9x1xi32> to vector<9x64xi32>
    %131 = arith.cmpi eq, %9, %130 : vector<9x64xi32>
    %cst_74 = arith.constant 1.000000e+00 : f32
    %cst_75 = arith.constant 0.000000e+00 : f32
    %132 = vector.broadcast %cst_74 : f32 to vector<9x64xf32>
    %133 = vector.broadcast %cst_75 : f32 to vector<9x64xf32>
    %134 = arith.select %131, %132, %133 : vector<9x64xi1>, vector<9x64xf32>
    %135 = arith.truncf %134 : vector<9x64xf32> to vector<9x64xbf16>
    %cst_76 = arith.constant dense<0.000000e+00> : vector<9x128xf32>
    %136 = tpu.matmul %135, %8, %cst_76 {dimension_numbers = #tpu.dot_dimension_numbers<[1], [0], [0], [1], [0, 0, 1, 1], [], []>} : vector<9x64xbf16>, vector<64x128xbf16>, vector<9x128xf32> -> vector<9x128xf32>
    %137 = arith.truncf %136 : vector<9x128xf32> to vector<9x128xbf16>
    %c1152 = arith.constant 1152 : index
    %c0_77 = arith.constant 0 : index
    %138 = vector.load %arg4[%c1152, %c0_77] : memref<2048x128xbf16, #tpu.memory_space<vmem>>, vector<128x128xbf16>
    %cst_78 = arith.constant dense<0.000000e+00> : vector<9x128xf32>
    %139 = tpu.matmul %137, %138, %cst_78 {dimension_numbers = #tpu.dot_dimension_numbers<[1], [0], [0], [1], [0, 0, 1, 1], [], []>} : vector<9x128xbf16>, vector<128x128xbf16>, vector<9x128xf32> -> vector<9x128xf32>
    %140 = arith.addf %127, %139 : vector<9x128xf32>
    %c10 = arith.constant 10 : index
    %c0_79 = arith.constant 0 : index
    %c0_80 = arith.constant 0 : index
    %141 = vector.load %arg6[%c10, %c0_79, %c0_80] : memref<16x9x1xi32, #tpu.memory_space<vmem>>, vector<1x9x1xi32>
    %142 = vector.shape_cast %141 : vector<1x9x1xi32> to vector<9x1xi32>
    %143 = vector.broadcast %142 : vector<9x1xi32> to vector<9x64xi32>
    %144 = arith.cmpi eq, %9, %143 : vector<9x64xi32>
    %cst_81 = arith.constant 1.000000e+00 : f32
    %cst_82 = arith.constant 0.000000e+00 : f32
    %145 = vector.broadcast %cst_81 : f32 to vector<9x64xf32>
    %146 = vector.broadcast %cst_82 : f32 to vector<9x64xf32>
    %147 = arith.select %144, %145, %146 : vector<9x64xi1>, vector<9x64xf32>
    %148 = arith.truncf %147 : vector<9x64xf32> to vector<9x64xbf16>
    %cst_83 = arith.constant dense<0.000000e+00> : vector<9x128xf32>
    %149 = tpu.matmul %148, %8, %cst_83 {dimension_numbers = #tpu.dot_dimension_numbers<[1], [0], [0], [1], [0, 0, 1, 1], [], []>} : vector<9x64xbf16>, vector<64x128xbf16>, vector<9x128xf32> -> vector<9x128xf32>
    %150 = arith.truncf %149 : vector<9x128xf32> to vector<9x128xbf16>
    %c1280 = arith.constant 1280 : index
    %c0_84 = arith.constant 0 : index
    %151 = vector.load %arg4[%c1280, %c0_84] : memref<2048x128xbf16, #tpu.memory_space<vmem>>, vector<128x128xbf16>
    %cst_85 = arith.constant dense<0.000000e+00> : vector<9x128xf32>
    %152 = tpu.matmul %150, %151, %cst_85 {dimension_numbers = #tpu.dot_dimension_numbers<[1], [0], [0], [1], [0, 0, 1, 1], [], []>} : vector<9x128xbf16>, vector<128x128xbf16>, vector<9x128xf32> -> vector<9x128xf32>
    %153 = arith.addf %140, %152 : vector<9x128xf32>
    %c11 = arith.constant 11 : index
    %c0_86 = arith.constant 0 : index
    %c0_87 = arith.constant 0 : index
    %154 = vector.load %arg6[%c11, %c0_86, %c0_87] : memref<16x9x1xi32, #tpu.memory_space<vmem>>, vector<1x9x1xi32>
    %155 = vector.shape_cast %154 : vector<1x9x1xi32> to vector<9x1xi32>
    %156 = vector.broadcast %155 : vector<9x1xi32> to vector<9x64xi32>
    %157 = arith.cmpi eq, %9, %156 : vector<9x64xi32>
    %cst_88 = arith.constant 1.000000e+00 : f32
    %cst_89 = arith.constant 0.000000e+00 : f32
    %158 = vector.broadcast %cst_88 : f32 to vector<9x64xf32>
    %159 = vector.broadcast %cst_89 : f32 to vector<9x64xf32>
    %160 = arith.select %157, %158, %159 : vector<9x64xi1>, vector<9x64xf32>
    %161 = arith.truncf %160 : vector<9x64xf32> to vector<9x64xbf16>
    %cst_90 = arith.constant dense<0.000000e+00> : vector<9x128xf32>
    %162 = tpu.matmul %161, %8, %cst_90 {dimension_numbers = #tpu.dot_dimension_numbers<[1], [0], [0], [1], [0, 0, 1, 1], [], []>} : vector<9x64xbf16>, vector<64x128xbf16>, vector<9x128xf32> -> vector<9x128xf32>
    %163 = arith.truncf %162 : vector<9x128xf32> to vector<9x128xbf16>
    %c1408 = arith.constant 1408 : index
    %c0_91 = arith.constant 0 : index
    %164 = vector.load %arg4[%c1408, %c0_91] : memref<2048x128xbf16, #tpu.memory_space<vmem>>, vector<128x128xbf16>
    %cst_92 = arith.constant dense<0.000000e+00> : vector<9x128xf32>
    %165 = tpu.matmul %163, %164, %cst_92 {dimension_numbers = #tpu.dot_dimension_numbers<[1], [0], [0], [1], [0, 0, 1, 1], [], []>} : vector<9x128xbf16>, vector<128x128xbf16>, vector<9x128xf32> -> vector<9x128xf32>
    %166 = arith.addf %153, %165 : vector<9x128xf32>
    %c12 = arith.constant 12 : index
    %c0_93 = arith.constant 0 : index
    %c0_94 = arith.constant 0 : index
    %167 = vector.load %arg6[%c12, %c0_93, %c0_94] : memref<16x9x1xi32, #tpu.memory_space<vmem>>, vector<1x9x1xi32>
    %168 = vector.shape_cast %167 : vector<1x9x1xi32> to vector<9x1xi32>
    %169 = vector.broadcast %168 : vector<9x1xi32> to vector<9x64xi32>
    %170 = arith.cmpi eq, %9, %169 : vector<9x64xi32>
    %cst_95 = arith.constant 1.000000e+00 : f32
    %cst_96 = arith.constant 0.000000e+00 : f32
    %171 = vector.broadcast %cst_95 : f32 to vector<9x64xf32>
    %172 = vector.broadcast %cst_96 : f32 to vector<9x64xf32>
    %173 = arith.select %170, %171, %172 : vector<9x64xi1>, vector<9x64xf32>
    %174 = arith.truncf %173 : vector<9x64xf32> to vector<9x64xbf16>
    %cst_97 = arith.constant dense<0.000000e+00> : vector<9x128xf32>
    %175 = tpu.matmul %174, %8, %cst_97 {dimension_numbers = #tpu.dot_dimension_numbers<[1], [0], [0], [1], [0, 0, 1, 1], [], []>} : vector<9x64xbf16>, vector<64x128xbf16>, vector<9x128xf32> -> vector<9x128xf32>
    %176 = arith.truncf %175 : vector<9x128xf32> to vector<9x128xbf16>
    %c1536 = arith.constant 1536 : index
    %c0_98 = arith.constant 0 : index
    %177 = vector.load %arg4[%c1536, %c0_98] : memref<2048x128xbf16, #tpu.memory_space<vmem>>, vector<128x128xbf16>
    %cst_99 = arith.constant dense<0.000000e+00> : vector<9x128xf32>
    %178 = tpu.matmul %176, %177, %cst_99 {dimension_numbers = #tpu.dot_dimension_numbers<[1], [0], [0], [1], [0, 0, 1, 1], [], []>} : vector<9x128xbf16>, vector<128x128xbf16>, vector<9x128xf32> -> vector<9x128xf32>
    %179 = arith.addf %166, %178 : vector<9x128xf32>
    %c13 = arith.constant 13 : index
    %c0_100 = arith.constant 0 : index
    %c0_101 = arith.constant 0 : index
    %180 = vector.load %arg6[%c13, %c0_100, %c0_101] : memref<16x9x1xi32, #tpu.memory_space<vmem>>, vector<1x9x1xi32>
    %181 = vector.shape_cast %180 : vector<1x9x1xi32> to vector<9x1xi32>
    %182 = vector.broadcast %181 : vector<9x1xi32> to vector<9x64xi32>
    %183 = arith.cmpi eq, %9, %182 : vector<9x64xi32>
    %cst_102 = arith.constant 1.000000e+00 : f32
    %cst_103 = arith.constant 0.000000e+00 : f32
    %184 = vector.broadcast %cst_102 : f32 to vector<9x64xf32>
    %185 = vector.broadcast %cst_103 : f32 to vector<9x64xf32>
    %186 = arith.select %183, %184, %185 : vector<9x64xi1>, vector<9x64xf32>
    %187 = arith.truncf %186 : vector<9x64xf32> to vector<9x64xbf16>
    %cst_104 = arith.constant dense<0.000000e+00> : vector<9x128xf32>
    %188 = tpu.matmul %187, %8, %cst_104 {dimension_numbers = #tpu.dot_dimension_numbers<[1], [0], [0], [1], [0, 0, 1, 1], [], []>} : vector<9x64xbf16>, vector<64x128xbf16>, vector<9x128xf32> -> vector<9x128xf32>
    %189 = arith.truncf %188 : vector<9x128xf32> to vector<9x128xbf16>
    %c1664 = arith.constant 1664 : index
    %c0_105 = arith.constant 0 : index
    %190 = vector.load %arg4[%c1664, %c0_105] : memref<2048x128xbf16, #tpu.memory_space<vmem>>, vector<128x128xbf16>
    %cst_106 = arith.constant dense<0.000000e+00> : vector<9x128xf32>
    %191 = tpu.matmul %189, %190, %cst_106 {dimension_numbers = #tpu.dot_dimension_numbers<[1], [0], [0], [1], [0, 0, 1, 1], [], []>} : vector<9x128xbf16>, vector<128x128xbf16>, vector<9x128xf32> -> vector<9x128xf32>
    %192 = arith.addf %179, %191 : vector<9x128xf32>
    %c14 = arith.constant 14 : index
    %c0_107 = arith.constant 0 : index
    %c0_108 = arith.constant 0 : index
    %193 = vector.load %arg6[%c14, %c0_107, %c0_108] : memref<16x9x1xi32, #tpu.memory_space<vmem>>, vector<1x9x1xi32>
    %194 = vector.shape_cast %193 : vector<1x9x1xi32> to vector<9x1xi32>
    %195 = vector.broadcast %194 : vector<9x1xi32> to vector<9x64xi32>
    %196 = arith.cmpi eq, %9, %195 : vector<9x64xi32>
    %cst_109 = arith.constant 1.000000e+00 : f32
    %cst_110 = arith.constant 0.000000e+00 : f32
    %197 = vector.broadcast %cst_109 : f32 to vector<9x64xf32>
    %198 = vector.broadcast %cst_110 : f32 to vector<9x64xf32>
    %199 = arith.select %196, %197, %198 : vector<9x64xi1>, vector<9x64xf32>
    %200 = arith.truncf %199 : vector<9x64xf32> to vector<9x64xbf16>
    %cst_111 = arith.constant dense<0.000000e+00> : vector<9x128xf32>
    %201 = tpu.matmul %200, %8, %cst_111 {dimension_numbers = #tpu.dot_dimension_numbers<[1], [0], [0], [1], [0, 0, 1, 1], [], []>} : vector<9x64xbf16>, vector<64x128xbf16>, vector<9x128xf32> -> vector<9x128xf32>
    %202 = arith.truncf %201 : vector<9x128xf32> to vector<9x128xbf16>
    %c1792 = arith.constant 1792 : index
    %c0_112 = arith.constant 0 : index
    %203 = vector.load %arg4[%c1792, %c0_112] : memref<2048x128xbf16, #tpu.memory_space<vmem>>, vector<128x128xbf16>
    %cst_113 = arith.constant dense<0.000000e+00> : vector<9x128xf32>
    %204 = tpu.matmul %202, %203, %cst_113 {dimension_numbers = #tpu.dot_dimension_numbers<[1], [0], [0], [1], [0, 0, 1, 1], [], []>} : vector<9x128xbf16>, vector<128x128xbf16>, vector<9x128xf32> -> vector<9x128xf32>
    %205 = arith.addf %192, %204 : vector<9x128xf32>
    %c15 = arith.constant 15 : index
    %c0_114 = arith.constant 0 : index
    %c0_115 = arith.constant 0 : index
    %206 = vector.load %arg6[%c15, %c0_114, %c0_115] : memref<16x9x1xi32, #tpu.memory_space<vmem>>, vector<1x9x1xi32>
    %207 = vector.shape_cast %206 : vector<1x9x1xi32> to vector<9x1xi32>
    %208 = vector.broadcast %207 : vector<9x1xi32> to vector<9x64xi32>
    %209 = arith.cmpi eq, %9, %208 : vector<9x64xi32>
    %cst_116 = arith.constant 1.000000e+00 : f32
    %cst_117 = arith.constant 0.000000e+00 : f32
    %210 = vector.broadcast %cst_116 : f32 to vector<9x64xf32>
    %211 = vector.broadcast %cst_117 : f32 to vector<9x64xf32>
    %212 = arith.select %209, %210, %211 : vector<9x64xi1>, vector<9x64xf32>
    %213 = arith.truncf %212 : vector<9x64xf32> to vector<9x64xbf16>
    %cst_118 = arith.constant dense<0.000000e+00> : vector<9x128xf32>
    %214 = tpu.matmul %213, %8, %cst_118 {dimension_numbers = #tpu.dot_dimension_numbers<[1], [0], [0], [1], [0, 0, 1, 1], [], []>} : vector<9x64xbf16>, vector<64x128xbf16>, vector<9x128xf32> -> vector<9x128xf32>
    %215 = arith.truncf %214 : vector<9x128xf32> to vector<9x128xbf16>
    %c1920 = arith.constant 1920 : index
    %c0_119 = arith.constant 0 : index
    %216 = vector.load %arg4[%c1920, %c0_119] : memref<2048x128xbf16, #tpu.memory_space<vmem>>, vector<128x128xbf16>
    %cst_120 = arith.constant dense<0.000000e+00> : vector<9x128xf32>
    %217 = tpu.matmul %215, %216, %cst_120 {dimension_numbers = #tpu.dot_dimension_numbers<[1], [0], [0], [1], [0, 0, 1, 1], [], []>} : vector<9x128xbf16>, vector<128x128xbf16>, vector<9x128xf32> -> vector<9x128xf32>
    %218 = arith.addf %205, %217 : vector<9x128xf32>
    %c0_121 = arith.constant 0 : index
    %c0_122 = arith.constant 0 : index
    %219 = vector.load %arg5[%c0_121, %c0_122] : memref<1x128xf32, #tpu.memory_space<vmem>>, vector<1x128xf32>
    %220 = vector.broadcast %219 : vector<1x128xf32> to vector<9x128xf32>
    %221 = arith.addf %218, %220 : vector<9x128xf32>
    %cst_123 = arith.constant 0.000000e+00 : f32
    %222 = vector.broadcast %cst_123 : f32 to vector<9x128xf32>
    %223 = arith.maximumf %221, %222 : vector<9x128xf32>
    %224 = arith.truncf %223 : vector<9x128xf32> to vector<9x128xbf16>
    %225 = tpu.iota {dimensions = array<i32: 1>} : vector<1x9xi32>
    %cst_124 = arith.constant 0.000000e+00 : f32
    %226 = vector.broadcast %cst_124 : f32 to vector<1x128xf32>
    %c0_125 = arith.constant 0 : index
    %c0_126 = arith.constant 0 : index
    %c0_127 = arith.constant 0 : index
    %227 = vector.load %arg9[%c0_125, %c0_126, %c0_127] : memref<9x1x1xi32, #tpu.memory_space<vmem>>, vector<1x1x1xi32>
    %228 = vector.shape_cast %227 : vector<1x1x1xi32> to vector<1x1xi32>
    %229 = vector.broadcast %228 : vector<1x1xi32> to vector<1x9xi32>
    %230 = arith.cmpi eq, %225, %229 : vector<1x9xi32>
    %cst_128 = arith.constant 1.000000e+00 : f32
    %cst_129 = arith.constant 0.000000e+00 : f32
    %231 = vector.broadcast %cst_128 : f32 to vector<1x9xf32>
    %232 = vector.broadcast %cst_129 : f32 to vector<1x9xf32>
    %233 = arith.select %230, %231, %232 : vector<1x9xi1>, vector<1x9xf32>
    %234 = arith.truncf %233 : vector<1x9xf32> to vector<1x9xbf16>
    %cst_130 = arith.constant dense<0.000000e+00> : vector<1x128xf32>
    %235 = tpu.matmul %234, %224, %cst_130 {dimension_numbers = #tpu.dot_dimension_numbers<[1], [0], [0], [1], [0, 0, 1, 1], [], []>} : vector<1x9xbf16>, vector<9x128xbf16>, vector<1x128xf32> -> vector<1x128xf32>
    %236 = arith.truncf %235 : vector<1x128xf32> to vector<1x128xbf16>
    %c0_131 = arith.constant 0 : index
    %c0_132 = arith.constant 0 : index
    %237 = vector.load %arg7[%c0_131, %c0_132] : memref<1152x128xbf16, #tpu.memory_space<vmem>>, vector<128x128xbf16>
    %cst_133 = arith.constant dense<0.000000e+00> : vector<1x128xf32>
    %238 = tpu.matmul %236, %237, %cst_133 {dimension_numbers = #tpu.dot_dimension_numbers<[1], [0], [0], [1], [0, 0, 1, 1], [], []>} : vector<1x128xbf16>, vector<128x128xbf16>, vector<1x128xf32> -> vector<1x128xf32>
    %239 = arith.addf %226, %238 : vector<1x128xf32>
    %c1_134 = arith.constant 1 : index
    %c0_135 = arith.constant 0 : index
    %c0_136 = arith.constant 0 : index
    %240 = vector.load %arg9[%c1_134, %c0_135, %c0_136] : memref<9x1x1xi32, #tpu.memory_space<vmem>>, vector<1x1x1xi32>
    %241 = vector.shape_cast %240 : vector<1x1x1xi32> to vector<1x1xi32>
    %242 = vector.broadcast %241 : vector<1x1xi32> to vector<1x9xi32>
    %243 = arith.cmpi eq, %225, %242 : vector<1x9xi32>
    %cst_137 = arith.constant 1.000000e+00 : f32
    %cst_138 = arith.constant 0.000000e+00 : f32
    %244 = vector.broadcast %cst_137 : f32 to vector<1x9xf32>
    %245 = vector.broadcast %cst_138 : f32 to vector<1x9xf32>
    %246 = arith.select %243, %244, %245 : vector<1x9xi1>, vector<1x9xf32>
    %247 = arith.truncf %246 : vector<1x9xf32> to vector<1x9xbf16>
    %cst_139 = arith.constant dense<0.000000e+00> : vector<1x128xf32>
    %248 = tpu.matmul %247, %224, %cst_139 {dimension_numbers = #tpu.dot_dimension_numbers<[1], [0], [0], [1], [0, 0, 1, 1], [], []>} : vector<1x9xbf16>, vector<9x128xbf16>, vector<1x128xf32> -> vector<1x128xf32>
    %249 = arith.truncf %248 : vector<1x128xf32> to vector<1x128xbf16>
    %c128_140 = arith.constant 128 : index
    %c0_141 = arith.constant 0 : index
    %250 = vector.load %arg7[%c128_140, %c0_141] : memref<1152x128xbf16, #tpu.memory_space<vmem>>, vector<128x128xbf16>
    %cst_142 = arith.constant dense<0.000000e+00> : vector<1x128xf32>
    %251 = tpu.matmul %249, %250, %cst_142 {dimension_numbers = #tpu.dot_dimension_numbers<[1], [0], [0], [1], [0, 0, 1, 1], [], []>} : vector<1x128xbf16>, vector<128x128xbf16>, vector<1x128xf32> -> vector<1x128xf32>
    %252 = arith.addf %239, %251 : vector<1x128xf32>
    %c2_143 = arith.constant 2 : index
    %c0_144 = arith.constant 0 : index
    %c0_145 = arith.constant 0 : index
    %253 = vector.load %arg9[%c2_143, %c0_144, %c0_145] : memref<9x1x1xi32, #tpu.memory_space<vmem>>, vector<1x1x1xi32>
    %254 = vector.shape_cast %253 : vector<1x1x1xi32> to vector<1x1xi32>
    %255 = vector.broadcast %254 : vector<1x1xi32> to vector<1x9xi32>
    %256 = arith.cmpi eq, %225, %255 : vector<1x9xi32>
    %cst_146 = arith.constant 1.000000e+00 : f32
    %cst_147 = arith.constant 0.000000e+00 : f32
    %257 = vector.broadcast %cst_146 : f32 to vector<1x9xf32>
    %258 = vector.broadcast %cst_147 : f32 to vector<1x9xf32>
    %259 = arith.select %256, %257, %258 : vector<1x9xi1>, vector<1x9xf32>
    %260 = arith.truncf %259 : vector<1x9xf32> to vector<1x9xbf16>
    %cst_148 = arith.constant dense<0.000000e+00> : vector<1x128xf32>
    %261 = tpu.matmul %260, %224, %cst_148 {dimension_numbers = #tpu.dot_dimension_numbers<[1], [0], [0], [1], [0, 0, 1, 1], [], []>} : vector<1x9xbf16>, vector<9x128xbf16>, vector<1x128xf32> -> vector<1x128xf32>
    %262 = arith.truncf %261 : vector<1x128xf32> to vector<1x128xbf16>
    %c256_149 = arith.constant 256 : index
    %c0_150 = arith.constant 0 : index
    %263 = vector.load %arg7[%c256_149, %c0_150] : memref<1152x128xbf16, #tpu.memory_space<vmem>>, vector<128x128xbf16>
    %cst_151 = arith.constant dense<0.000000e+00> : vector<1x128xf32>
    %264 = tpu.matmul %262, %263, %cst_151 {dimension_numbers = #tpu.dot_dimension_numbers<[1], [0], [0], [1], [0, 0, 1, 1], [], []>} : vector<1x128xbf16>, vector<128x128xbf16>, vector<1x128xf32> -> vector<1x128xf32>
    %265 = arith.addf %252, %264 : vector<1x128xf32>
    %c3_152 = arith.constant 3 : index
    %c0_153 = arith.constant 0 : index
    %c0_154 = arith.constant 0 : index
    %266 = vector.load %arg9[%c3_152, %c0_153, %c0_154] : memref<9x1x1xi32, #tpu.memory_space<vmem>>, vector<1x1x1xi32>
    %267 = vector.shape_cast %266 : vector<1x1x1xi32> to vector<1x1xi32>
    %268 = vector.broadcast %267 : vector<1x1xi32> to vector<1x9xi32>
    %269 = arith.cmpi eq, %225, %268 : vector<1x9xi32>
    %cst_155 = arith.constant 1.000000e+00 : f32
    %cst_156 = arith.constant 0.000000e+00 : f32
    %270 = vector.broadcast %cst_155 : f32 to vector<1x9xf32>
    %271 = vector.broadcast %cst_156 : f32 to vector<1x9xf32>
    %272 = arith.select %269, %270, %271 : vector<1x9xi1>, vector<1x9xf32>
    %273 = arith.truncf %272 : vector<1x9xf32> to vector<1x9xbf16>
    %cst_157 = arith.constant dense<0.000000e+00> : vector<1x128xf32>
    %274 = tpu.matmul %273, %224, %cst_157 {dimension_numbers = #tpu.dot_dimension_numbers<[1], [0], [0], [1], [0, 0, 1, 1], [], []>} : vector<1x9xbf16>, vector<9x128xbf16>, vector<1x128xf32> -> vector<1x128xf32>
    %275 = arith.truncf %274 : vector<1x128xf32> to vector<1x128xbf16>
    %c384_158 = arith.constant 384 : index
    %c0_159 = arith.constant 0 : index
    %276 = vector.load %arg7[%c384_158, %c0_159] : memref<1152x128xbf16, #tpu.memory_space<vmem>>, vector<128x128xbf16>
    %cst_160 = arith.constant dense<0.000000e+00> : vector<1x128xf32>
    %277 = tpu.matmul %275, %276, %cst_160 {dimension_numbers = #tpu.dot_dimension_numbers<[1], [0], [0], [1], [0, 0, 1, 1], [], []>} : vector<1x128xbf16>, vector<128x128xbf16>, vector<1x128xf32> -> vector<1x128xf32>
    %278 = arith.addf %265, %277 : vector<1x128xf32>
    %c4_161 = arith.constant 4 : index
    %c0_162 = arith.constant 0 : index
    %c0_163 = arith.constant 0 : index
    %279 = vector.load %arg9[%c4_161, %c0_162, %c0_163] : memref<9x1x1xi32, #tpu.memory_space<vmem>>, vector<1x1x1xi32>
    %280 = vector.shape_cast %279 : vector<1x1x1xi32> to vector<1x1xi32>
    %281 = vector.broadcast %280 : vector<1x1xi32> to vector<1x9xi32>
    %282 = arith.cmpi eq, %225, %281 : vector<1x9xi32>
    %cst_164 = arith.constant 1.000000e+00 : f32
    %cst_165 = arith.constant 0.000000e+00 : f32
    %283 = vector.broadcast %cst_164 : f32 to vector<1x9xf32>
    %284 = vector.broadcast %cst_165 : f32 to vector<1x9xf32>
    %285 = arith.select %282, %283, %284 : vector<1x9xi1>, vector<1x9xf32>
    %286 = arith.truncf %285 : vector<1x9xf32> to vector<1x9xbf16>
    %cst_166 = arith.constant dense<0.000000e+00> : vector<1x128xf32>
    %287 = tpu.matmul %286, %224, %cst_166 {dimension_numbers = #tpu.dot_dimension_numbers<[1], [0], [0], [1], [0, 0, 1, 1], [], []>} : vector<1x9xbf16>, vector<9x128xbf16>, vector<1x128xf32> -> vector<1x128xf32>
    %288 = arith.truncf %287 : vector<1x128xf32> to vector<1x128xbf16>
    %c512_167 = arith.constant 512 : index
    %c0_168 = arith.constant 0 : index
    %289 = vector.load %arg7[%c512_167, %c0_168] : memref<1152x128xbf16, #tpu.memory_space<vmem>>, vector<128x128xbf16>
    %cst_169 = arith.constant dense<0.000000e+00> : vector<1x128xf32>
    %290 = tpu.matmul %288, %289, %cst_169 {dimension_numbers = #tpu.dot_dimension_numbers<[1], [0], [0], [1], [0, 0, 1, 1], [], []>} : vector<1x128xbf16>, vector<128x128xbf16>, vector<1x128xf32> -> vector<1x128xf32>
    %291 = arith.addf %278, %290 : vector<1x128xf32>
    %c5_170 = arith.constant 5 : index
    %c0_171 = arith.constant 0 : index
    %c0_172 = arith.constant 0 : index
    %292 = vector.load %arg9[%c5_170, %c0_171, %c0_172] : memref<9x1x1xi32, #tpu.memory_space<vmem>>, vector<1x1x1xi32>
    %293 = vector.shape_cast %292 : vector<1x1x1xi32> to vector<1x1xi32>
    %294 = vector.broadcast %293 : vector<1x1xi32> to vector<1x9xi32>
    %295 = arith.cmpi eq, %225, %294 : vector<1x9xi32>
    %cst_173 = arith.constant 1.000000e+00 : f32
    %cst_174 = arith.constant 0.000000e+00 : f32
    %296 = vector.broadcast %cst_173 : f32 to vector<1x9xf32>
    %297 = vector.broadcast %cst_174 : f32 to vector<1x9xf32>
    %298 = arith.select %295, %296, %297 : vector<1x9xi1>, vector<1x9xf32>
    %299 = arith.truncf %298 : vector<1x9xf32> to vector<1x9xbf16>
    %cst_175 = arith.constant dense<0.000000e+00> : vector<1x128xf32>
    %300 = tpu.matmul %299, %224, %cst_175 {dimension_numbers = #tpu.dot_dimension_numbers<[1], [0], [0], [1], [0, 0, 1, 1], [], []>} : vector<1x9xbf16>, vector<9x128xbf16>, vector<1x128xf32> -> vector<1x128xf32>
    %301 = arith.truncf %300 : vector<1x128xf32> to vector<1x128xbf16>
    %c640_176 = arith.constant 640 : index
    %c0_177 = arith.constant 0 : index
    %302 = vector.load %arg7[%c640_176, %c0_177] : memref<1152x128xbf16, #tpu.memory_space<vmem>>, vector<128x128xbf16>
    %cst_178 = arith.constant dense<0.000000e+00> : vector<1x128xf32>
    %303 = tpu.matmul %301, %302, %cst_178 {dimension_numbers = #tpu.dot_dimension_numbers<[1], [0], [0], [1], [0, 0, 1, 1], [], []>} : vector<1x128xbf16>, vector<128x128xbf16>, vector<1x128xf32> -> vector<1x128xf32>
    %304 = arith.addf %291, %303 : vector<1x128xf32>
    %c6_179 = arith.constant 6 : index
    %c0_180 = arith.constant 0 : index
    %c0_181 = arith.constant 0 : index
    %305 = vector.load %arg9[%c6_179, %c0_180, %c0_181] : memref<9x1x1xi32, #tpu.memory_space<vmem>>, vector<1x1x1xi32>
    %306 = vector.shape_cast %305 : vector<1x1x1xi32> to vector<1x1xi32>
    %307 = vector.broadcast %306 : vector<1x1xi32> to vector<1x9xi32>
    %308 = arith.cmpi eq, %225, %307 : vector<1x9xi32>
    %cst_182 = arith.constant 1.000000e+00 : f32
    %cst_183 = arith.constant 0.000000e+00 : f32
    %309 = vector.broadcast %cst_182 : f32 to vector<1x9xf32>
    %310 = vector.broadcast %cst_183 : f32 to vector<1x9xf32>
    %311 = arith.select %308, %309, %310 : vector<1x9xi1>, vector<1x9xf32>
    %312 = arith.truncf %311 : vector<1x9xf32> to vector<1x9xbf16>
    %cst_184 = arith.constant dense<0.000000e+00> : vector<1x128xf32>
    %313 = tpu.matmul %312, %224, %cst_184 {dimension_numbers = #tpu.dot_dimension_numbers<[1], [0], [0], [1], [0, 0, 1, 1], [], []>} : vector<1x9xbf16>, vector<9x128xbf16>, vector<1x128xf32> -> vector<1x128xf32>
    %314 = arith.truncf %313 : vector<1x128xf32> to vector<1x128xbf16>
    %c768_185 = arith.constant 768 : index
    %c0_186 = arith.constant 0 : index
    %315 = vector.load %arg7[%c768_185, %c0_186] : memref<1152x128xbf16, #tpu.memory_space<vmem>>, vector<128x128xbf16>
    %cst_187 = arith.constant dense<0.000000e+00> : vector<1x128xf32>
    %316 = tpu.matmul %314, %315, %cst_187 {dimension_numbers = #tpu.dot_dimension_numbers<[1], [0], [0], [1], [0, 0, 1, 1], [], []>} : vector<1x128xbf16>, vector<128x128xbf16>, vector<1x128xf32> -> vector<1x128xf32>
    %317 = arith.addf %304, %316 : vector<1x128xf32>
    %c7_188 = arith.constant 7 : index
    %c0_189 = arith.constant 0 : index
    %c0_190 = arith.constant 0 : index
    %318 = vector.load %arg9[%c7_188, %c0_189, %c0_190] : memref<9x1x1xi32, #tpu.memory_space<vmem>>, vector<1x1x1xi32>
    %319 = vector.shape_cast %318 : vector<1x1x1xi32> to vector<1x1xi32>
    %320 = vector.broadcast %319 : vector<1x1xi32> to vector<1x9xi32>
    %321 = arith.cmpi eq, %225, %320 : vector<1x9xi32>
    %cst_191 = arith.constant 1.000000e+00 : f32
    %cst_192 = arith.constant 0.000000e+00 : f32
    %322 = vector.broadcast %cst_191 : f32 to vector<1x9xf32>
    %323 = vector.broadcast %cst_192 : f32 to vector<1x9xf32>
    %324 = arith.select %321, %322, %323 : vector<1x9xi1>, vector<1x9xf32>
    %325 = arith.truncf %324 : vector<1x9xf32> to vector<1x9xbf16>
    %cst_193 = arith.constant dense<0.000000e+00> : vector<1x128xf32>
    %326 = tpu.matmul %325, %224, %cst_193 {dimension_numbers = #tpu.dot_dimension_numbers<[1], [0], [0], [1], [0, 0, 1, 1], [], []>} : vector<1x9xbf16>, vector<9x128xbf16>, vector<1x128xf32> -> vector<1x128xf32>
    %327 = arith.truncf %326 : vector<1x128xf32> to vector<1x128xbf16>
    %c896_194 = arith.constant 896 : index
    %c0_195 = arith.constant 0 : index
    %328 = vector.load %arg7[%c896_194, %c0_195] : memref<1152x128xbf16, #tpu.memory_space<vmem>>, vector<128x128xbf16>
    %cst_196 = arith.constant dense<0.000000e+00> : vector<1x128xf32>
    %329 = tpu.matmul %327, %328, %cst_196 {dimension_numbers = #tpu.dot_dimension_numbers<[1], [0], [0], [1], [0, 0, 1, 1], [], []>} : vector<1x128xbf16>, vector<128x128xbf16>, vector<1x128xf32> -> vector<1x128xf32>
    %330 = arith.addf %317, %329 : vector<1x128xf32>
    %c8_197 = arith.constant 8 : index
    %c0_198 = arith.constant 0 : index
    %c0_199 = arith.constant 0 : index
    %331 = vector.load %arg9[%c8_197, %c0_198, %c0_199] : memref<9x1x1xi32, #tpu.memory_space<vmem>>, vector<1x1x1xi32>
    %332 = vector.shape_cast %331 : vector<1x1x1xi32> to vector<1x1xi32>
    %333 = vector.broadcast %332 : vector<1x1xi32> to vector<1x9xi32>
    %334 = arith.cmpi eq, %225, %333 : vector<1x9xi32>
    %cst_200 = arith.constant 1.000000e+00 : f32
    %cst_201 = arith.constant 0.000000e+00 : f32
    %335 = vector.broadcast %cst_200 : f32 to vector<1x9xf32>
    %336 = vector.broadcast %cst_201 : f32 to vector<1x9xf32>
    %337 = arith.select %334, %335, %336 : vector<1x9xi1>, vector<1x9xf32>
    %338 = arith.truncf %337 : vector<1x9xf32> to vector<1x9xbf16>
    %cst_202 = arith.constant dense<0.000000e+00> : vector<1x128xf32>
    %339 = tpu.matmul %338, %224, %cst_202 {dimension_numbers = #tpu.dot_dimension_numbers<[1], [0], [0], [1], [0, 0, 1, 1], [], []>} : vector<1x9xbf16>, vector<9x128xbf16>, vector<1x128xf32> -> vector<1x128xf32>
    %340 = arith.truncf %339 : vector<1x128xf32> to vector<1x128xbf16>
    %c1024_203 = arith.constant 1024 : index
    %c0_204 = arith.constant 0 : index
    %341 = vector.load %arg7[%c1024_203, %c0_204] : memref<1152x128xbf16, #tpu.memory_space<vmem>>, vector<128x128xbf16>
    %cst_205 = arith.constant dense<0.000000e+00> : vector<1x128xf32>
    %342 = tpu.matmul %340, %341, %cst_205 {dimension_numbers = #tpu.dot_dimension_numbers<[1], [0], [0], [1], [0, 0, 1, 1], [], []>} : vector<1x128xbf16>, vector<128x128xbf16>, vector<1x128xf32> -> vector<1x128xf32>
    %343 = arith.addf %330, %342 : vector<1x128xf32>
    %c0_206 = arith.constant 0 : index
    %c0_207 = arith.constant 0 : index
    %344 = vector.load %arg8[%c0_206, %c0_207] : memref<1x128xf32, #tpu.memory_space<vmem>>, vector<1x128xf32>
    %345 = arith.addf %343, %344 : vector<1x128xf32>
    %cst_208 = arith.constant 0.000000e+00 : f32
    %346 = vector.broadcast %cst_208 : f32 to vector<1x128xf32>
    %347 = arith.maximumf %345, %346 : vector<1x128xf32>
    %348 = arith.truncf %347 : vector<1x128xf32> to vector<1x128xbf16>
    %349 = tpu.iota {dimensions = array<i32: 1>} : vector<1x1xi32>
    %cst_209 = arith.constant 0.000000e+00 : f32
    %350 = vector.broadcast %cst_209 : f32 to vector<1x512xf32>
    %c0_210 = arith.constant 0 : index
    %c0_211 = arith.constant 0 : index
    %c0_212 = arith.constant 0 : index
    %351 = vector.load %arg12[%c0_210, %c0_211, %c0_212] : memref<1x1x1xi32, #tpu.memory_space<vmem>>, vector<1x1x1xi32>
    %352 = vector.shape_cast %351 : vector<1x1x1xi32> to vector<1x1xi32>
    %353 = arith.cmpi eq, %349, %352 : vector<1x1xi32>
    %cst_213 = arith.constant 1.000000e+00 : f32
    %cst_214 = arith.constant 0.000000e+00 : f32
    %354 = vector.broadcast %cst_213 : f32 to vector<1x1xf32>
    %355 = vector.broadcast %cst_214 : f32 to vector<1x1xf32>
    %356 = arith.select %353, %354, %355 : vector<1x1xi1>, vector<1x1xf32>
    %357 = arith.truncf %356 : vector<1x1xf32> to vector<1x1xbf16>
    %cst_215 = arith.constant dense<0.000000e+00> : vector<1x128xf32>
    %358 = tpu.matmul %357, %348, %cst_215 {dimension_numbers = #tpu.dot_dimension_numbers<[1], [0], [0], [1], [0, 0, 1, 1], [], []>} : vector<1x1xbf16>, vector<1x128xbf16>, vector<1x128xf32> -> vector<1x128xf32>
    %359 = arith.truncf %358 : vector<1x128xf32> to vector<1x128xbf16>
    %c0_216 = arith.constant 0 : index
    %c0_217 = arith.constant 0 : index
    %360 = vector.load %arg10[%c0_216, %c0_217] : memref<128x512xbf16, #tpu.memory_space<vmem>>, vector<128x512xbf16>
    %cst_218 = arith.constant dense<0.000000e+00> : vector<1x512xf32>
    %361 = tpu.matmul %359, %360, %cst_218 {dimension_numbers = #tpu.dot_dimension_numbers<[1], [0], [0], [1], [0, 0, 1, 1], [], []>} : vector<1x128xbf16>, vector<128x512xbf16>, vector<1x512xf32> -> vector<1x512xf32>
    %362 = arith.addf %350, %361 : vector<1x512xf32>
    %c0_219 = arith.constant 0 : index
    %c0_220 = arith.constant 0 : index
    %363 = vector.load %arg11[%c0_219, %c0_220] : memref<1x512xf32, #tpu.memory_space<vmem>>, vector<1x512xf32>
    %364 = arith.addf %362, %363 : vector<1x512xf32>
    %cst_221 = arith.constant 0.000000e+00 : f32
    %365 = vector.broadcast %cst_221 : f32 to vector<1x512xf32>
    %366 = arith.maximumf %364, %365 : vector<1x512xf32>
    %367 = arith.truncf %366 : vector<1x512xf32> to vector<1x512xbf16>
    %c0_222 = arith.constant 0 : index
    %c0_223 = arith.constant 0 : index
    %368 = vector.load %arg13[%c0_222, %c0_223] : memref<512x128xbf16, #tpu.memory_space<vmem>>, vector<512x128xbf16>
    %cst_224 = arith.constant dense<0.000000e+00> : vector<1x128xf32>
    %369 = tpu.matmul %367, %368, %cst_224 {dimension_numbers = #tpu.dot_dimension_numbers<[1], [0], [0], [1], [0, 0, 1, 1], [], []>} : vector<1x512xbf16>, vector<512x128xbf16>, vector<1x128xf32> -> vector<1x128xf32>
    %c0_225 = arith.constant 0 : index
    %c0_226 = arith.constant 0 : index
    %370 = vector.load %arg14[%c0_225, %c0_226] : memref<1x128xf32, #tpu.memory_space<vmem>>, vector<1x128xf32>
    %371 = arith.addf %369, %370 : vector<1x128xf32>
    %c0_227 = arith.constant 0 : index
    %c0_228 = arith.constant 0 : index
    %c0_229 = arith.constant 0 : index
    %372 = vector.load %arg15[%c0_227, %c0_228, %c0_229] : memref<1x1x128xf32, #tpu.memory_space<vmem>>, vector<1x1x128xf32>
    %373 = vector.shape_cast %372 : vector<1x1x128xf32> to vector<1x128xf32>
    %374 = vector.shape_cast %371 : vector<1x128xf32> to vector<1x1x128xf32>
    tpu.vector_store %arg15[%c0_227, %c0_228, %c0_229], %374 {strides = array<i32>} : memref<1x1x128xf32, #tpu.memory_space<vmem>>, vector<1x1x128xf32>,
    return
  }
  func.func @transform_0(%arg0: i32) -> (i32, i32) {
    %c0_i32 = arith.constant 0 : i32
    %c0_i32_0 = arith.constant 0 : i32
    return %arg0, %c0_i32 : i32, i32
  }
  func.func @transform_1(%arg0: i32) -> (i32, i32) {
    %c0_i32 = arith.constant 0 : i32
    %c0_i32_0 = arith.constant 0 : i32
    %c0_i32_1 = arith.constant 0 : i32
    return %c0_i32, %c0_i32_0 : i32, i32
  }
  func.func @transform_2(%arg0: i32) -> (i32, i32) {
    %c0_i32 = arith.constant 0 : i32
    %c0_i32_0 = arith.constant 0 : i32
    %c0_i32_1 = arith.constant 0 : i32
    return %c0_i32, %c0_i32_0 : i32, i32
  }
  func.func @transform_3(%arg0: i32) -> (i32, i32) {
    %c0_i32 = arith.constant 0 : i32
    %c0_i32_0 = arith.constant 0 : i32
    %c0_i32_1 = arith.constant 0 : i32
    return %c0_i32, %c0_i32_0 : i32, i32
  }
  func.func @transform_4(%arg0: i32) -> (i32, i32) {
    %c0_i32 = arith.constant 0 : i32
    %c0_i32_0 = arith.constant 0 : i32
    %c0_i32_1 = arith.constant 0 : i32
    return %c0_i32, %c0_i32_0 : i32, i32
  }
  func.func @transform_5(%arg0: i32) -> (i32, i32, i32) {
    %c0_i32 = arith.constant 0 : i32
    %c0_i32_0 = arith.constant 0 : i32
    %c0_i32_1 = arith.constant 0 : i32
    %c0_i32_2 = arith.constant 0 : i32
    return %c0_i32, %c0_i32_0, %c0_i32_1 : i32, i32, i32
  }
  func.func @transform_6(%arg0: i32) -> (i32, i32) {
    %c0_i32 = arith.constant 0 : i32
    %c0_i32_0 = arith.constant 0 : i32
    %c0_i32_1 = arith.constant 0 : i32
    return %c0_i32, %c0_i32_0 : i32, i32
  }
  func.func @transform_7(%arg0: i32) -> (i32, i32) {
    %c0_i32 = arith.constant 0 : i32
    %c0_i32_0 = arith.constant 0 : i32
    %c0_i32_1 = arith.constant 0 : i32
    return %c0_i32, %c0_i32_0 : i32, i32
  }
  func.func @transform_8(%arg0: i32) -> (i32, i32, i32) {
    %c0_i32 = arith.constant 0 : i32
    %c0_i32_0 = arith.constant 0 : i32
    %c0_i32_1 = arith.constant 0 : i32
    %c0_i32_2 = arith.constant 0 : i32
    return %c0_i32, %c0_i32_0, %c0_i32_1 : i32, i32, i32
  }
  func.func @transform_9(%arg0: i32) -> (i32, i32) {
    %c0_i32 = arith.constant 0 : i32
    %c0_i32_0 = arith.constant 0 : i32
    %c0_i32_1 = arith.constant 0 : i32
    return %c0_i32, %c0_i32_0 : i32, i32
  }
  func.func @transform_10(%arg0: i32) -> (i32, i32) {
    %c0_i32 = arith.constant 0 : i32
    %c0_i32_0 = arith.constant 0 : i32
    %c0_i32_1 = arith.constant 0 : i32
    return %c0_i32, %c0_i32_0 : i32, i32
  }
  func.func @transform_11(%arg0: i32) -> (i32, i32, i32) {
    %c0_i32 = arith.constant 0 : i32
    %c0_i32_0 = arith.constant 0 : i32
    %c0_i32_1 = arith.constant 0 : i32
    %c0_i32_2 = arith.constant 0 : i32
    return %c0_i32, %c0_i32_0, %c0_i32_1 : i32, i32, i32
  }
  func.func @transform_12(%arg0: i32) -> (i32, i32) {
    %c0_i32 = arith.constant 0 : i32
    %c0_i32_0 = arith.constant 0 : i32
    %c0_i32_1 = arith.constant 0 : i32
    return %c0_i32, %c0_i32_0 : i32, i32
  }
  func.func @transform_13(%arg0: i32) -> (i32, i32) {
    %c0_i32 = arith.constant 0 : i32
    %c0_i32_0 = arith.constant 0 : i32
    %c0_i32_1 = arith.constant 0 : i32
    return %c0_i32, %c0_i32_0 : i32, i32
  }
  func.func @transform_14(%arg0: i32) -> (i32, i32, i32) {
    %c0_i32 = arith.constant 0 : i32
    %c0_i32_0 = arith.constant 0 : i32
    %c0_i32_1 = arith.constant 0 : i32
    return %arg0, %c0_i32, %c0_i32_0 : i32, i32, i32
  }
}

</mosaic_0001>

<llo_original>
// kernel: tpu_custom_call.1
$region0: #{tpu_custom_call.1}
  #allocation0 [shape = 'u32[]', space=smem, size = 0x4, offset = 0x4, fixed_abs, tag = 'smem constant byte address 0x4 - core index']
  #allocation1 [shape = 'u32[144,128]{1,0:T(1,128)}', space=vmem, size = 0x12000, scoped, tag = 'internal scratch']
  #allocation2 [shape = 's32[1,1,1]{2,1,0:T(1,128)S(1)}', space=vmem, size = 0x200, scoped, tag = 'scoped memory for tpu_custom_call.1']
  %s0 = inlined_call_operand.hbm [shape: bf16[128,256], index: 0, kind: input, shape index: {}]
  %s1 = inlined_call_operand.hbm [shape: bf16[256,128], index: 1, kind: input, shape index: {}]
  %s2 = inlined_call_operand.vmem [shape: f32[1,128], index: 2, kind: input, shape index: {}]
  %s3 = inlined_call_operand.hbm [shape: bf16[2048,128], index: 3, kind: input, shape index: {}]
  %s4 = inlined_call_operand.vmem [shape: f32[1,128], index: 4, kind: input, shape index: {}]
  %s5 = inlined_call_operand.vmem [shape: s32[16,9,1], index: 5, kind: input, shape index: {}]
  %s6 = inlined_call_operand.hbm [shape: bf16[1152,128], index: 6, kind: input, shape index: {}]
  %s7 = inlined_call_operand.vmem [shape: f32[1,128], index: 7, kind: input, shape index: {}]
  %s8 = inlined_call_operand.vmem [shape: s32[9,1,1], index: 8, kind: input, shape index: {}]
  %s9 = inlined_call_operand.vmem [shape: bf16[128,512], index: 9, kind: input, shape index: {}]
  %s10 = inlined_call_operand.vmem [shape: f32[1,512], index: 10, kind: input, shape index: {}]
  %s11 = inlined_call_operand.<no memory space> [shape: s32[1,1,1], index: 11, kind: input, shape index: {}]
  %s12 = inlined_call_operand.hbm [shape: bf16[512,128], index: 12, kind: input, shape index: {}]
  %s13 = inlined_call_operand.vmem [shape: f32[1,128], index: 13, kind: input, shape index: {}]
  %s14 = inlined_call_operand.hbm [shape: f32[2,1,128], index: 14, kind: output, shape index: {}]
  %s15 = sld [smem:[#allocation0]]
  $region109: #{tpu_custom_call.1} parent=0
    _
  %s17 = ssub.s32 1, %s15
  %s18 = scalar_select 0, %s17, %s15
  %v19 = vstv %s11
  %20 = vst [vmem:[#allocation2] sm:$0x1] %v19
  $region1: #{tpu_custom_call.1} parent=0
    #allocation3 [shape = 'u8[65536]{0}', space=vmem, size = 0x10000, scoped, tag = 'input window, operand 0']
    #allocation4 [shape = 's32[2]{0}', space=sflag, size = 0x8, scoped, tag = 'scoped memory for tpu_custom_call.1']
    #allocation5 [shape = 's32[2]{0}', space=sflag, size = 0x8, scoped, tag = 'scoped memory for tpu_custom_call.1']
    #allocation6 [shape = 'u8[65536]{0}', space=vmem, size = 0x10000, scoped, tag = 'input window, operand 1, single buffered']
    #allocation7 [shape = 's32[1]{0}', space=sflag, size = 0x4, scoped, tag = 'scoped memory for tpu_custom_call.1']
    #allocation8 [shape = 'u8[524288]{0}', space=vmem, size = 0x80000, scoped, tag = 'input window, operand 3, single buffered']
    #allocation9 [shape = 'u8[294912]{0}', space=vmem, size = 0x48000, scoped, tag = 'input window, operand 6, single buffered']
    #allocation10 [shape = 's32[1]{0}', space=sflag, size = 0x4, scoped, tag = 'scoped memory for tpu_custom_call.1']
    #allocation11 [shape = 'u8[131072]{0}', space=vmem, size = 0x20000, scoped, tag = 'input window, operand 12, single buffered']
    #allocation12 [shape = 'u8[1024]{0}', space=vmem, size = 0x400, scoped, tag = 'output window, operand 0']
    %21 = vsyncpa [#allocation4], 0
    %s22 = scalar_lea.sflag [#allocation4], 1
    %23 = vsyncpa %s22, 0
    %24 = vsyncpa [#allocation7], 0
    %25 = vsyncpa [#allocation10], 0
    %26 = vsyncpa [#allocation5], 0
    %s27 = scalar_lea.sflag [#allocation5], 1
    %28 = vsyncpa %s27, 0
    loop: start=0, step=1, limit=4
    $region2: #{tpu_custom_call.1} parent=1 // loop_pre_header
      _
    $region3: #{tpu_custom_call.1} parent=1 // loop_header
      %s30 = sphi 0, %s34
      %p31 = scmp.ge.s32.totalorder %s30, 4
      %s40 = sphi 0, %s42
      %s43 = sphi 0, %s40
      %s44 = sphi 0, %s43
      %s60 = sphi 0, %s44
      %s64 = sphi 0, %s64
      %s66 = sphi 0, %s64
      %s67 = sphi 0, %s66
      %s81 = sphi 0, %s67
      %s85 = sphi 0, %s85
      %s87 = sphi 0, %s85
      %s88 = sphi 0, %s87
      %s102 = sphi 0, %s88
      %s106 = sphi 0, %s106
      %s108 = sphi 0, %s106
      %s109 = sphi 0, %s108
      %s123 = sphi 0, %s109
      %s127 = sphi 0, %s127
      %s129 = sphi 0, %s127
      %s130 = sphi 0, %s129
      %s144 = sphi 0, %s130
      %s148 = sphi 0, %s148
      %s150 = sphi 0, %s148
      %s151 = sphi 0, %s150
      %s165 = sphi 0, %s151
      %s169 = sphi 0, %s169
      %s171 = sphi 0, %s169
      %s172 = sphi 0, %s171
      %s186 = sphi 0, %s172
      %s190 = sphi 0, %s190
      %s192 = sphi 0, %s190
      %s193 = sphi 0, %s192
      %s207 = sphi 0, %s193
      %s211 = sphi 0, %s211
      %s213 = sphi 0, %s211
      %s214 = sphi 0, %s213
      %s228 = sphi 0, %s214
      %s232 = sphi 0, %s232
      %s234 = sphi 0, %s232
      %s235 = sphi 0, %s234
      %s249 = sphi 0, %s235
      %s253 = sphi 0, %s253
      %s255 = sphi 0, %s253
      %s256 = sphi 0, %s255
      %s270 = sphi 0, %s256
      %s274 = sphi 0, %s274
      %s276 = sphi 0, %s274
      %s277 = sphi 0, %s276
      %s291 = sphi 0, %s277
      %s295 = sphi 0, %s295
      %s297 = sphi 0, %s295
      %s298 = sphi 0, %s297
      %s312 = sphi 0, %s298
      %s316 = sphi 0, %s316
      %s318 = sphi 0, %s316
      %s319 = sphi 0, %s318
      %s333 = sphi 0, %s319
      %s339 = sphi 0, %s341
      %s342 = sphi 0, %s339
      %s343 = sphi 0, %s342
      %s359 = sphi 0, %s343
    $region4: #{tpu_custom_call.1} parent=1 // loop_header_branch
      %33 = sbr.rel (%p31) target = $region8
    $region5: #{tpu_custom_call.1} parent=1 // loop_body
      %s35 = ssub.s32 %s30, 1
      %s36 = ssub.s32 %s30, 2
      %s37 = sadd.s32 %s30, 1
      %s38 = ssub.s32 %s30, %s37
      %p39 = scmp.eq.s32.totalorder %s38, 0
      %s41 = sadd.s32 %s40, 1
      %s42 = scalar_select %p39, %s40, %s41
      %p45 = pneg %p39
      %p46 = scmp.eq.s32.totalorder %s30, 1
      %p47 = por %p45, %p46
      %p48 = scmp.ne.s32.totalorder %s40, %s43
      %p49 = scmp.eq.s32.totalorder %s30, 0
      %p50 = por %p48, %p49
      %p51 = scmp.ne.s32.totalorder %s40, %s43
      %p52 = scmp.eq.s32.totalorder %s35, 1
      %p53 = por %p51, %p52
      %p54 = scmp.ne.s32.totalorder %s43, %s44
      %p55 = scmp.eq.s32.totalorder %s35, 0
      %p56 = por %p54, %p55
      %p57 = scmp.ne.s32.totalorder %s43, %s44
      %p58 = scmp.eq.s32.totalorder %s36, 1
      %p59 = por %p57, %p58
      %p61 = scmp.ne.s32.totalorder %s44, %s60
      %p62 = scmp.eq.s32.totalorder %s36, 0
      %p63 = por %p61, %p62
      %s65 = sadd.s32 %s64, 1
      %p68 = scmp.eq.s32.totalorder %s30, 1
      %p69 = scmp.ne.s32.totalorder %s64, %s66
      %p70 = scmp.eq.s32.totalorder %s30, 0
      %p71 = por %p69, %p70
      %p72 = scmp.ne.s32.totalorder %s64, %s66
      %p73 = scmp.eq.s32.totalorder %s35, 1
      %p74 = por %p72, %p73
      %p75 = scmp.ne.s32.totalorder %s66, %s67
      %p76 = scmp.eq.s32.totalorder %s35, 0
      %p77 = por %p75, %p76
      %p78 = scmp.ne.s32.totalorder %s66, %s67
      %p79 = scmp.eq.s32.totalorder %s36, 1
      %p80 = por %p78, %p79
      %p82 = scmp.ne.s32.totalorder %s67, %s81
      %p83 = scmp.eq.s32.totalorder %s36, 0
      %p84 = por %p82, %p83
      %s86 = sadd.s32 %s85, 1
      %p89 = scmp.eq.s32.totalorder %s30, 1
      %p90 = scmp.ne.s32.totalorder %s85, %s87
      %p91 = scmp.eq.s32.totalorder %s30, 0
      %p92 = por %p90, %p91
      %p93 = scmp.ne.s32.totalorder %s85, %s87
      %p94 = scmp.eq.s32.totalorder %s35, 1
      %p95 = por %p93, %p94
      %p96 = scmp.ne.s32.totalorder %s87, %s88
      %p97 = scmp.eq.s32.totalorder %s35, 0
      %p98 = por %p96, %p97
      %p99 = scmp.ne.s32.totalorder %s87, %s88
      %p100 = scmp.eq.s32.totalorder %s36, 1
      %p101 = por %p99, %p100
      %p103 = scmp.ne.s32.totalorder %s88, %s102
      %p104 = scmp.eq.s32.totalorder %s36, 0
      %p105 = por %p103, %p104
      %s107 = sadd.s32 %s106, 1
      %p110 = scmp.eq.s32.totalorder %s30, 1
      %p111 = scmp.ne.s32.totalorder %s106, %s108
      %p112 = scmp.eq.s32.totalorder %s30, 0
      %p113 = por %p111, %p112
      %p114 = scmp.ne.s32.totalorder %s106, %s108
      %p115 = scmp.eq.s32.totalorder %s35, 1
      %p116 = por %p114, %p115
      %p117 = scmp.ne.s32.totalorder %s108, %s109
      %p118 = scmp.eq.s32.totalorder %s35, 0
      %p119 = por %p117, %p118
      %p120 = scmp.ne.s32.totalorder %s108, %s109
      %p121 = scmp.eq.s32.totalorder %s36, 1
      %p122 = por %p120, %p121
      %p124 = scmp.ne.s32.totalorder %s109, %s123
      %p125 = scmp.eq.s32.totalorder %s36, 0
      %p126 = por %p124, %p125
      %s128 = sadd.s32 %s127, 1
      %p131 = scmp.eq.s32.totalorder %s30, 1
      %p132 = scmp.ne.s32.totalorder %s127, %s129
      %p133 = scmp.eq.s32.totalorder %s30, 0
      %p134 = por %p132, %p133
      %p135 = scmp.ne.s32.totalorder %s127, %s129
      %p136 = scmp.eq.s32.totalorder %s35, 1
      %p137 = por %p135, %p136
      %p138 = scmp.ne.s32.totalorder %s129, %s130
      %p139 = scmp.eq.s32.totalorder %s35, 0
      %p140 = por %p138, %p139
      %p141 = scmp.ne.s32.totalorder %s129, %s130
      %p142 = scmp.eq.s32.totalorder %s36, 1
      %p143 = por %p141, %p142
      %p145 = scmp.ne.s32.totalorder %s130, %s144
      %p146 = scmp.eq.s32.totalorder %s36, 0
      %p147 = por %p145, %p146
      %s149 = sadd.s32 %s148, 1
      %p152 = scmp.eq.s32.totalorder %s30, 1
      %p153 = scmp.ne.s32.totalorder %s148, %s150
      %p154 = scmp.eq.s32.totalorder %s30, 0
      %p155 = por %p153, %p154
      %p156 = scmp.ne.s32.totalorder %s148, %s150
      %p157 = scmp.eq.s32.totalorder %s35, 1
      %p158 = por %p156, %p157
      %p159 = scmp.ne.s32.totalorder %s150, %s151
      %p160 = scmp.eq.s32.totalorder %s35, 0
      %p161 = por %p159, %p160
      %p162 = scmp.ne.s32.totalorder %s150, %s151
      %p163 = scmp.eq.s32.totalorder %s36, 1
      %p164 = por %p162, %p163
      %p166 = scmp.ne.s32.totalorder %s151, %s165
      %p167 = scmp.eq.s32.totalorder %s36, 0
      %p168 = por %p166, %p167
      %s170 = sadd.s32 %s169, 1
      %p173 = scmp.eq.s32.totalorder %s30, 1
      %p174 = scmp.ne.s32.totalorder %s169, %s171
      %p175 = scmp.eq.s32.totalorder %s30, 0
      %p176 = por %p174, %p175
      %p177 = scmp.ne.s32.totalorder %s169, %s171
      %p178 = scmp.eq.s32.totalorder %s35, 1
      %p179 = por %p177, %p178
      %p180 = scmp.ne.s32.totalorder %s171, %s172
      %p181 = scmp.eq.s32.totalorder %s35, 0
      %p182 = por %p180, %p181
      %p183 = scmp.ne.s32.totalorder %s171, %s172
      %p184 = scmp.eq.s32.totalorder %s36, 1
      %p185 = por %p183, %p184
      %p187 = scmp.ne.s32.totalorder %s172, %s186
      %p188 = scmp.eq.s32.totalorder %s36, 0
      %p189 = por %p187, %p188
      %s191 = sadd.s32 %s190, 1
      %p194 = scmp.eq.s32.totalorder %s30, 1
      %p195 = scmp.ne.s32.totalorder %s190, %s192
      %p196 = scmp.eq.s32.totalorder %s30, 0
      %p197 = por %p195, %p196
      %p198 = scmp.ne.s32.totalorder %s190, %s192
      %p199 = scmp.eq.s32.totalorder %s35, 1
      %p200 = por %p198, %p199
      %p201 = scmp.ne.s32.totalorder %s192, %s193
      %p202 = scmp.eq.s32.totalorder %s35, 0
      %p203 = por %p201, %p202
      %p204 = scmp.ne.s32.totalorder %s192, %s193
      %p205 = scmp.eq.s32.totalorder %s36, 1
      %p206 = por %p204, %p205
      %p208 = scmp.ne.s32.totalorder %s193, %s207
      %p209 = scmp.eq.s32.totalorder %s36, 0
      %p210 = por %p208, %p209
      %s212 = sadd.s32 %s211, 1
      %p215 = scmp.eq.s32.totalorder %s30, 1
      %p216 = scmp.ne.s32.totalorder %s211, %s213
      %p217 = scmp.eq.s32.totalorder %s30, 0
      %p218 = por %p216, %p217
      %p219 = scmp.ne.s32.totalorder %s211, %s213
      %p220 = scmp.eq.s32.totalorder %s35, 1
      %p221 = por %p219, %p220
      %p222 = scmp.ne.s32.totalorder %s213, %s214
      %p223 = scmp.eq.s32.totalorder %s35, 0
      %p224 = por %p222, %p223
      %p225 = scmp.ne.s32.totalorder %s213, %s214
      %p226 = scmp.eq.s32.totalorder %s36, 1
      %p227 = por %p225, %p226
      %p229 = scmp.ne.s32.totalorder %s214, %s228
      %p230 = scmp.eq.s32.totalorder %s36, 0
      %p231 = por %p229, %p230
      %s233 = sadd.s32 %s232, 1
      %p236 = scmp.eq.s32.totalorder %s30, 1
      %p237 = scmp.ne.s32.totalorder %s232, %s234
      %p238 = scmp.eq.s32.totalorder %s30, 0
      %p239 = por %p237, %p238
      %p240 = scmp.ne.s32.totalorder %s232, %s234
      %p241 = scmp.eq.s32.totalorder %s35, 1
      %p242 = por %p240, %p241
      %p243 = scmp.ne.s32.totalorder %s234, %s235
      %p244 = scmp.eq.s32.totalorder %s35, 0
      %p245 = por %p243, %p244
      %p246 = scmp.ne.s32.totalorder %s234, %s235
      %p247 = scmp.eq.s32.totalorder %s36, 1
      %p248 = por %p246, %p247
      %p250 = scmp.ne.s32.totalorder %s235, %s249
      %p251 = scmp.eq.s32.totalorder %s36, 0
      %p252 = por %p250, %p251
      %s254 = sadd.s32 %s253, 1
      %p257 = scmp.eq.s32.totalorder %s30, 1
      %p258 = scmp.ne.s32.totalorder %s253, %s255
      %p259 = scmp.eq.s32.totalorder %s30, 0
      %p260 = por %p258, %p259
      %p261 = scmp.ne.s32.totalorder %s253, %s255
      %p262 = scmp.eq.s32.totalorder %s35, 1
      %p263 = por %p261, %p262
      %p264 = scmp.ne.s32.totalorder %s255, %s256
      %p265 = scmp.eq.s32.totalorder %s35, 0
      %p266 = por %p264, %p265
      %p267 = scmp.ne.s32.totalorder %s255, %s256
      %p268 = scmp.eq.s32.totalorder %s36, 1
      %p269 = por %p267, %p268
      %p271 = scmp.ne.s32.totalorder %s256, %s270
      %p272 = scmp.eq.s32.totalorder %s36, 0
      %p273 = por %p271, %p272
      %s275 = sadd.s32 %s274, 1
      %p278 = scmp.eq.s32.totalorder %s30, 1
      %p279 = scmp.ne.s32.totalorder %s274, %s276
      %p280 = scmp.eq.s32.totalorder %s30, 0
      %p281 = por %p279, %p280
      %p282 = scmp.ne.s32.totalorder %s274, %s276
      %p283 = scmp.eq.s32.totalorder %s35, 1
      %p284 = por %p282, %p283
      %p285 = scmp.ne.s32.totalorder %s276, %s277
      %p286 = scmp.eq.s32.totalorder %s35, 0
      %p287 = por %p285, %p286
      %p288 = scmp.ne.s32.totalorder %s276, %s277
      %p289 = scmp.eq.s32.totalorder %s36, 1
      %p290 = por %p288, %p289
      %p292 = scmp.ne.s32.totalorder %s277, %s291
      %p293 = scmp.eq.s32.totalorder %s36, 0
      %p294 = por %p292, %p293
      %s296 = sadd.s32 %s295, 1
      %p299 = scmp.eq.s32.totalorder %s30, 1
      %p300 = scmp.ne.s32.totalorder %s295, %s297
      %p301 = scmp.eq.s32.totalorder %s30, 0
      %p302 = por %p300, %p301
      %p303 = scmp.ne.s32.totalorder %s295, %s297
      %p304 = scmp.eq.s32.totalorder %s35, 1
      %p305 = por %p303, %p304
      %p306 = scmp.ne.s32.totalorder %s297, %s298
      %p307 = scmp.eq.s32.totalorder %s35, 0
      %p308 = por %p306, %p307
      %p309 = scmp.ne.s32.totalorder %s297, %s298
      %p310 = scmp.eq.s32.totalorder %s36, 1
      %p311 = por %p309, %p310
      %p313 = scmp.ne.s32.totalorder %s298, %s312
      %p314 = scmp.eq.s32.totalorder %s36, 0
      %p315 = por %p313, %p314
      %s317 = sadd.s32 %s316, 1
      %p320 = scmp.eq.s32.totalorder %s30, 1
      %p321 = scmp.ne.s32.totalorder %s316, %s318
      %p322 = scmp.eq.s32.totalorder %s30, 0
      %p323 = por %p321, %p322
      %p324 = scmp.ne.s32.totalorder %s316, %s318
      %p325 = scmp.eq.s32.totalorder %s35, 1
      %p326 = por %p324, %p325
      %p327 = scmp.ne.s32.totalorder %s318, %s319
      %p328 = scmp.eq.s32.totalorder %s35, 0
      %p329 = por %p327, %p328
      %p330 = scmp.ne.s32.totalorder %s318, %s319
      %p331 = scmp.eq.s32.totalorder %s36, 1
      %p332 = por %p330, %p331
      %p334 = scmp.ne.s32.totalorder %s319, %s333
      %p335 = scmp.eq.s32.totalorder %s36, 0
      %p336 = por %p334, %p335
      %s337 = ssub.s32 %s30, %s37
      %p338 = scmp.eq.s32.totalorder %s337, 0
      %s340 = sadd.s32 %s339, 1
      %s341 = scalar_select %p338, %s339, %s340
      %p344 = pneg %p338
      %p345 = scmp.eq.s32.totalorder %s30, 1
      %p346 = por %p344, %p345
      %p347 = scmp.ne.s32.totalorder %s339, %s342
      %p348 = scmp.eq.s32.totalorder %s30, 0
      %p349 = por %p347, %p348
      %p350 = scmp.ne.s32.totalorder %s339, %s342
      %p351 = scmp.eq.s32.totalorder %s35, 1
      %p352 = por %p350, %p351
      %p353 = scmp.ne.s32.totalorder %s342, %s343
      %p354 = scmp.eq.s32.totalorder %s35, 0
      %p355 = por %p353, %p354
      %p356 = scmp.ne.s32.totalorder %s342, %s343
      %p357 = scmp.eq.s32.totalorder %s36, 1
      %p358 = por %p356, %p357
      %p360 = scmp.ne.s32.totalorder %s343, %s359
      %p361 = scmp.eq.s32.totalorder %s36, 0
      %p362 = por %p360, %p361
      %p363 = scmp.le.s32.totalorder 1, %s30
      %p364 = scmp.lt.s32.totalorder %s30, 3
      %p365 = pnand %p363, %p364
      %p366 = pneg %p365
      // Predicated region
      $region9: #{tpu_custom_call.1} parent=5 // pred_check
        _
      $region10: #{tpu_custom_call.1} parent=5 // pred_check_branch
        %368 = sbr.rel (%p365) target = $region12
      $region11: #{tpu_custom_call.1} parent=5 // pred_region
        %s369 = ssub.s32 %s30, 1
        // Predicated region
        $region13: #{tpu_custom_call.1} parent=11 // pred_check
          %p370 = pneg %p77
        $region14: #{tpu_custom_call.1} parent=11 // pred_check_branch
          %372 = sbr.rel (%p370) target = $region16
        $region15: #{tpu_custom_call.1} parent=11 // pred_region
          %s374 = ssub.s32 2048, 2048
          %375 = vsyncadd [#allocation7], %s374
          %s376 = sshll.u32 [#allocation6], 4
          %s377 = int_to_ptr.vmem [resolvable:$true] %s376
          %382 = dma.hbm_to_vmem [thread:$0]  %s1, 2048, %s377, [#allocation7], 64, 64, 4
        $region16: #{tpu_custom_call.1} parent=11 // pred_fallthru
          _
        // Predicated region
        $region17: #{tpu_custom_call.1} parent=11 // pred_check
          %p383 = pneg %p98
        $region18: #{tpu_custom_call.1} parent=11 // pred_check_branch
          %385 = sbr.rel (%p383) target = $region20
        $region19: #{tpu_custom_call.1} parent=11 // pred_region
          _
        $region20: #{tpu_custom_call.1} parent=11 // pred_fallthru
          _
        // Predicated region
        $region21: #{tpu_custom_call.1} parent=11 // pred_check
          %p386 = pneg %p119
        $region22: #{tpu_custom_call.1} parent=11 // pred_check_branch
          %388 = sbr.rel (%p386) target = $region24
        $region23: #{tpu_custom_call.1} parent=11 // pred_region
          %s390 = ssub.s32 16384, 16384
          %391 = vsyncadd [#allocation7], %s390
          %s392 = sshll.u32 [#allocation8], 4
          %s393 = int_to_ptr.vmem [resolvable:$true] %s392
          %398 = dma.hbm_to_vmem [thread:$0]  %s3, 16384, %s393, [#allocation7], 64, 64, 4
        $region24: #{tpu_custom_call.1} parent=11 // pred_fallthru
          _
        // Predicated region
        $region25: #{tpu_custom_call.1} parent=11 // pred_check
          %p399 = pneg %p140
        $region26: #{tpu_custom_call.1} parent=11 // pred_check_branch
          %401 = sbr.rel (%p399) target = $region28
        $region27: #{tpu_custom_call.1} parent=11 // pred_region
          _
        $region28: #{tpu_custom_call.1} parent=11 // pred_fallthru
          _
        // Predicated region
        $region29: #{tpu_custom_call.1} parent=11 // pred_check
          %p402 = pneg %p161
        $region30: #{tpu_custom_call.1} parent=11 // pred_check_branch
          %404 = sbr.rel (%p402) target = $region32
        $region31: #{tpu_custom_call.1} parent=11 // pred_region
          _
        $region32: #{tpu_custom_call.1} parent=11 // pred_fallthru
          _
        // Predicated region
        $region33: #{tpu_custom_call.1} parent=11 // pred_check
          %p405 = pneg %p182
        $region34: #{tpu_custom_call.1} parent=11 // pred_check_branch
          %407 = sbr.rel (%p405) target = $region36
        $region35: #{tpu_custom_call.1} parent=11 // pred_region
          %s409 = ssub.s32 9216, 9216
          %410 = vsyncadd [#allocation10], %s409
          %s411 = sshll.u32 [#allocation9], 4
          %s412 = int_to_ptr.vmem [resolvable:$true] %s411
          %417 = dma.hbm_to_vmem [thread:$0]  %s6, 9216, %s412, [#allocation10], 64, 64, 4
        $region36: #{tpu_custom_call.1} parent=11 // pred_fallthru
          _
        // Predicated region
        $region37: #{tpu_custom_call.1} parent=11 // pred_check
          %p418 = pneg %p203
        $region38: #{tpu_custom_call.1} parent=11 // pred_check_branch
          %420 = sbr.rel (%p418) target = $region40
        $region39: #{tpu_custom_call.1} parent=11 // pred_region
          _
        $region40: #{tpu_custom_call.1} parent=11 // pred_fallthru
          _
        // Predicated region
        $region41: #{tpu_custom_call.1} parent=11 // pred_check
          %p421 = pneg %p224
        $region42: #{tpu_custom_call.1} parent=11 // pred_check_branch
          %423 = sbr.rel (%p421) target = $region44
        $region43: #{tpu_custom_call.1} parent=11 // pred_region
          _
        $region44: #{tpu_custom_call.1} parent=11 // pred_fallthru
          _
        // Predicated region
        $region45: #{tpu_custom_call.1} parent=11 // pred_check
          %p424 = pneg %p245
        $region46: #{tpu_custom_call.1} parent=11 // pred_check_branch
          %426 = sbr.rel (%p424) target = $region48
        $region47: #{tpu_custom_call.1} parent=11 // pred_region
          _
        $region48: #{tpu_custom_call.1} parent=11 // pred_fallthru
          _
        // Predicated region
        $region49: #{tpu_custom_call.1} parent=11 // pred_check
          %p427 = pneg %p266
        $region50: #{tpu_custom_call.1} parent=11 // pred_check_branch
          %429 = sbr.rel (%p427) target = $region52
        $region51: #{tpu_custom_call.1} parent=11 // pred_region
          _
        $region52: #{tpu_custom_call.1} parent=11 // pred_fallthru
          _
        // Predicated region
        $region53: #{tpu_custom_call.1} parent=11 // pred_check
          %p430 = pneg %p287
        $region54: #{tpu_custom_call.1} parent=11 // pred_check_branch
          %432 = sbr.rel (%p430) target = $region56
        $region55: #{tpu_custom_call.1} parent=11 // pred_region
          _
        $region56: #{tpu_custom_call.1} parent=11 // pred_fallthru
          _
        // Predicated region
        $region57: #{tpu_custom_call.1} parent=11 // pred_check
          %p433 = pneg %p308
        $region58: #{tpu_custom_call.1} parent=11 // pred_check_branch
          %435 = sbr.rel (%p433) target = $region60
        $region59: #{tpu_custom_call.1} parent=11 // pred_region
          %s437 = ssub.s32 4096, 4096
          %438 = vsyncadd [#allocation10], %s437
          %s439 = sshll.u32 [#allocation11], 4
          %s440 = int_to_ptr.vmem [resolvable:$true] %s439
          %445 = dma.hbm_to_vmem [thread:$0]  %s12, 4096, %s440, [#allocation10], 64, 64, 4
        $region60: #{tpu_custom_call.1} parent=11 // pred_fallthru
          _
        // Predicated region
        $region61: #{tpu_custom_call.1} parent=11 // pred_check
          %p446 = pneg %p329
        $region62: #{tpu_custom_call.1} parent=11 // pred_check_branch
          %448 = sbr.rel (%p446) target = $region64
        $region63: #{tpu_custom_call.1} parent=11 // pred_region
          _
        $region64: #{tpu_custom_call.1} parent=11 // pred_fallthru
          _
      $region12: #{tpu_custom_call.1} parent=5 // pred_fallthru
        _
      %p449 = scmp.lt.s32.totalorder %s30, 2
      // Predicated region
      $region65: #{tpu_custom_call.1} parent=5 // pred_check
        %p450 = pneg %p449
      $region66: #{tpu_custom_call.1} parent=5 // pred_check_branch
        %452 = sbr.rel (%p450) target = $region68
      $region67: #{tpu_custom_call.1} parent=5 // pred_region
        // Predicated region
        $region69: #{tpu_custom_call.1} parent=67 // pred_check
          %p453 = pneg %p50
        $region70: #{tpu_custom_call.1} parent=67 // pred_check_branch
          %455 = sbr.rel (%p453) target = $region72
        $region71: #{tpu_custom_call.1} parent=67 // pred_region
          %s456 = sand.u32 %s40, 1
          %s457 = scalar_lea.sflag [#allocation4], %s456
          %s458 = sand.u32 %s40, 1
          %s459 = smul.addr %s458, 64
          %s460 = scalar_lea.vmem [#allocation3], %s459
          %s461 = smul.u32 8, %s30
          %s463 = ssub.s32 1024, 1024
          %464 = vsyncadd %s457, %s463
          %s465 = smul.addr %s461, 2
          %s466 = smul.addr %s465, 64
          %s467 = scalar_lea.hbm %s0, %s466
          %s468 = sshll.u32 %s460, 4
          %s469 = int_to_ptr.vmem [resolvable:$true] %s468
          %474 = dma.hbm_to_vmem [thread:$0]  %s467, 1024, %s469, %s457, 128, 128, 8
        $region72: #{tpu_custom_call.1} parent=67 // pred_fallthru
          _
      $region68: #{tpu_custom_call.1} parent=5 // pred_fallthru
        _
      %p475 = scmp.le.s32.totalorder 1, %s30
      %p476 = scmp.lt.s32.totalorder %s30, 3
      %p477 = pnand %p475, %p476
      %p478 = pneg %p477
      // Predicated region
      $region73: #{tpu_custom_call.1} parent=5 // pred_check
        _
      $region74: #{tpu_custom_call.1} parent=5 // pred_check_branch
        %480 = sbr.rel (%p477) target = $region76
      $region75: #{tpu_custom_call.1} parent=5 // pred_region
        %s481 = ssub.s32 %s30, 1
        %s482 = sand.u32 %s43, 1
        %s483 = scalar_lea.sflag [#allocation4], %s482
        %s484 = sand.u32 %s43, 1
        %s485 = smul.addr %s484, 64
        %s486 = scalar_lea.vmem [#allocation3], %s485
        // Predicated region
        $region77: #{tpu_custom_call.1} parent=75 // pred_check
          %p487 = pneg %p56
        $region78: #{tpu_custom_call.1} parent=75 // pred_check_branch
          %489 = sbr.rel (%p487) target = $region80
        $region79: #{tpu_custom_call.1} parent=75 // pred_region
          %490 = dma.done %s483, 1024
        $region80: #{tpu_custom_call.1} parent=75 // pred_fallthru
          _
        // Predicated region
        $region81: #{tpu_custom_call.1} parent=75 // pred_check
          %p491 = pneg %p77
        $region82: #{tpu_custom_call.1} parent=75 // pred_check_branch
          %493 = sbr.rel (%p491) target = $region84
        $region83: #{tpu_custom_call.1} parent=75 // pred_region
          %494 = dma.done [#allocation7], 2048
        $region84: #{tpu_custom_call.1} parent=75 // pred_fallthru
          _
        // Predicated region
        $region85: #{tpu_custom_call.1} parent=75 // pred_check
          %p495 = pneg %p119
        $region86: #{tpu_custom_call.1} parent=75 // pred_check_branch
          %497 = sbr.rel (%p495) target = $region88
        $region87: #{tpu_custom_call.1} parent=75 // pred_region
          %498 = dma.done [#allocation7], 16384
        $region88: #{tpu_custom_call.1} parent=75 // pred_fallthru
          _
        // Predicated region
        $region89: #{tpu_custom_call.1} parent=75 // pred_check
          %p499 = pneg %p182
        $region90: #{tpu_custom_call.1} parent=75 // pred_check_branch
          %501 = sbr.rel (%p499) target = $region92
        $region91: #{tpu_custom_call.1} parent=75 // pred_region
          %502 = dma.done [#allocation10], 9216
        $region92: #{tpu_custom_call.1} parent=75 // pred_fallthru
          _
        // Predicated region
        $region93: #{tpu_custom_call.1} parent=75 // pred_check
          %p503 = pneg %p308
        $region94: #{tpu_custom_call.1} parent=75 // pred_check_branch
          %505 = sbr.rel (%p503) target = $region96
        $region95: #{tpu_custom_call.1} parent=75 // pred_region
          %506 = dma.done [#allocation10], 4096
        $region96: #{tpu_custom_call.1} parent=75 // pred_fallthru
          _
        %s507 = sand.u32 %s43, 1
        %s508 = scalar_lea.sflag [#allocation4], %s507
        %s509 = sand.u32 %s43, 1
        %s510 = smul.addr %s509, 64
        %s511 = scalar_lea.vmem [#allocation3], %s510
        %p512 = pneg %p56
        %p513 = pneg %p53
        %p514 = pneg %p77
        %p515 = pneg %p74
        %p516 = pneg %p98
        %p517 = pneg %p95
        %p518 = pneg %p119
        %p519 = pneg %p116
        %p520 = pneg %p140
        %p521 = pneg %p137
        %p522 = pneg %p161
        %p523 = pneg %p158
        %p524 = pneg %p182
        %p525 = pneg %p179
        %p526 = pneg %p203
        %p527 = pneg %p200
        %p528 = pneg %p224
        %p529 = pneg %p221
        %p530 = pneg %p245
        %p531 = pneg %p242
        %p532 = pneg %p266
        %p533 = pneg %p263
        %p534 = pneg %p287
        %p535 = pneg %p284
        %p536 = pneg %p308
        %p537 = pneg %p305
        %p538 = pneg %p329
        %p539 = pneg %p326
        %p540 = pneg %p355
        %p541 = pneg %p352
        %s542 = sand.u32 %s342, 1
        %s543 = scalar_lea.sflag [#allocation5], %s542
        %s544 = sand.u32 %s342, 1
        %s545 = scalar_lea.vmem [#allocation12], %s544
        %s546 = smul.u32 8, %s35
        %v548 = vld [vmem:[%s486] sm:$0xff]
        %v549 = vld [vmem:[%s486 + $0x8] sm:$0xff]
        %v550 = vld [vmem:[%s486 + $0x10] sm:$0xff]
        %v551 = vld [vmem:[%s486 + $0x18] sm:$0xff]
        %v552 = vld [vmem:[%s486 + $0x20] sm:$0xff]
        %v553 = vld [vmem:[%s486 + $0x28] sm:$0xff]
        %v554 = vld [vmem:[%s486 + $0x30] sm:$0xff]
        %v555 = vld [vmem:[%s486 + $0x38] sm:$0xff]
        %v556 = vld [vmem:[#allocation6] sm:$0xf]
        %v557 = vld [vmem:[#allocation6 + $0x4] sm:$0xf]
        %v558 = vld [vmem:[#allocation6 + $0x8] sm:$0xf]
        %v559 = vld [vmem:[#allocation6 + $0xc] sm:$0xf]
        %v560 = vld [vmem:[#allocation6 + $0x10] sm:$0xf]
        %v561 = vld [vmem:[#allocation6 + $0x14] sm:$0xf]
        %v562 = vld [vmem:[#allocation6 + $0x18] sm:$0xf]
        %v563 = vld [vmem:[#allocation6 + $0x1c] sm:$0xf]
        %v564 = vld [vmem:[#allocation6 + $0x20] sm:$0xf]
        %v565 = vld [vmem:[#allocation6 + $0x24] sm:$0xf]
        %v566 = vld [vmem:[#allocation6 + $0x28] sm:$0xf]
        %v567 = vld [vmem:[#allocation6 + $0x2c] sm:$0xf]
        %v568 = vld [vmem:[#allocation6 + $0x30] sm:$0xf]
        %v569 = vld [vmem:[#allocation6 + $0x34] sm:$0xf]
        %v570 = vld [vmem:[#allocation6 + $0x38] sm:$0xf]
        %v571 = vld [vmem:[#allocation6 + $0x3c] sm:$0xf]
        %v572 = vld [vmem:[#allocation6 + $0x40] sm:$0xf]
        %v573 = vld [vmem:[#allocation6 + $0x44] sm:$0xf]
        %v574 = vld [vmem:[#allocation6 + $0x48] sm:$0xf]
        %v575 = vld [vmem:[#allocation6 + $0x4c] sm:$0xf]
        %v576 = vld [vmem:[#allocation6 + $0x50] sm:$0xf]
        %v577 = vld [vmem:[#allocation6 + $0x54] sm:$0xf]
        %v578 = vld [vmem:[#allocation6 + $0x58] sm:$0xf]
        %v579 = vld [vmem:[#allocation6 + $0x5c] sm:$0xf]
        %v580 = vld [vmem:[#allocation6 + $0x60] sm:$0xf]
        %v581 = vld [vmem:[#allocation6 + $0x64] sm:$0xf]
        %v582 = vld [vmem:[#allocation6 + $0x68] sm:$0xf]
        %v583 = vld [vmem:[#allocation6 + $0x6c] sm:$0xf]
        %v584 = vld [vmem:[#allocation6 + $0x70] sm:$0xf]
        %v585 = vld [vmem:[#allocation6 + $0x74] sm:$0xf]
        %v586 = vld [vmem:[#allocation6 + $0x78] sm:$0xf]
        %v587 = vld [vmem:[#allocation6 + $0x7c] sm:$0xf]
        %v588 = vld [vmem:[%s2] sm:$0x1]
        %v590 = vlaneseq
        %v591 = vshrl.u32 %v590, 7
        %v592 = vsub.s32 0, %v591
        %v593 = vrot.slane %v588, %v592
        %v603 = vunpack.c.l.b16 %v548
        %v604 = vunpack.c.h.b16 %v548
        %v605 = vunpack.c.l.b16 %v549
        %v606 = vunpack.c.h.b16 %v549
        %v607 = vunpack.c.l.b16 %v550
        %v608 = vunpack.c.h.b16 %v550
        %v609 = vunpack.c.l.b16 %v551
        %v610 = vunpack.c.h.b16 %v551
        %v611 = vunpack.c.l.b16 %v552
        %v612 = vunpack.c.h.b16 %v552
        %v613 = vunpack.c.l.b16 %v553
        %v614 = vunpack.c.h.b16 %v553
        %v615 = vunpack.c.l.b16 %v554
        %v616 = vunpack.c.h.b16 %v554
        %v617 = vunpack.c.l.b16 %v555
        %v618 = vunpack.c.h.b16 %v555
        %v619 = vpack.c.b16 %v605, %v603
        %v620 = vpack.c.b16 %v606, %v604
        %v621 = vpack.c.b16 %v609, %v607
        %v622 = vpack.c.b16 %v610, %v608
        %v623 = vpack.c.b16 %v613, %v611
        %v624 = vpack.c.b16 %v614, %v612
        %v625 = vpack.c.b16 %v617, %v615
        %v626 = vpack.c.b16 %v618, %v616
        %v667 = vunpack.c.l.b16 %v556
        %v668 = vunpack.c.l.b16 %v557
        %v669 = vunpack.c.l.b16 %v558
        %v670 = vunpack.c.l.b16 %v559
        %v671 = vunpack.c.l.b16 %v560
        %v672 = vunpack.c.l.b16 %v561
        %v673 = vunpack.c.l.b16 %v562
        %v674 = vunpack.c.l.b16 %v563
        %v675 = vunpack.c.l.b16 %v564
        %v676 = vunpack.c.l.b16 %v565
        %v677 = vunpack.c.l.b16 %v566
        %v678 = vunpack.c.l.b16 %v567
        %v679 = vunpack.c.l.b16 %v568
        %v680 = vunpack.c.l.b16 %v569
        %v681 = vunpack.c.l.b16 %v570
        %v682 = vunpack.c.l.b16 %v571
        %v683 = vunpack.c.l.b16 %v572
        %v684 = vunpack.c.l.b16 %v573
        %v685 = vunpack.c.l.b16 %v574
        %v686 = vunpack.c.l.b16 %v575
        %v687 = vunpack.c.l.b16 %v576
        %v688 = vunpack.c.l.b16 %v577
        %v689 = vunpack.c.l.b16 %v578
        %v690 = vunpack.c.l.b16 %v579
        %v691 = vunpack.c.l.b16 %v580
        %v692 = vunpack.c.l.b16 %v581
        %v693 = vunpack.c.l.b16 %v582
        %v694 = vunpack.c.l.b16 %v583
        %v695 = vunpack.c.l.b16 %v584
        %v696 = vunpack.c.l.b16 %v585
        %v697 = vunpack.c.l.b16 %v586
        %v698 = vunpack.c.l.b16 %v587
        %v699 = vpack.c.b16 %v668, %v667
        %v700 = vpack.c.b16 %v670, %v669
        %v701 = vpack.c.b16 %v672, %v671
        %v702 = vpack.c.b16 %v674, %v673
        %v703 = vpack.c.b16 %v676, %v675
        %v704 = vpack.c.b16 %v678, %v677
        %v705 = vpack.c.b16 %v680, %v679
        %v706 = vpack.c.b16 %v682, %v681
        %v707 = vpack.c.b16 %v684, %v683
        %v708 = vpack.c.b16 %v686, %v685
        %v709 = vpack.c.b16 %v688, %v687
        %v710 = vpack.c.b16 %v690, %v689
        %v711 = vpack.c.b16 %v692, %v691
        %v712 = vpack.c.b16 %v694, %v693
        %v713 = vpack.c.b16 %v696, %v695
        %v714 = vpack.c.b16 %v698, %v697
        %731 = vmatprep.subr.bf16.mxu0 0
        %732 = vmatpush1.bf16.msra.mxu0 %v706
        %733 = vmatprep.subr.bf16.mxu0 0
        %734 = vmatpush1.bf16.msra.mxu0 %v705
        %735 = vmatprep.subr.bf16.mxu0 0
        %736 = vmatpush1.bf16.msra.mxu0 %v704
        %737 = vmatprep.subr.bf16.mxu0 0
        %738 = vmatpush1.bf16.msra.mxu0 %v703
        %739 = vmatprep.subr.bf16.mxu0 0
        %740 = vmatpush1.bf16.msra.mxu0 %v702
        %741 = vmatprep.subr.bf16.mxu0 0
        %742 = vmatpush1.bf16.msra.mxu0 %v701
        %743 = vmatprep.subr.bf16.mxu0 0
        %744 = vmatpush1.bf16.msra.mxu0 %v700
        %745 = vmatprep.subr.bf16.mxu0 0
        %746 = vmatpush1.bf16.msra.mxu0 %v699
        %747 = vmatprep.subr.bf16.mxu0 0
        %748 = vmatpush2.bf16.msra.mxu0 %v714
        %749 = vmatprep.subr.bf16.mxu0 0
        %750 = vmatpush2.bf16.msra.mxu0 %v713
        %751 = vmatprep.subr.bf16.mxu0 0
        %752 = vmatpush2.bf16.msra.mxu0 %v712
        %753 = vmatprep.subr.bf16.mxu0 0
        %754 = vmatpush2.bf16.msra.mxu0 %v711
        %755 = vmatprep.subr.bf16.mxu0 0
        %756 = vmatpush2.bf16.msra.mxu0 %v710
        %757 = vmatprep.subr.bf16.mxu0 0
        %758 = vmatpush2.bf16.msra.mxu0 %v709
        %759 = vmatprep.subr.bf16.mxu0 0
        %760 = vmatpush2.bf16.msra.mxu0 %v708
        %761 = vmatprep.subr.bf16.mxu0 0
        %762 = vmatpush2.bf16.msra.mxu0 %v707
        %763 = vmatprep.mubr.bf16.mxu0 %v620
        %764 = vmatmul.mubr.bf16.gmra.mxu0 %v619
        %v765 = vpop.f32.mrf.mxu0
        %v766 = vadd.f32 %v593, %v765
        %v767 = vpop.f32.mrf.mxu0
        %v768 = vpop.f32.mrf.mxu0
        %v769 = vadd.f32 %v593, %v768
        %v770 = vpop.f32.mrf.mxu0
        %771 = vmatprep.mubr.bf16.mxu0 %v622
        %772 = vmatmul.mubr.bf16.gmra.mxu0 %v621
        %v773 = vpop.f32.mrf.mxu0
        %v774 = vadd.f32 %v593, %v773
        %v775 = vpop.f32.mrf.mxu0
        %v776 = vpop.f32.mrf.mxu0
        %v777 = vadd.f32 %v593, %v776
        %v778 = vpop.f32.mrf.mxu0
        %779 = vmatprep.mubr.bf16.mxu0 %v624
        %780 = vmatmul.mubr.bf16.gmra.mxu0 %v623
        %v781 = vpop.f32.mrf.mxu0
        %v782 = vadd.f32 %v593, %v781
        %v783 = vpop.f32.mrf.mxu0
        %v784 = vpop.f32.mrf.mxu0
        %v785 = vadd.f32 %v593, %v784
        %v786 = vpop.f32.mrf.mxu0
        %787 = vmatprep.mubr.bf16.mxu0 %v626
        %788 = vmatmul.mubr.bf16.gmra.mxu0 %v625
        %v789 = vpop.f32.mrf.mxu0
        %v790 = vadd.f32 %v593, %v789
        %v791 = vpop.f32.mrf.mxu0
        %v792 = vpop.f32.mrf.mxu0
        %v793 = vadd.f32 %v593, %v792
        %v794 = vpop.f32.mrf.mxu0
        %795 = vdwg.mxu0
        %v796 = vmax.f32 %v766, 0.0
        %v797 = vmax.f32 %v769, 0.0
        %v798 = vmax.f32 %v774, 0.0
        %v799 = vmax.f32 %v777, 0.0
        %v800 = vmax.f32 %v782, 0.0
        %v801 = vmax.f32 %v785, 0.0
        %v802 = vmax.f32 %v790, 0.0
        %v803 = vmax.f32 %v793, 0.0
        %v804 = vpack.c.bf16 %v797, %v796
        %v805 = vpack.c.bf16 %v799, %v798
        %v806 = vpack.c.bf16 %v801, %v800
        %v807 = vpack.c.bf16 %v803, %v802
        %v808 = vlaneseq
        %v809 = vand.u32 %v808, 127
        %v810 = vld [vmem:[%s5] sm:$0xff]
        %v811 = vld [vmem:[%s5 + $0x8] sm:$0x1]
        %812 = vset.pattern.permute.xlu0 0
        %813 = vperm.xlu0 %812, %v810
        %v814 = vpop.permute.xlu0 %813
        %815 = vset.pattern.permute.xlu0 0
        %816 = vperm.xlu0 %815, %v811
        %v817 = vpop.permute.xlu0 %816
        %vm818 = vcmp.eq.s32.totalorder %v809, %v814
        %vm819 = vcmp.eq.s32.totalorder %v809, %v817
        %v820 = vsel %vm818, 1.0, 0.0
        %v821 = vsel %vm819, 1.0, 0.0
        %v822 = vpack.c.bf16 %v821, %v820
        %vm823 = vcmask 523264
        %v825 = vsel %vm823, %v822, 0
        %827 = vmatprep.subr.bf16.mxu0 0
        %828 = vmatpush1.bf16.msra.mxu0 0
        %829 = vmatprep.subr.bf16.mxu0 0
        %830 = vmatpush1.bf16.msra.mxu0 0
        %831 = vmatprep.subr.bf16.mxu0 0
        %832 = vmatpush1.bf16.msra.mxu0 0
        %833 = vmatprep.subr.bf16.mxu0 0
        %834 = vmatpush1.bf16.msra.mxu0 0
        %835 = vmatprep.subr.bf16.mxu0 0
        %836 = vmatpush1.bf16.msra.mxu0 %v807
        %837 = vmatprep.subr.bf16.mxu0 0
        %838 = vmatpush1.bf16.msra.mxu0 %v806
        %839 = vmatprep.subr.bf16.mxu0 0
        %840 = vmatpush1.bf16.msra.mxu0 %v805
        %841 = vmatprep.subr.bf16.mxu0 0
        %842 = vmatpush1.bf16.msra.mxu0 %v804
        %843 = vmatprep.subr.bf16.mxu0 0
        %844 = vmatpush2.bf16.msra.mxu0 0
        %845 = vmatprep.subr.bf16.mxu0 0
        %846 = vmatpush2.bf16.msra.mxu0 0
        %847 = vmatprep.subr.bf16.mxu0 0
        %848 = vmatpush2.bf16.msra.mxu0 0
        %849 = vmatprep.subr.bf16.mxu0 0
        %850 = vmatpush2.bf16.msra.mxu0 0
        %851 = vmatprep.subr.bf16.mxu0 0
        %852 = vmatpush2.bf16.msra.mxu0 0
        %853 = vmatprep.subr.bf16.mxu0 0
        %854 = vmatpush2.bf16.msra.mxu0 0
        %855 = vmatprep.subr.bf16.mxu0 0
        %856 = vmatpush2.bf16.msra.mxu0 0
        %857 = vmatprep.subr.bf16.mxu0 0
        %858 = vmatpush2.bf16.msra.mxu0 0
        %859 = vmatprep.mubr.bf16.mxu0 0
        %860 = vmatmul.mubr.bf16.gmra.mxu0 %v825
        %v861 = vpop.f32.mrf.mxu0
        %v862 = vadd.f32 0.0, %v861
        %v863 = vpop.f32.mrf.mxu0
        %v864 = vpop.f32.mrf.mxu0
        %v865 = vadd.f32 0.0, %v864
        %v866 = vpop.f32.mrf.mxu0
        %867 = vdwg.mxu0
        %v868 = vpack.c.bf16 %v865, %v862
        %v869 = vld [vmem:[#allocation8] sm:$0xf]
        %v870 = vld [vmem:[#allocation8 + $0x4] sm:$0xf]
        %v871 = vld [vmem:[#allocation8 + $0x8] sm:$0xf]
        %v872 = vld [vmem:[#allocation8 + $0xc] sm:$0xf]
        %v873 = vld [vmem:[#allocation8 + $0x10] sm:$0xf]
        %v874 = vld [vmem:[#allocation8 + $0x14] sm:$0xf]
        %v875 = vld [vmem:[#allocation8 + $0x18] sm:$0xf]
        %v876 = vld [vmem:[#allocation8 + $0x1c] sm:$0xf]
        %v877 = vld [vmem:[#allocation8 + $0x20] sm:$0xf]
        %v878 = vld [vmem:[#allocation8 + $0x24] sm:$0xf]
        %v879 = vld [vmem:[#allocation8 + $0x28] sm:$0xf]
        %v880 = vld [vmem:[#allocation8 + $0x2c] sm:$0xf]
        %v881 = vld [vmem:[#allocation8 + $0x30] sm:$0xf]
        %v882 = vld [vmem:[#allocation8 + $0x34] sm:$0xf]
        %v883 = vld [vmem:[#allocation8 + $0x38] sm:$0xf]
        %v884 = vld [vmem:[#allocation8 + $0x3c] sm:$0xf]
        %s885 = scalar_lea.vmem %s5, 16
        %v886 = vld [vmem:[%s885] sm:$0xff]
        %v887 = vld [vmem:[%s885 + $0x8] sm:$0x1]
        %888 = vset.pattern.permute.xlu0 0
        %889 = vperm.xlu0 %888, %v886
        %v890 = vpop.permute.xlu0 %889
        %891 = vset.pattern.permute.xlu0 0
        %892 = vperm.xlu0 %891, %v887
        %v893 = vpop.permute.xlu0 %892
        %vm894 = vcmp.eq.s32.totalorder %v809, %v890
        %vm895 = vcmp.eq.s32.totalorder %v809, %v893
        %v896 = vsel %vm894, 1.0, 0.0
        %v897 = vsel %vm895, 1.0, 0.0
        %v898 = vpack.c.bf16 %v897, %v896
        %v900 = vsel %vm823, %v898, 0
        %902 = vmatprep.subr.bf16.mxu0 0
        %903 = vmatpush1.bf16.msra.mxu0 0
        %904 = vmatprep.subr.bf16.mxu0 0
        %905 = vmatpush1.bf16.msra.mxu0 0
        %906 = vmatprep.subr.bf16.mxu0 0
        %907 = vmatpush1.bf16.msra.mxu0 0
        %908 = vmatprep.subr.bf16.mxu0 0
        %909 = vmatpush1.bf16.msra.mxu0 0
        %910 = vmatprep.subr.bf16.mxu0 0
        %911 = vmatpush1.bf16.msra.mxu0 %v807
        %912 = vmatprep.subr.bf16.mxu0 0
        %913 = vmatpush1.bf16.msra.mxu0 %v806
        %914 = vmatprep.subr.bf16.mxu0 0
        %915 = vmatpush1.bf16.msra.mxu0 %v805
        %916 = vmatprep.subr.bf16.mxu0 0
        %917 = vmatpush1.bf16.msra.mxu0 %v804
        %918 = vmatprep.subr.bf16.mxu0 0
        %919 = vmatpush2.bf16.msra.mxu0 0
        %920 = vmatprep.subr.bf16.mxu0 0
        %921 = vmatpush2.bf16.msra.mxu0 0
        %922 = vmatprep.subr.bf16.mxu0 0
        %923 = vmatpush2.bf16.msra.mxu0 0
        %924 = vmatprep.subr.bf16.mxu0 0
        %925 = vmatpush2.bf16.msra.mxu0 0
        %926 = vmatprep.subr.bf16.mxu0 0
        %927 = vmatpush2.bf16.msra.mxu0 0
        %928 = vmatprep.subr.bf16.mxu0 0
        %929 = vmatpush2.bf16.msra.mxu0 0
        %930 = vmatprep.subr.bf16.mxu0 0
        %931 = vmatpush2.bf16.msra.mxu0 0
        %932 = vmatprep.subr.bf16.mxu0 0
        %933 = vmatpush2.bf16.msra.mxu0 0
        %934 = vmatprep.mubr.bf16.mxu0 0
        %935 = vmatmul.mubr.bf16.gmra.mxu0 %v900
        %v936 = vpop.f32.mrf.mxu0
        %v937 = vadd.f32 0.0, %v936
        %v938 = vpop.f32.mrf.mxu0
        %v939 = vpop.f32.mrf.mxu0
        %v940 = vadd.f32 0.0, %v939
        %v941 = vpop.f32.mrf.mxu0
        %942 = vdwg.mxu0
        %v943 = vpack.c.bf16 %v940, %v937
        %v944 = vld [vmem:[#allocation8 + $0x40] sm:$0xf]
        %v945 = vld [vmem:[#allocation8 + $0x44] sm:$0xf]
        %v946 = vld [vmem:[#allocation8 + $0x48] sm:$0xf]
        %v947 = vld [vmem:[#allocation8 + $0x4c] sm:$0xf]
        %v948 = vld [vmem:[#allocation8 + $0x50] sm:$0xf]
        %v949 = vld [vmem:[#allocation8 + $0x54] sm:$0xf]
        %v950 = vld [vmem:[#allocation8 + $0x58] sm:$0xf]
        %v951 = vld [vmem:[#allocation8 + $0x5c] sm:$0xf]
        %v952 = vld [vmem:[#allocation8 + $0x60] sm:$0xf]
        %v953 = vld [vmem:[#allocation8 + $0x64] sm:$0xf]
        %v954 = vld [vmem:[#allocation8 + $0x68] sm:$0xf]
        %v955 = vld [vmem:[#allocation8 + $0x6c] sm:$0xf]
        %v956 = vld [vmem:[#allocation8 + $0x70] sm:$0xf]
        %v957 = vld [vmem:[#allocation8 + $0x74] sm:$0xf]
        %v958 = vld [vmem:[#allocation8 + $0x78] sm:$0xf]
        %v959 = vld [vmem:[#allocation8 + $0x7c] sm:$0xf]
        %v976 = vunpack.c.l.b16 %v944
        %v977 = vunpack.c.l.b16 %v945
        %v978 = vunpack.c.l.b16 %v946
        %v979 = vunpack.c.l.b16 %v947
        %v980 = vunpack.c.l.b16 %v948
        %v981 = vunpack.c.l.b16 %v949
        %v982 = vunpack.c.l.b16 %v950
        %v983 = vunpack.c.l.b16 %v951
        %v984 = vunpack.c.l.b16 %v952
        %v985 = vunpack.c.l.b16 %v953
        %v986 = vunpack.c.l.b16 %v954
        %v987 = vunpack.c.l.b16 %v955
        %v988 = vunpack.c.l.b16 %v956
        %v989 = vunpack.c.l.b16 %v957
        %v990 = vunpack.c.l.b16 %v958
        %v991 = vunpack.c.l.b16 %v959
        %v992 = vpack.c.b16 %v977, %v976
        %v993 = vpack.c.b16 %v979, %v978
        %v994 = vpack.c.b16 %v981, %v980
        %v995 = vpack.c.b16 %v983, %v982
        %v996 = vpack.c.b16 %v985, %v984
        %v997 = vpack.c.b16 %v987, %v986
        %v998 = vpack.c.b16 %v989, %v988
        %v999 = vpack.c.b16 %v991, %v990
        %1008 = vmatprep.subr.bf16.mxu0 0
        %1009 = vmatpush1.bf16.msra.mxu0 %v999
        %1010 = vmatprep.subr.bf16.mxu0 0
        %1011 = vmatpush1.bf16.msra.mxu0 %v998
        %1012 = vmatprep.subr.bf16.mxu0 0
        %1013 = vmatpush1.bf16.msra.mxu0 %v997
        %1014 = vmatprep.subr.bf16.mxu0 0
        %1015 = vmatpush1.bf16.msra.mxu0 %v996
        %1016 = vmatprep.subr.bf16.mxu0 0
        %1017 = vmatpush1.bf16.msra.mxu0 %v995
        %1018 = vmatprep.subr.bf16.mxu0 0
        %1019 = vmatpush1.bf16.msra.mxu0 %v994
        %1020 = vmatprep.subr.bf16.mxu0 0
        %1021 = vmatpush1.bf16.msra.mxu0 %v993
        %1022 = vmatprep.subr.bf16.mxu0 0
        %1023 = vmatpush1.bf16.msra.mxu0 %v992
        %1024 = vmatprep.subr.bf16.mxu0 0
        %1025 = vmatpush2.bf16.msra.mxu0 0
        %1026 = vmatprep.subr.bf16.mxu0 0
        %1027 = vmatpush2.bf16.msra.mxu0 0
        %1028 = vmatprep.subr.bf16.mxu0 0
        %1029 = vmatpush2.bf16.msra.mxu0 0
        %1030 = vmatprep.subr.bf16.mxu0 0
        %1031 = vmatpush2.bf16.msra.mxu0 0
        %1032 = vmatprep.subr.bf16.mxu0 0
        %1033 = vmatpush2.bf16.msra.mxu0 0
        %1034 = vmatprep.subr.bf16.mxu0 0
        %1035 = vmatpush2.bf16.msra.mxu0 0
        %1036 = vmatprep.subr.bf16.mxu0 0
        %1037 = vmatpush2.bf16.msra.mxu0 0
        %1038 = vmatprep.subr.bf16.mxu0 0
        %1039 = vmatpush2.bf16.msra.mxu0 0
        %1040 = vmatprep.mubr.bf16.mxu0 0
        %1041 = vmatmul.mubr.bf16.gmra.mxu0 %v943
        %v1042 = vpop.f32.mrf.mxu0
        %v1043 = vadd.f32 0.0, %v1042
        %v1044 = vpop.f32.mrf.mxu0
        %v1045 = vpop.f32.mrf.mxu0
        %v1046 = vadd.f32 0.0, %v1045
        %v1047 = vpop.f32.mrf.mxu0
        %1048 = vdwg.mxu0
        %v1065 = vunpack.c.l.b16 %v869
        %v1066 = vunpack.c.l.b16 %v870
        %v1067 = vunpack.c.l.b16 %v871
        %v1068 = vunpack.c.l.b16 %v872
        %v1069 = vunpack.c.l.b16 %v873
        %v1070 = vunpack.c.l.b16 %v874
        %v1071 = vunpack.c.l.b16 %v875
        %v1072 = vunpack.c.l.b16 %v876
        %v1073 = vunpack.c.l.b16 %v877
        %v1074 = vunpack.c.l.b16 %v878
        %v1075 = vunpack.c.l.b16 %v879
        %v1076 = vunpack.c.l.b16 %v880
        %v1077 = vunpack.c.l.b16 %v881
        %v1078 = vunpack.c.l.b16 %v882
        %v1079 = vunpack.c.l.b16 %v883
        %v1080 = vunpack.c.l.b16 %v884
        %v1081 = vpack.c.b16 %v1066, %v1065
        %v1082 = vpack.c.b16 %v1068, %v1067
        %v1083 = vpack.c.b16 %v1070, %v1069
        %v1084 = vpack.c.b16 %v1072, %v1071
        %v1085 = vpack.c.b16 %v1074, %v1073
        %v1086 = vpack.c.b16 %v1076, %v1075
        %v1087 = vpack.c.b16 %v1078, %v1077
        %v1088 = vpack.c.b16 %v1080, %v1079
        %1097 = vmatprep.subr.bf16.mxu0 0
        %1098 = vmatpush1.bf16.msra.mxu0 %v1088
        %1099 = vmatprep.subr.bf16.mxu0 0
        %1100 = vmatpush1.bf16.msra.mxu0 %v1087
        %1101 = vmatprep.subr.bf16.mxu0 0
        %1102 = vmatpush1.bf16.msra.mxu0 %v1086
        %1103 = vmatprep.subr.bf16.mxu0 0
        %1104 = vmatpush1.bf16.msra.mxu0 %v1085
        %1105 = vmatprep.subr.bf16.mxu0 0
        %1106 = vmatpush1.bf16.msra.mxu0 %v1084
        %1107 = vmatprep.subr.bf16.mxu0 0
        %1108 = vmatpush1.bf16.msra.mxu0 %v1083
        %1109 = vmatprep.subr.bf16.mxu0 0
        %1110 = vmatpush1.bf16.msra.mxu0 %v1082
        %1111 = vmatprep.subr.bf16.mxu0 0
        %1112 = vmatpush1.bf16.msra.mxu0 %v1081
        %1113 = vmatprep.subr.bf16.mxu0 0
        %1114 = vmatpush2.bf16.msra.mxu0 0
        %1115 = vmatprep.subr.bf16.mxu0 0
        %1116 = vmatpush2.bf16.msra.mxu0 0
        %1117 = vmatprep.subr.bf16.mxu0 0
        %1118 = vmatpush2.bf16.msra.mxu0 0
        %1119 = vmatprep.subr.bf16.mxu0 0
        %1120 = vmatpush2.bf16.msra.mxu0 0
        %1121 = vmatprep.subr.bf16.mxu0 0
        %1122 = vmatpush2.bf16.msra.mxu0 0
        %1123 = vmatprep.subr.bf16.mxu0 0
        %1124 = vmatpush2.bf16.msra.mxu0 0
        %1125 = vmatprep.subr.bf16.mxu0 0
        %1126 = vmatpush2.bf16.msra.mxu0 0
        %1127 = vmatprep.subr.bf16.mxu0 0
        %1128 = vmatpush2.bf16.msra.mxu0 0
        %1129 = vmatprep.mubr.bf16.mxu0 0
        %1130 = vmatmul.mubr.bf16.gmra.mxu0 %v868
        %v1131 = vpop.f32.mrf.mxu0
        %v1132 = vadd.f32 %v1043, %v1131
        %v1133 = vpop.f32.mrf.mxu0
        %v1134 = vpop.f32.mrf.mxu0
        %v1135 = vadd.f32 %v1046, %v1134
        %v1136 = vpop.f32.mrf.mxu0
        %1137 = vdwg.mxu0
        %s1138 = scalar_lea.vmem %s5, 32
        %v1139 = vld [vmem:[%s1138] sm:$0xff]
        %v1140 = vld [vmem:[%s1138 + $0x8] sm:$0x1]
        %1141 = vset.pattern.permute.xlu0 0
        %1142 = vperm.xlu0 %1141, %v1139
        %v1143 = vpop.permute.xlu0 %1142
        %1144 = vset.pattern.permute.xlu0 0
        %1145 = vperm.xlu0 %1144, %v1140
        %v1146 = vpop.permute.xlu0 %1145
        %vm1147 = vcmp.eq.s32.totalorder %v809, %v1143
        %vm1148 = vcmp.eq.s32.totalorder %v809, %v1146
        %v1149 = vsel %vm1147, 1.0, 0.0
        %v1150 = vsel %vm1148, 1.0, 0.0
        %v1151 = vpack.c.bf16 %v1150, %v1149
        %v1153 = vsel %vm823, %v1151, 0
        %1155 = vmatprep.subr.bf16.mxu0 0
        %1156 = vmatpush1.bf16.msra.mxu0 0
        %1157 = vmatprep.subr.bf16.mxu0 0
        %1158 = vmatpush1.bf16.msra.mxu0 0
        %1159 = vmatprep.subr.bf16.mxu0 0
        %1160 = vmatpush1.bf16.msra.mxu0 0
        %1161 = vmatprep.subr.bf16.mxu0 0
        %1162 = vmatpush1.bf16.msra.mxu0 0
        %1163 = vmatprep.subr.bf16.mxu0 0
        %1164 = vmatpush1.bf16.msra.mxu0 %v807
        %1165 = vmatprep.subr.bf16.mxu0 0
        %1166 = vmatpush1.bf16.msra.mxu0 %v806
        %1167 = vmatprep.subr.bf16.mxu0 0
        %1168 = vmatpush1.bf16.msra.mxu0 %v805
        %1169 = vmatprep.subr.bf16.mxu0 0
        %1170 = vmatpush1.bf16.msra.mxu0 %v804
        %1171 = vmatprep.subr.bf16.mxu0 0
        %1172 = vmatpush2.bf16.msra.mxu0 0
        %1173 = vmatprep.subr.bf16.mxu0 0
        %1174 = vmatpush2.bf16.msra.mxu0 0
        %1175 = vmatprep.subr.bf16.mxu0 0
        %1176 = vmatpush2.bf16.msra.mxu0 0
        %1177 = vmatprep.subr.bf16.mxu0 0
        %1178 = vmatpush2.bf16.msra.mxu0 0
        %1179 = vmatprep.subr.bf16.mxu0 0
        %1180 = vmatpush2.bf16.msra.mxu0 0
        %1181 = vmatprep.subr.bf16.mxu0 0
        %1182 = vmatpush2.bf16.msra.mxu0 0
        %1183 = vmatprep.subr.bf16.mxu0 0
        %1184 = vmatpush2.bf16.msra.mxu0 0
        %1185 = vmatprep.subr.bf16.mxu0 0
        %1186 = vmatpush2.bf16.msra.mxu0 0
        %1187 = vmatprep.mubr.bf16.mxu0 0
        %1188 = vmatmul.mubr.bf16.gmra.mxu0 %v1153
        %v1189 = vpop.f32.mrf.mxu0
        %v1190 = vadd.f32 0.0, %v1189
        %v1191 = vpop.f32.mrf.mxu0
        %v1192 = vpop.f32.mrf.mxu0
        %v1193 = vadd.f32 0.0, %v1192
        %v1194 = vpop.f32.mrf.mxu0
        %1195 = vdwg.mxu0
        %v1196 = vpack.c.bf16 %v1193, %v1190
        %v1197 = vld [vmem:[#allocation8 + $0x80] sm:$0xf]
        %v1198 = vld [vmem:[#allocation8 + $0x84] sm:$0xf]
        %v1199 = vld [vmem:[#allocation8 + $0x88] sm:$0xf]
        %v1200 = vld [vmem:[#allocation8 + $0x8c] sm:$0xf]
        %v1201 = vld [vmem:[#allocation8 + $0x90] sm:$0xf]
        %v1202 = vld [vmem:[#allocation8 + $0x94] sm:$0xf]
        %v1203 = vld [vmem:[#allocation8 + $0x98] sm:$0xf]
        %v1204 = vld [vmem:[#allocation8 + $0x9c] sm:$0xf]
        %v1205 = vld [vmem:[#allocation8 + $0xa0] sm:$0xf]
        %v1206 = vld [vmem:[#allocation8 + $0xa4] sm:$0xf]
        %v1207 = vld [vmem:[#allocation8 + $0xa8] sm:$0xf]
        %v1208 = vld [vmem:[#allocation8 + $0xac] sm:$0xf]
        %v1209 = vld [vmem:[#allocation8 + $0xb0] sm:$0xf]
        %v1210 = vld [vmem:[#allocation8 + $0xb4] sm:$0xf]
        %v1211 = vld [vmem:[#allocation8 + $0xb8] sm:$0xf]
        %v1212 = vld [vmem:[#allocation8 + $0xbc] sm:$0xf]
        %v1229 = vunpack.c.l.b16 %v1197
        %v1230 = vunpack.c.l.b16 %v1198
        %v1231 = vunpack.c.l.b16 %v1199
        %v1232 = vunpack.c.l.b16 %v1200
        %v1233 = vunpack.c.l.b16 %v1201
        %v1234 = vunpack.c.l.b16 %v1202
        %v1235 = vunpack.c.l.b16 %v1203
        %v1236 = vunpack.c.l.b16 %v1204
        %v1237 = vunpack.c.l.b16 %v1205
        %v1238 = vunpack.c.l.b16 %v1206
        %v1239 = vunpack.c.l.b16 %v1207
        %v1240 = vunpack.c.l.b16 %v1208
        %v1241 = vunpack.c.l.b16 %v1209
        %v1242 = vunpack.c.l.b16 %v1210
        %v1243 = vunpack.c.l.b16 %v1211
        %v1244 = vunpack.c.l.b16 %v1212
        %v1245 = vpack.c.b16 %v1230, %v1229
        %v1246 = vpack.c.b16 %v1232, %v1231
        %v1247 = vpack.c.b16 %v1234, %v1233
        %v1248 = vpack.c.b16 %v1236, %v1235
        %v1249 = vpack.c.b16 %v1238, %v1237
        %v1250 = vpack.c.b16 %v1240, %v1239
        %v1251 = vpack.c.b16 %v1242, %v1241
        %v1252 = vpack.c.b16 %v1244, %v1243
        %1261 = vmatprep.subr.bf16.mxu0 0
        %1262 = vmatpush1.bf16.msra.mxu0 %v1252
        %1263 = vmatprep.subr.bf16.mxu0 0
        %1264 = vmatpush1.bf16.msra.mxu0 %v1251
        %1265 = vmatprep.subr.bf16.mxu0 0
        %1266 = vmatpush1.bf16.msra.mxu0 %v1250
        %1267 = vmatprep.subr.bf16.mxu0 0
        %1268 = vmatpush1.bf16.msra.mxu0 %v1249
        %1269 = vmatprep.subr.bf16.mxu0 0
        %1270 = vmatpush1.bf16.msra.mxu0 %v1248
        %1271 = vmatprep.subr.bf16.mxu0 0
        %1272 = vmatpush1.bf16.msra.mxu0 %v1247
        %1273 = vmatprep.subr.bf16.mxu0 0
        %1274 = vmatpush1.bf16.msra.mxu0 %v1246
        %1275 = vmatprep.subr.bf16.mxu0 0
        %1276 = vmatpush1.bf16.msra.mxu0 %v1245
        %1277 = vmatprep.subr.bf16.mxu0 0
        %1278 = vmatpush2.bf16.msra.mxu0 0
        %1279 = vmatprep.subr.bf16.mxu0 0
        %1280 = vmatpush2.bf16.msra.mxu0 0
        %1281 = vmatprep.subr.bf16.mxu0 0
        %1282 = vmatpush2.bf16.msra.mxu0 0
        %1283 = vmatprep.subr.bf16.mxu0 0
        %1284 = vmatpush2.bf16.msra.mxu0 0
        %1285 = vmatprep.subr.bf16.mxu0 0
        %1286 = vmatpush2.bf16.msra.mxu0 0
        %1287 = vmatprep.subr.bf16.mxu0 0
        %1288 = vmatpush2.bf16.msra.mxu0 0
        %1289 = vmatprep.subr.bf16.mxu0 0
        %1290 = vmatpush2.bf16.msra.mxu0 0
        %1291 = vmatprep.subr.bf16.mxu0 0
        %1292 = vmatpush2.bf16.msra.mxu0 0
        %1293 = vmatprep.mubr.bf16.mxu0 0
        %1294 = vmatmul.mubr.bf16.gmra.mxu0 %v1196
        %v1295 = vpop.f32.mrf.mxu0
        %v1296 = vadd.f32 0.0, %v1295
        %v1297 = vpop.f32.mrf.mxu0
        %v1298 = vpop.f32.mrf.mxu0
        %v1299 = vadd.f32 0.0, %v1298
        %v1300 = vpop.f32.mrf.mxu0
        %1301 = vdwg.mxu0
        %v1302 = vadd.f32 %v1132, %v1296
        %v1303 = vadd.f32 %v1135, %v1299
        %s1304 = scalar_lea.vmem %s5, 48
        %v1305 = vld [vmem:[%s1304] sm:$0xff]
        %v1306 = vld [vmem:[%s1304 + $0x8] sm:$0x1]
        %1307 = vset.pattern.permute.xlu0 0
        %1308 = vperm.xlu0 %1307, %v1305
        %v1309 = vpop.permute.xlu0 %1308
        %1310 = vset.pattern.permute.xlu0 0
        %1311 = vperm.xlu0 %1310, %v1306
        %v1312 = vpop.permute.xlu0 %1311
        %vm1313 = vcmp.eq.s32.totalorder %v809, %v1309
        %vm1314 = vcmp.eq.s32.totalorder %v809, %v1312
        %v1315 = vsel %vm1313, 1.0, 0.0
        %v1316 = vsel %vm1314, 1.0, 0.0
        %v1317 = vpack.c.bf16 %v1316, %v1315
        %v1319 = vsel %vm823, %v1317, 0
        %1321 = vmatprep.subr.bf16.mxu0 0
        %1322 = vmatpush1.bf16.msra.mxu0 0
        %1323 = vmatprep.subr.bf16.mxu0 0
        %1324 = vmatpush1.bf16.msra.mxu0 0
        %1325 = vmatprep.subr.bf16.mxu0 0
        %1326 = vmatpush1.bf16.msra.mxu0 0
        %1327 = vmatprep.subr.bf16.mxu0 0
        %1328 = vmatpush1.bf16.msra.mxu0 0
        %1329 = vmatprep.subr.bf16.mxu0 0
        %1330 = vmatpush1.bf16.msra.mxu0 %v807
        %1331 = vmatprep.subr.bf16.mxu0 0
        %1332 = vmatpush1.bf16.msra.mxu0 %v806
        %1333 = vmatprep.subr.bf16.mxu0 0
        %1334 = vmatpush1.bf16.msra.mxu0 %v805
        %1335 = vmatprep.subr.bf16.mxu0 0
        %1336 = vmatpush1.bf16.msra.mxu0 %v804
        %1337 = vmatprep.subr.bf16.mxu0 0
        %1338 = vmatpush2.bf16.msra.mxu0 0
        %1339 = vmatprep.subr.bf16.mxu0 0
        %1340 = vmatpush2.bf16.msra.mxu0 0
        %1341 = vmatprep.subr.bf16.mxu0 0
        %1342 = vmatpush2.bf16.msra.mxu0 0
        %1343 = vmatprep.subr.bf16.mxu0 0
        %1344 = vmatpush2.bf16.msra.mxu0 0
        %1345 = vmatprep.subr.bf16.mxu0 0
        %1346 = vmatpush2.bf16.msra.mxu0 0
        %1347 = vmatprep.subr.bf16.mxu0 0
        %1348 = vmatpush2.bf16.msra.mxu0 0
        %1349 = vmatprep.subr.bf16.mxu0 0
        %1350 = vmatpush2.bf16.msra.mxu0 0
        %1351 = vmatprep.subr.bf16.mxu0 0
        %1352 = vmatpush2.bf16.msra.mxu0 0
        %1353 = vmatprep.mubr.bf16.mxu0 0
        %1354 = vmatmul.mubr.bf16.gmra.mxu0 %v1319
        %v1355 = vpop.f32.mrf.mxu0
        %v1356 = vadd.f32 0.0, %v1355
        %v1357 = vpop.f32.mrf.mxu0
        %v1358 = vpop.f32.mrf.mxu0
        %v1359 = vadd.f32 0.0, %v1358
        %v1360 = vpop.f32.mrf.mxu0
        %1361 = vdwg.mxu0
        %v1362 = vpack.c.bf16 %v1359, %v1356
        %v1363 = vld [vmem:[#allocation8 + $0xc0] sm:$0xf]
        %v1364 = vld [vmem:[#allocation8 + $0xc4] sm:$0xf]
        %v1365 = vld [vmem:[#allocation8 + $0xc8] sm:$0xf]
        %v1366 = vld [vmem:[#allocation8 + $0xcc] sm:$0xf]
        %v1367 = vld [vmem:[#allocation8 + $0xd0] sm:$0xf]
        %v1368 = vld [vmem:[#allocation8 + $0xd4] sm:$0xf]
        %v1369 = vld [vmem:[#allocation8 + $0xd8] sm:$0xf]
        %v1370 = vld [vmem:[#allocation8 + $0xdc] sm:$0xf]
        %v1371 = vld [vmem:[#allocation8 + $0xe0] sm:$0xf]
        %v1372 = vld [vmem:[#allocation8 + $0xe4] sm:$0xf]
        %v1373 = vld [vmem:[#allocation8 + $0xe8] sm:$0xf]
        %v1374 = vld [vmem:[#allocation8 + $0xec] sm:$0xf]
        %v1375 = vld [vmem:[#allocation8 + $0xf0] sm:$0xf]
        %v1376 = vld [vmem:[#allocation8 + $0xf4] sm:$0xf]
        %v1377 = vld [vmem:[#allocation8 + $0xf8] sm:$0xf]
        %v1378 = vld [vmem:[#allocation8 + $0xfc] sm:$0xf]
        %v1395 = vunpack.c.l.b16 %v1363
        %v1396 = vunpack.c.l.b16 %v1364
        %v1397 = vunpack.c.l.b16 %v1365
        %v1398 = vunpack.c.l.b16 %v1366
        %v1399 = vunpack.c.l.b16 %v1367
        %v1400 = vunpack.c.l.b16 %v1368
        %v1401 = vunpack.c.l.b16 %v1369
        %v1402 = vunpack.c.l.b16 %v1370
        %v1403 = vunpack.c.l.b16 %v1371
        %v1404 = vunpack.c.l.b16 %v1372
        %v1405 = vunpack.c.l.b16 %v1373
        %v1406 = vunpack.c.l.b16 %v1374
        %v1407 = vunpack.c.l.b16 %v1375
        %v1408 = vunpack.c.l.b16 %v1376
        %v1409 = vunpack.c.l.b16 %v1377
        %v1410 = vunpack.c.l.b16 %v1378
        %v1411 = vpack.c.b16 %v1396, %v1395
        %v1412 = vpack.c.b16 %v1398, %v1397
        %v1413 = vpack.c.b16 %v1400, %v1399
        %v1414 = vpack.c.b16 %v1402, %v1401
        %v1415 = vpack.c.b16 %v1404, %v1403
        %v1416 = vpack.c.b16 %v1406, %v1405
        %v1417 = vpack.c.b16 %v1408, %v1407
        %v1418 = vpack.c.b16 %v1410, %v1409
        %1427 = vmatprep.subr.bf16.mxu0 0
        %1428 = vmatpush1.bf16.msra.mxu0 %v1418
        %1429 = vmatprep.subr.bf16.mxu0 0
        %1430 = vmatpush1.bf16.msra.mxu0 %v1417
        %1431 = vmatprep.subr.bf16.mxu0 0
        %1432 = vmatpush1.bf16.msra.mxu0 %v1416
        %1433 = vmatprep.subr.bf16.mxu0 0
        %1434 = vmatpush1.bf16.msra.mxu0 %v1415
        %1435 = vmatprep.subr.bf16.mxu0 0
        %1436 = vmatpush1.bf16.msra.mxu0 %v1414
        %1437 = vmatprep.subr.bf16.mxu0 0
        %1438 = vmatpush1.bf16.msra.mxu0 %v1413
        %1439 = vmatprep.subr.bf16.mxu0 0
        %1440 = vmatpush1.bf16.msra.mxu0 %v1412
        %1441 = vmatprep.subr.bf16.mxu0 0
        %1442 = vmatpush1.bf16.msra.mxu0 %v1411
        %1443 = vmatprep.subr.bf16.mxu0 0
        %1444 = vmatpush2.bf16.msra.mxu0 0
        %1445 = vmatprep.subr.bf16.mxu0 0
        %1446 = vmatpush2.bf16.msra.mxu0 0
        %1447 = vmatprep.subr.bf16.mxu0 0
        %1448 = vmatpush2.bf16.msra.mxu0 0
        %1449 = vmatprep.subr.bf16.mxu0 0
        %1450 = vmatpush2.bf16.msra.mxu0 0
        %1451 = vmatprep.subr.bf16.mxu0 0
        %1452 = vmatpush2.bf16.msra.mxu0 0
        %1453 = vmatprep.subr.bf16.mxu0 0
        %1454 = vmatpush2.bf16.msra.mxu0 0
        %1455 = vmatprep.subr.bf16.mxu0 0
        %1456 = vmatpush2.bf16.msra.mxu0 0
        %1457 = vmatprep.subr.bf16.mxu0 0
        %1458 = vmatpush2.bf16.msra.mxu0 0
        %1459 = vmatprep.mubr.bf16.mxu0 0
        %1460 = vmatmul.mubr.bf16.gmra.mxu0 %v1362
        %v1461 = vpop.f32.mrf.mxu0
        %v1462 = vadd.f32 0.0, %v1461
        %v1463 = vpop.f32.mrf.mxu0
        %v1464 = vpop.f32.mrf.mxu0
        %v1465 = vadd.f32 0.0, %v1464
        %v1466 = vpop.f32.mrf.mxu0
        %1467 = vdwg.mxu0
        %v1468 = vadd.f32 %v1302, %v1462
        %v1469 = vadd.f32 %v1303, %v1465
        %s1470 = scalar_lea.vmem %s5, 64
        %v1471 = vld [vmem:[%s1470] sm:$0xff]
        %v1472 = vld [vmem:[%s1470 + $0x8] sm:$0x1]
        %1473 = vset.pattern.permute.xlu0 0
        %1474 = vperm.xlu0 %1473, %v1471
        %v1475 = vpop.permute.xlu0 %1474
        %1476 = vset.pattern.permute.xlu0 0
        %1477 = vperm.xlu0 %1476, %v1472
        %v1478 = vpop.permute.xlu0 %1477
        %vm1479 = vcmp.eq.s32.totalorder %v809, %v1475
        %vm1480 = vcmp.eq.s32.totalorder %v809, %v1478
        %v1481 = vsel %vm1479, 1.0, 0.0
        %v1482 = vsel %vm1480, 1.0, 0.0
        %v1483 = vpack.c.bf16 %v1482, %v1481
        %v1485 = vsel %vm823, %v1483, 0
        %1487 = vmatprep.subr.bf16.mxu0 0
        %1488 = vmatpush1.bf16.msra.mxu0 0
        %1489 = vmatprep.subr.bf16.mxu0 0
        %1490 = vmatpush1.bf16.msra.mxu0 0
        %1491 = vmatprep.subr.bf16.mxu0 0
        %1492 = vmatpush1.bf16.msra.mxu0 0
        %1493 = vmatprep.subr.bf16.mxu0 0
        %1494 = vmatpush1.bf16.msra.mxu0 0
        %1495 = vmatprep.subr.bf16.mxu0 0
        %1496 = vmatpush1.bf16.msra.mxu0 %v807
        %1497 = vmatprep.subr.bf16.mxu0 0
        %1498 = vmatpush1.bf16.msra.mxu0 %v806
        %1499 = vmatprep.subr.bf16.mxu0 0
        %1500 = vmatpush1.bf16.msra.mxu0 %v805
        %1501 = vmatprep.subr.bf16.mxu0 0
        %1502 = vmatpush1.bf16.msra.mxu0 %v804
        %1503 = vmatprep.subr.bf16.mxu0 0
        %1504 = vmatpush2.bf16.msra.mxu0 0
        %1505 = vmatprep.subr.bf16.mxu0 0
        %1506 = vmatpush2.bf16.msra.mxu0 0
        %1507 = vmatprep.subr.bf16.mxu0 0
        %1508 = vmatpush2.bf16.msra.mxu0 0
        %1509 = vmatprep.subr.bf16.mxu0 0
        %1510 = vmatpush2.bf16.msra.mxu0 0
        %1511 = vmatprep.subr.bf16.mxu0 0
        %1512 = vmatpush2.bf16.msra.mxu0 0
        %1513 = vmatprep.subr.bf16.mxu0 0
        %1514 = vmatpush2.bf16.msra.mxu0 0
        %1515 = vmatprep.subr.bf16.mxu0 0
        %1516 = vmatpush2.bf16.msra.mxu0 0
        %1517 = vmatprep.subr.bf16.mxu0 0
        %1518 = vmatpush2.bf16.msra.mxu0 0
        %1519 = vmatprep.mubr.bf16.mxu0 0
        %1520 = vmatmul.mubr.bf16.gmra.mxu0 %v1485
        %v1521 = vpop.f32.mrf.mxu0
        %v1522 = vadd.f32 0.0, %v1521
        %v1523 = vpop.f32.mrf.mxu0
        %v1524 = vpop.f32.mrf.mxu0
        %v1525 = vadd.f32 0.0, %v1524
        %v1526 = vpop.f32.mrf.mxu0
        %1527 = vdwg.mxu0
        %v1528 = vpack.c.bf16 %v1525, %v1522
        %v1529 = vld [vmem:[#allocation8 + $0x100] sm:$0xf]
        %v1530 = vld [vmem:[#allocation8 + $0x104] sm:$0xf]
        %v1531 = vld [vmem:[#allocation8 + $0x108] sm:$0xf]
        %v1532 = vld [vmem:[#allocation8 + $0x10c] sm:$0xf]
        %v1533 = vld [vmem:[#allocation8 + $0x110] sm:$0xf]
        %v1534 = vld [vmem:[#allocation8 + $0x114] sm:$0xf]
        %v1535 = vld [vmem:[#allocation8 + $0x118] sm:$0xf]
        %v1536 = vld [vmem:[#allocation8 + $0x11c] sm:$0xf]
        %v1537 = vld [vmem:[#allocation8 + $0x120] sm:$0xf]
        %v1538 = vld [vmem:[#allocation8 + $0x124] sm:$0xf]
        %v1539 = vld [vmem:[#allocation8 + $0x128] sm:$0xf]
        %v1540 = vld [vmem:[#allocation8 + $0x12c] sm:$0xf]
        %v1541 = vld [vmem:[#allocation8 + $0x130] sm:$0xf]
        %v1542 = vld [vmem:[#allocation8 + $0x134] sm:$0xf]
        %v1543 = vld [vmem:[#allocation8 + $0x138] sm:$0xf]
        %v1544 = vld [vmem:[#allocation8 + $0x13c] sm:$0xf]
        %v1561 = vunpack.c.l.b16 %v1529
        %v1562 = vunpack.c.l.b16 %v1530
        %v1563 = vunpack.c.l.b16 %v1531
        %v1564 = vunpack.c.l.b16 %v1532
        %v1565 = vunpack.c.l.b16 %v1533
        %v1566 = vunpack.c.l.b16 %v1534
        %v1567 = vunpack.c.l.b16 %v1535
        %v1568 = vunpack.c.l.b16 %v1536
        %v1569 = vunpack.c.l.b16 %v1537
        %v1570 = vunpack.c.l.b16 %v1538
        %v1571 = vunpack.c.l.b16 %v1539
        %v1572 = vunpack.c.l.b16 %v1540
        %v1573 = vunpack.c.l.b16 %v1541
        %v1574 = vunpack.c.l.b16 %v1542
        %v1575 = vunpack.c.l.b16 %v1543
        %v1576 = vunpack.c.l.b16 %v1544
        %v1577 = vpack.c.b16 %v1562, %v1561
        %v1578 = vpack.c.b16 %v1564, %v1563
        %v1579 = vpack.c.b16 %v1566, %v1565
        %v1580 = vpack.c.b16 %v1568, %v1567
        %v1581 = vpack.c.b16 %v1570, %v1569
        %v1582 = vpack.c.b16 %v1572, %v1571
        %v1583 = vpack.c.b16 %v1574, %v1573
        %v1584 = vpack.c.b16 %v1576, %v1575
        %1593 = vmatprep.subr.bf16.mxu0 0
        %1594 = vmatpush1.bf16.msra.mxu0 %v1584
        %1595 = vmatprep.subr.bf16.mxu0 0
        %1596 = vmatpush1.bf16.msra.mxu0 %v1583
        %1597 = vmatprep.subr.bf16.mxu0 0
        %1598 = vmatpush1.bf16.msra.mxu0 %v1582
        %1599 = vmatprep.subr.bf16.mxu0 0
        %1600 = vmatpush1.bf16.msra.mxu0 %v1581
        %1601 = vmatprep.subr.bf16.mxu0 0
        %1602 = vmatpush1.bf16.msra.mxu0 %v1580
        %1603 = vmatprep.subr.bf16.mxu0 0
        %1604 = vmatpush1.bf16.msra.mxu0 %v1579
        %1605 = vmatprep.subr.bf16.mxu0 0
        %1606 = vmatpush1.bf16.msra.mxu0 %v1578
        %1607 = vmatprep.subr.bf16.mxu0 0
        %1608 = vmatpush1.bf16.msra.mxu0 %v1577
        %1609 = vmatprep.subr.bf16.mxu0 0
        %1610 = vmatpush2.bf16.msra.mxu0 0
        %1611 = vmatprep.subr.bf16.mxu0 0
        %1612 = vmatpush2.bf16.msra.mxu0 0
        %1613 = vmatprep.subr.bf16.mxu0 0
        %1614 = vmatpush2.bf16.msra.mxu0 0
        %1615 = vmatprep.subr.bf16.mxu0 0
        %1616 = vmatpush2.bf16.msra.mxu0 0
        %1617 = vmatprep.subr.bf16.mxu0 0
        %1618 = vmatpush2.bf16.msra.mxu0 0
        %1619 = vmatprep.subr.bf16.mxu0 0
        %1620 = vmatpush2.bf16.msra.mxu0 0
        %1621 = vmatprep.subr.bf16.mxu0 0
        %1622 = vmatpush2.bf16.msra.mxu0 0
        %1623 = vmatprep.subr.bf16.mxu0 0
        %1624 = vmatpush2.bf16.msra.mxu0 0
        %1625 = vmatprep.mubr.bf16.mxu0 0
        %1626 = vmatmul.mubr.bf16.gmra.mxu0 %v1528
        %v1627 = vpop.f32.mrf.mxu0
        %v1628 = vadd.f32 0.0, %v1627
        %v1629 = vpop.f32.mrf.mxu0
        %v1630 = vpop.f32.mrf.mxu0
        %v1631 = vadd.f32 0.0, %v1630
        %v1632 = vpop.f32.mrf.mxu0
        %1633 = vdwg.mxu0
        %v1634 = vadd.f32 %v1468, %v1628
        %v1635 = vadd.f32 %v1469, %v1631
        %s1636 = scalar_lea.vmem %s5, 80
        %v1637 = vld [vmem:[%s1636] sm:$0xff]
        %v1638 = vld [vmem:[%s1636 + $0x8] sm:$0x1]
        %1639 = vset.pattern.permute.xlu0 0
        %1640 = vperm.xlu0 %1639, %v1637
        %v1641 = vpop.permute.xlu0 %1640
        %1642 = vset.pattern.permute.xlu0 0
        %1643 = vperm.xlu0 %1642, %v1638
        %v1644 = vpop.permute.xlu0 %1643
        %vm1645 = vcmp.eq.s32.totalorder %v809, %v1641
        %vm1646 = vcmp.eq.s32.totalorder %v809, %v1644
        %v1647 = vsel %vm1645, 1.0, 0.0
        %v1648 = vsel %vm1646, 1.0, 0.0
        %v1649 = vpack.c.bf16 %v1648, %v1647
        %v1651 = vsel %vm823, %v1649, 0
        %1653 = vmatprep.subr.bf16.mxu0 0
        %1654 = vmatpush1.bf16.msra.mxu0 0
        %1655 = vmatprep.subr.bf16.mxu0 0
        %1656 = vmatpush1.bf16.msra.mxu0 0
        %1657 = vmatprep.subr.bf16.mxu0 0
        %1658 = vmatpush1.bf16.msra.mxu0 0
        %1659 = vmatprep.subr.bf16.mxu0 0
        %1660 = vmatpush1.bf16.msra.mxu0 0
        %1661 = vmatprep.subr.bf16.mxu0 0
        %1662 = vmatpush1.bf16.msra.mxu0 %v807
        %1663 = vmatprep.subr.bf16.mxu0 0
        %1664 = vmatpush1.bf16.msra.mxu0 %v806
        %1665 = vmatprep.subr.bf16.mxu0 0
        %1666 = vmatpush1.bf16.msra.mxu0 %v805
        %1667 = vmatprep.subr.bf16.mxu0 0
        %1668 = vmatpush1.bf16.msra.mxu0 %v804
        %1669 = vmatprep.subr.bf16.mxu0 0
        %1670 = vmatpush2.bf16.msra.mxu0 0
        %1671 = vmatprep.subr.bf16.mxu0 0
        %1672 = vmatpush2.bf16.msra.mxu0 0
        %1673 = vmatprep.subr.bf16.mxu0 0
        %1674 = vmatpush2.bf16.msra.mxu0 0
        %1675 = vmatprep.subr.bf16.mxu0 0
        %1676 = vmatpush2.bf16.msra.mxu0 0
        %1677 = vmatprep.subr.bf16.mxu0 0
        %1678 = vmatpush2.bf16.msra.mxu0 0
        %1679 = vmatprep.subr.bf16.mxu0 0
        %1680 = vmatpush2.bf16.msra.mxu0 0
        %1681 = vmatprep.subr.bf16.mxu0 0
        %1682 = vmatpush2.bf16.msra.mxu0 0
        %1683 = vmatprep.subr.bf16.mxu0 0
        %1684 = vmatpush2.bf16.msra.mxu0 0
        %1685 = vmatprep.mubr.bf16.mxu0 0
        %1686 = vmatmul.mubr.bf16.gmra.mxu0 %v1651
        %v1687 = vpop.f32.mrf.mxu0
        %v1688 = vadd.f32 0.0, %v1687
        %v1689 = vpop.f32.mrf.mxu0
        %v1690 = vpop.f32.mrf.mxu0
        %v1691 = vadd.f32 0.0, %v1690
        %v1692 = vpop.f32.mrf.mxu0
        %1693 = vdwg.mxu0
        %v1694 = vpack.c.bf16 %v1691, %v1688
        %v1695 = vld [vmem:[#allocation8 + $0x140] sm:$0xf]
        %v1696 = vld [vmem:[#allocation8 + $0x144] sm:$0xf]
        %v1697 = vld [vmem:[#allocation8 + $0x148] sm:$0xf]
        %v1698 = vld [vmem:[#allocation8 + $0x14c] sm:$0xf]
        %v1699 = vld [vmem:[#allocation8 + $0x150] sm:$0xf]
        %v1700 = vld [vmem:[#allocation8 + $0x154] sm:$0xf]
        %v1701 = vld [vmem:[#allocation8 + $0x158] sm:$0xf]
        %v1702 = vld [vmem:[#allocation8 + $0x15c] sm:$0xf]
        %v1703 = vld [vmem:[#allocation8 + $0x160] sm:$0xf]
        %v1704 = vld [vmem:[#allocation8 + $0x164] sm:$0xf]
        %v1705 = vld [vmem:[#allocation8 + $0x168] sm:$0xf]
        %v1706 = vld [vmem:[#allocation8 + $0x16c] sm:$0xf]
        %v1707 = vld [vmem:[#allocation8 + $0x170] sm:$0xf]
        %v1708 = vld [vmem:[#allocation8 + $0x174] sm:$0xf]
        %v1709 = vld [vmem:[#allocation8 + $0x178] sm:$0xf]
        %v1710 = vld [vmem:[#allocation8 + $0x17c] sm:$0xf]
        %v1727 = vunpack.c.l.b16 %v1695
        %v1728 = vunpack.c.l.b16 %v1696
        %v1729 = vunpack.c.l.b16 %v1697
        %v1730 = vunpack.c.l.b16 %v1698
        %v1731 = vunpack.c.l.b16 %v1699
        %v1732 = vunpack.c.l.b16 %v1700
        %v1733 = vunpack.c.l.b16 %v1701
        %v1734 = vunpack.c.l.b16 %v1702
        %v1735 = vunpack.c.l.b16 %v1703
        %v1736 = vunpack.c.l.b16 %v1704
        %v1737 = vunpack.c.l.b16 %v1705
        %v1738 = vunpack.c.l.b16 %v1706
        %v1739 = vunpack.c.l.b16 %v1707
        %v1740 = vunpack.c.l.b16 %v1708
        %v1741 = vunpack.c.l.b16 %v1709
        %v1742 = vunpack.c.l.b16 %v1710
        %v1743 = vpack.c.b16 %v1728, %v1727
        %v1744 = vpack.c.b16 %v1730, %v1729
        %v1745 = vpack.c.b16 %v1732, %v1731
        %v1746 = vpack.c.b16 %v1734, %v1733
        %v1747 = vpack.c.b16 %v1736, %v1735
        %v1748 = vpack.c.b16 %v1738, %v1737
        %v1749 = vpack.c.b16 %v1740, %v1739
        %v1750 = vpack.c.b16 %v1742, %v1741
        %1759 = vmatprep.subr.bf16.mxu0 0
        %1760 = vmatpush1.bf16.msra.mxu0 %v1750
        %1761 = vmatprep.subr.bf16.mxu0 0
        %1762 = vmatpush1.bf16.msra.mxu0 %v1749
        %1763 = vmatprep.subr.bf16.mxu0 0
        %1764 = vmatpush1.bf16.msra.mxu0 %v1748
        %1765 = vmatprep.subr.bf16.mxu0 0
        %1766 = vmatpush1.bf16.msra.mxu0 %v1747
        %1767 = vmatprep.subr.bf16.mxu0 0
        %1768 = vmatpush1.bf16.msra.mxu0 %v1746
        %1769 = vmatprep.subr.bf16.mxu0 0
        %1770 = vmatpush1.bf16.msra.mxu0 %v1745
        %1771 = vmatprep.subr.bf16.mxu0 0
        %1772 = vmatpush1.bf16.msra.mxu0 %v1744
        %1773 = vmatprep.subr.bf16.mxu0 0
        %1774 = vmatpush1.bf16.msra.mxu0 %v1743
        %1775 = vmatprep.subr.bf16.mxu0 0
        %1776 = vmatpush2.bf16.msra.mxu0 0
        %1777 = vmatprep.subr.bf16.mxu0 0
        %1778 = vmatpush2.bf16.msra.mxu0 0
        %1779 = vmatprep.subr.bf16.mxu0 0
        %1780 = vmatpush2.bf16.msra.mxu0 0
        %1781 = vmatprep.subr.bf16.mxu0 0
        %1782 = vmatpush2.bf16.msra.mxu0 0
        %1783 = vmatprep.subr.bf16.mxu0 0
        %1784 = vmatpush2.bf16.msra.mxu0 0
        %1785 = vmatprep.subr.bf16.mxu0 0
        %1786 = vmatpush2.bf16.msra.mxu0 0
        %1787 = vmatprep.subr.bf16.mxu0 0
        %1788 = vmatpush2.bf16.msra.mxu0 0
        %1789 = vmatprep.subr.bf16.mxu0 0
        %1790 = vmatpush2.bf16.msra.mxu0 0
        %1791 = vmatprep.mubr.bf16.mxu0 0
        %1792 = vmatmul.mubr.bf16.gmra.mxu0 %v1694
        %v1793 = vpop.f32.mrf.mxu0
        %v1794 = vadd.f32 0.0, %v1793
        %v1795 = vpop.f32.mrf.mxu0
        %v1796 = vpop.f32.mrf.mxu0
        %v1797 = vadd.f32 0.0, %v1796
        %v1798 = vpop.f32.mrf.mxu0
        %1799 = vdwg.mxu0
        %v1800 = vadd.f32 %v1634, %v1794
        %v1801 = vadd.f32 %v1635, %v1797
        %s1802 = scalar_lea.vmem %s5, 96
        %v1803 = vld [vmem:[%s1802] sm:$0xff]
        %v1804 = vld [vmem:[%s1802 + $0x8] sm:$0x1]
        %1805 = vset.pattern.permute.xlu0 0
        %1806 = vperm.xlu0 %1805, %v1803
        %v1807 = vpop.permute.xlu0 %1806
        %1808 = vset.pattern.permute.xlu0 0
        %1809 = vperm.xlu0 %1808, %v1804
        %v1810 = vpop.permute.xlu0 %1809
        %vm1811 = vcmp.eq.s32.totalorder %v809, %v1807
        %vm1812 = vcmp.eq.s32.totalorder %v809, %v1810
        %v1813 = vsel %vm1811, 1.0, 0.0
        %v1814 = vsel %vm1812, 1.0, 0.0
        %v1815 = vpack.c.bf16 %v1814, %v1813
        %v1817 = vsel %vm823, %v1815, 0
        %1819 = vmatprep.subr.bf16.mxu0 0
        %1820 = vmatpush1.bf16.msra.mxu0 0
        %1821 = vmatprep.subr.bf16.mxu0 0
        %1822 = vmatpush1.bf16.msra.mxu0 0
        %1823 = vmatprep.subr.bf16.mxu0 0
        %1824 = vmatpush1.bf16.msra.mxu0 0
        %1825 = vmatprep.subr.bf16.mxu0 0
        %1826 = vmatpush1.bf16.msra.mxu0 0
        %1827 = vmatprep.subr.bf16.mxu0 0
        %1828 = vmatpush1.bf16.msra.mxu0 %v807
        %1829 = vmatprep.subr.bf16.mxu0 0
        %1830 = vmatpush1.bf16.msra.mxu0 %v806
        %1831 = vmatprep.subr.bf16.mxu0 0
        %1832 = vmatpush1.bf16.msra.mxu0 %v805
        %1833 = vmatprep.subr.bf16.mxu0 0
        %1834 = vmatpush1.bf16.msra.mxu0 %v804
        %1835 = vmatprep.subr.bf16.mxu0 0
        %1836 = vmatpush2.bf16.msra.mxu0 0
        %1837 = vmatprep.subr.bf16.mxu0 0
        %1838 = vmatpush2.bf16.msra.mxu0 0
        %1839 = vmatprep.subr.bf16.mxu0 0
        %1840 = vmatpush2.bf16.msra.mxu0 0
        %1841 = vmatprep.subr.bf16.mxu0 0
        %1842 = vmatpush2.bf16.msra.mxu0 0
        %1843 = vmatprep.subr.bf16.mxu0 0
        %1844 = vmatpush2.bf16.msra.mxu0 0
        %1845 = vmatprep.subr.bf16.mxu0 0
        %1846 = vmatpush2.bf16.msra.mxu0 0
        %1847 = vmatprep.subr.bf16.mxu0 0
        %1848 = vmatpush2.bf16.msra.mxu0 0
        %1849 = vmatprep.subr.bf16.mxu0 0
        %1850 = vmatpush2.bf16.msra.mxu0 0
        %1851 = vmatprep.mubr.bf16.mxu0 0
        %1852 = vmatmul.mubr.bf16.gmra.mxu0 %v1817
        %v1853 = vpop.f32.mrf.mxu0
        %v1854 = vadd.f32 0.0, %v1853
        %v1855 = vpop.f32.mrf.mxu0
        %v1856 = vpop.f32.mrf.mxu0
        %v1857 = vadd.f32 0.0, %v1856
        %v1858 = vpop.f32.mrf.mxu0
        %1859 = vdwg.mxu0
        %v1860 = vpack.c.bf16 %v1857, %v1854
        %v1861 = vld [vmem:[#allocation8 + $0x180] sm:$0xf]
        %v1862 = vld [vmem:[#allocation8 + $0x184] sm:$0xf]
        %v1863 = vld [vmem:[#allocation8 + $0x188] sm:$0xf]
        %v1864 = vld [vmem:[#allocation8 + $0x18c] sm:$0xf]
        %v1865 = vld [vmem:[#allocation8 + $0x190] sm:$0xf]
        %v1866 = vld [vmem:[#allocation8 + $0x194] sm:$0xf]
        %v1867 = vld [vmem:[#allocation8 + $0x198] sm:$0xf]
        %v1868 = vld [vmem:[#allocation8 + $0x19c] sm:$0xf]
        %v1869 = vld [vmem:[#allocation8 + $0x1a0] sm:$0xf]
        %v1870 = vld [vmem:[#allocation8 + $0x1a4] sm:$0xf]
        %v1871 = vld [vmem:[#allocation8 + $0x1a8] sm:$0xf]
        %v1872 = vld [vmem:[#allocation8 + $0x1ac] sm:$0xf]
        %v1873 = vld [vmem:[#allocation8 + $0x1b0] sm:$0xf]
        %v1874 = vld [vmem:[#allocation8 + $0x1b4] sm:$0xf]
        %v1875 = vld [vmem:[#allocation8 + $0x1b8] sm:$0xf]
        %v1876 = vld [vmem:[#allocation8 + $0x1bc] sm:$0xf]
        %v1893 = vunpack.c.l.b16 %v1861
        %v1894 = vunpack.c.l.b16 %v1862
        %v1895 = vunpack.c.l.b16 %v1863
        %v1896 = vunpack.c.l.b16 %v1864
        %v1897 = vunpack.c.l.b16 %v1865
        %v1898 = vunpack.c.l.b16 %v1866
        %v1899 = vunpack.c.l.b16 %v1867
        %v1900 = vunpack.c.l.b16 %v1868
        %v1901 = vunpack.c.l.b16 %v1869
        %v1902 = vunpack.c.l.b16 %v1870
        %v1903 = vunpack.c.l.b16 %v1871
        %v1904 = vunpack.c.l.b16 %v1872
        %v1905 = vunpack.c.l.b16 %v1873
        %v1906 = vunpack.c.l.b16 %v1874
        %v1907 = vunpack.c.l.b16 %v1875
        %v1908 = vunpack.c.l.b16 %v1876
        %v1909 = vpack.c.b16 %v1894, %v1893
        %v1910 = vpack.c.b16 %v1896, %v1895
        %v1911 = vpack.c.b16 %v1898, %v1897
        %v1912 = vpack.c.b16 %v1900, %v1899
        %v1913 = vpack.c.b16 %v1902, %v1901
        %v1914 = vpack.c.b16 %v1904, %v1903
        %v1915 = vpack.c.b16 %v1906, %v1905
        %v1916 = vpack.c.b16 %v1908, %v1907
        %1925 = vmatprep.subr.bf16.mxu0 0
        %1926 = vmatpush1.bf16.msra.mxu0 %v1916
        %1927 = vmatprep.subr.bf16.mxu0 0
        %1928 = vmatpush1.bf16.msra.mxu0 %v1915
        %1929 = vmatprep.subr.bf16.mxu0 0
        %1930 = vmatpush1.bf16.msra.mxu0 %v1914
        %1931 = vmatprep.subr.bf16.mxu0 0
        %1932 = vmatpush1.bf16.msra.mxu0 %v1913
        %1933 = vmatprep.subr.bf16.mxu0 0
        %1934 = vmatpush1.bf16.msra.mxu0 %v1912
        %1935 = vmatprep.subr.bf16.mxu0 0
        %1936 = vmatpush1.bf16.msra.mxu0 %v1911
        %1937 = vmatprep.subr.bf16.mxu0 0
        %1938 = vmatpush1.bf16.msra.mxu0 %v1910
        %1939 = vmatprep.subr.bf16.mxu0 0
        %1940 = vmatpush1.bf16.msra.mxu0 %v1909
        %1941 = vmatprep.subr.bf16.mxu0 0
        %1942 = vmatpush2.bf16.msra.mxu0 0
        %1943 = vmatprep.subr.bf16.mxu0 0
        %1944 = vmatpush2.bf16.msra.mxu0 0
        %1945 = vmatprep.subr.bf16.mxu0 0
        %1946 = vmatpush2.bf16.msra.mxu0 0
        %1947 = vmatprep.subr.bf16.mxu0 0
        %1948 = vmatpush2.bf16.msra.mxu0 0
        %1949 = vmatprep.subr.bf16.mxu0 0
        %1950 = vmatpush2.bf16.msra.mxu0 0
        %1951 = vmatprep.subr.bf16.mxu0 0
        %1952 = vmatpush2.bf16.msra.mxu0 0
        %1953 = vmatprep.subr.bf16.mxu0 0
        %1954 = vmatpush2.bf16.msra.mxu0 0
        %1955 = vmatprep.subr.bf16.mxu0 0
        %1956 = vmatpush2.bf16.msra.mxu0 0
        %1957 = vmatprep.mubr.bf16.mxu0 0
        %1958 = vmatmul.mubr.bf16.gmra.mxu0 %v1860
        %v1959 = vpop.f32.mrf.mxu0
        %v1960 = vadd.f32 0.0, %v1959
        %v1961 = vpop.f32.mrf.mxu0
        %v1962 = vpop.f32.mrf.mxu0
        %v1963 = vadd.f32 0.0, %v1962
        %v1964 = vpop.f32.mrf.mxu0
        %1965 = vdwg.mxu0
        %v1966 = vadd.f32 %v1800, %v1960
        %v1967 = vadd.f32 %v1801, %v1963
        %s1968 = scalar_lea.vmem %s5, 112
        %v1969 = vld [vmem:[%s1968] sm:$0xff]
        %v1970 = vld [vmem:[%s1968 + $0x8] sm:$0x1]
        %1971 = vset.pattern.permute.xlu0 0
        %1972 = vperm.xlu0 %1971, %v1969
        %v1973 = vpop.permute.xlu0 %1972
        %1974 = vset.pattern.permute.xlu0 0
        %1975 = vperm.xlu0 %1974, %v1970
        %v1976 = vpop.permute.xlu0 %1975
        %vm1977 = vcmp.eq.s32.totalorder %v809, %v1973
        %vm1978 = vcmp.eq.s32.totalorder %v809, %v1976
        %v1979 = vsel %vm1977, 1.0, 0.0
        %v1980 = vsel %vm1978, 1.0, 0.0
        %v1981 = vpack.c.bf16 %v1980, %v1979
        %v1983 = vsel %vm823, %v1981, 0
        %1985 = vmatprep.subr.bf16.mxu0 0
        %1986 = vmatpush1.bf16.msra.mxu0 0
        %1987 = vmatprep.subr.bf16.mxu0 0
        %1988 = vmatpush1.bf16.msra.mxu0 0
        %1989 = vmatprep.subr.bf16.mxu0 0
        %1990 = vmatpush1.bf16.msra.mxu0 0
        %1991 = vmatprep.subr.bf16.mxu0 0
        %1992 = vmatpush1.bf16.msra.mxu0 0
        %1993 = vmatprep.subr.bf16.mxu0 0
        %1994 = vmatpush1.bf16.msra.mxu0 %v807
        %1995 = vmatprep.subr.bf16.mxu0 0
        %1996 = vmatpush1.bf16.msra.mxu0 %v806
        %1997 = vmatprep.subr.bf16.mxu0 0
        %1998 = vmatpush1.bf16.msra.mxu0 %v805
        %1999 = vmatprep.subr.bf16.mxu0 0
        %2000 = vmatpush1.bf16.msra.mxu0 %v804
        %2001 = vmatprep.subr.bf16.mxu0 0
        %2002 = vmatpush2.bf16.msra.mxu0 0
        %2003 = vmatprep.subr.bf16.mxu0 0
        %2004 = vmatpush2.bf16.msra.mxu0 0
        %2005 = vmatprep.subr.bf16.mxu0 0
        %2006 = vmatpush2.bf16.msra.mxu0 0
        %2007 = vmatprep.subr.bf16.mxu0 0
        %2008 = vmatpush2.bf16.msra.mxu0 0
        %2009 = vmatprep.subr.bf16.mxu0 0
        %2010 = vmatpush2.bf16.msra.mxu0 0
        %2011 = vmatprep.subr.bf16.mxu0 0
        %2012 = vmatpush2.bf16.msra.mxu0 0
        %2013 = vmatprep.subr.bf16.mxu0 0
        %2014 = vmatpush2.bf16.msra.mxu0 0
        %2015 = vmatprep.subr.bf16.mxu0 0
        %2016 = vmatpush2.bf16.msra.mxu0 0
        %2017 = vmatprep.mubr.bf16.mxu0 0
        %2018 = vmatmul.mubr.bf16.gmra.mxu0 %v1983
        %v2019 = vpop.f32.mrf.mxu0
        %v2020 = vadd.f32 0.0, %v2019
        %v2021 = vpop.f32.mrf.mxu0
        %v2022 = vpop.f32.mrf.mxu0
        %v2023 = vadd.f32 0.0, %v2022
        %v2024 = vpop.f32.mrf.mxu0
        %2025 = vdwg.mxu0
        %v2026 = vpack.c.bf16 %v2023, %v2020
        %v2027 = vld [vmem:[#allocation8 + $0x1c0] sm:$0xf]
        %v2028 = vld [vmem:[#allocation8 + $0x1c4] sm:$0xf]
        %v2029 = vld [vmem:[#allocation8 + $0x1c8] sm:$0xf]
        %v2030 = vld [vmem:[#allocation8 + $0x1cc] sm:$0xf]
        %v2031 = vld [vmem:[#allocation8 + $0x1d0] sm:$0xf]
        %v2032 = vld [vmem:[#allocation8 + $0x1d4] sm:$0xf]
        %v2033 = vld [vmem:[#allocation8 + $0x1d8] sm:$0xf]
        %v2034 = vld [vmem:[#allocation8 + $0x1dc] sm:$0xf]
        %v2035 = vld [vmem:[#allocation8 + $0x1e0] sm:$0xf]
        %v2036 = vld [vmem:[#allocation8 + $0x1e4] sm:$0xf]
        %v2037 = vld [vmem:[#allocation8 + $0x1e8] sm:$0xf]
        %v2038 = vld [vmem:[#allocation8 + $0x1ec] sm:$0xf]
        %v2039 = vld [vmem:[#allocation8 + $0x1f0] sm:$0xf]
        %v2040 = vld [vmem:[#allocation8 + $0x1f4] sm:$0xf]
        %v2041 = vld [vmem:[#allocation8 + $0x1f8] sm:$0xf]
        %v2042 = vld [vmem:[#allocation8 + $0x1fc] sm:$0xf]
        %v2059 = vunpack.c.l.b16 %v2027
        %v2060 = vunpack.c.l.b16 %v2028
        %v2061 = vunpack.c.l.b16 %v2029
        %v2062 = vunpack.c.l.b16 %v2030
        %v2063 = vunpack.c.l.b16 %v2031
        %v2064 = vunpack.c.l.b16 %v2032
        %v2065 = vunpack.c.l.b16 %v2033
        %v2066 = vunpack.c.l.b16 %v2034
        %v2067 = vunpack.c.l.b16 %v2035
        %v2068 = vunpack.c.l.b16 %v2036
        %v2069 = vunpack.c.l.b16 %v2037
        %v2070 = vunpack.c.l.b16 %v2038
        %v2071 = vunpack.c.l.b16 %v2039
        %v2072 = vunpack.c.l.b16 %v2040
        %v2073 = vunpack.c.l.b16 %v2041
        %v2074 = vunpack.c.l.b16 %v2042
        %v2075 = vpack.c.b16 %v2060, %v2059
        %v2076 = vpack.c.b16 %v2062, %v2061
        %v2077 = vpack.c.b16 %v2064, %v2063
        %v2078 = vpack.c.b16 %v2066, %v2065
        %v2079 = vpack.c.b16 %v2068, %v2067
        %v2080 = vpack.c.b16 %v2070, %v2069
        %v2081 = vpack.c.b16 %v2072, %v2071
        %v2082 = vpack.c.b16 %v2074, %v2073
        %2091 = vmatprep.subr.bf16.mxu0 0
        %2092 = vmatpush1.bf16.msra.mxu0 %v2082
        %2093 = vmatprep.subr.bf16.mxu0 0
        %2094 = vmatpush1.bf16.msra.mxu0 %v2081
        %2095 = vmatprep.subr.bf16.mxu0 0
        %2096 = vmatpush1.bf16.msra.mxu0 %v2080
        %2097 = vmatprep.subr.bf16.mxu0 0
        %2098 = vmatpush1.bf16.msra.mxu0 %v2079
        %2099 = vmatprep.subr.bf16.mxu0 0
        %2100 = vmatpush1.bf16.msra.mxu0 %v2078
        %2101 = vmatprep.subr.bf16.mxu0 0
        %2102 = vmatpush1.bf16.msra.mxu0 %v2077
        %2103 = vmatprep.subr.bf16.mxu0 0
        %2104 = vmatpush1.bf16.msra.mxu0 %v2076
        %2105 = vmatprep.subr.bf16.mxu0 0
        %2106 = vmatpush1.bf16.msra.mxu0 %v2075
        %2107 = vmatprep.subr.bf16.mxu0 0
        %2108 = vmatpush2.bf16.msra.mxu0 0
        %2109 = vmatprep.subr.bf16.mxu0 0
        %2110 = vmatpush2.bf16.msra.mxu0 0
        %2111 = vmatprep.subr.bf16.mxu0 0
        %2112 = vmatpush2.bf16.msra.mxu0 0
        %2113 = vmatprep.subr.bf16.mxu0 0
        %2114 = vmatpush2.bf16.msra.mxu0 0
        %2115 = vmatprep.subr.bf16.mxu0 0
        %2116 = vmatpush2.bf16.msra.mxu0 0
        %2117 = vmatprep.subr.bf16.mxu0 0
        %2118 = vmatpush2.bf16.msra.mxu0 0
        %2119 = vmatprep.subr.bf16.mxu0 0
        %2120 = vmatpush2.bf16.msra.mxu0 0
        %2121 = vmatprep.subr.bf16.mxu0 0
        %2122 = vmatpush2.bf16.msra.mxu0 0
        %2123 = vmatprep.mubr.bf16.mxu0 0
        %2124 = vmatmul.mubr.bf16.gmra.mxu0 %v2026
        %v2125 = vpop.f32.mrf.mxu0
        %v2126 = vadd.f32 0.0, %v2125
        %v2127 = vpop.f32.mrf.mxu0
        %v2128 = vpop.f32.mrf.mxu0
        %v2129 = vadd.f32 0.0, %v2128
        %v2130 = vpop.f32.mrf.mxu0
        %2131 = vdwg.mxu0
        %v2132 = vadd.f32 %v1966, %v2126
        %v2133 = vadd.f32 %v1967, %v2129
        %s2134 = scalar_lea.vmem %s5, 128
        %v2135 = vld [vmem:[%s2134] sm:$0xff]
        %v2136 = vld [vmem:[%s2134 + $0x8] sm:$0x1]
        %2137 = vset.pattern.permute.xlu0 0
        %2138 = vperm.xlu0 %2137, %v2135
        %v2139 = vpop.permute.xlu0 %2138
        %2140 = vset.pattern.permute.xlu0 0
        %2141 = vperm.xlu0 %2140, %v2136
        %v2142 = vpop.permute.xlu0 %2141
        %vm2143 = vcmp.eq.s32.totalorder %v809, %v2139
        %vm2144 = vcmp.eq.s32.totalorder %v809, %v2142
        %v2145 = vsel %vm2143, 1.0, 0.0
        %v2146 = vsel %vm2144, 1.0, 0.0
        %v2147 = vpack.c.bf16 %v2146, %v2145
        %v2149 = vsel %vm823, %v2147, 0
        %2151 = vmatprep.subr.bf16.mxu0 0
        %2152 = vmatpush1.bf16.msra.mxu0 0
        %2153 = vmatprep.subr.bf16.mxu0 0
        %2154 = vmatpush1.bf16.msra.mxu0 0
        %2155 = vmatprep.subr.bf16.mxu0 0
        %2156 = vmatpush1.bf16.msra.mxu0 0
        %2157 = vmatprep.subr.bf16.mxu0 0
        %2158 = vmatpush1.bf16.msra.mxu0 0
        %2159 = vmatprep.subr.bf16.mxu0 0
        %2160 = vmatpush1.bf16.msra.mxu0 %v807
        %2161 = vmatprep.subr.bf16.mxu0 0
        %2162 = vmatpush1.bf16.msra.mxu0 %v806
        %2163 = vmatprep.subr.bf16.mxu0 0
        %2164 = vmatpush1.bf16.msra.mxu0 %v805
        %2165 = vmatprep.subr.bf16.mxu0 0
        %2166 = vmatpush1.bf16.msra.mxu0 %v804
        %2167 = vmatprep.subr.bf16.mxu0 0
        %2168 = vmatpush2.bf16.msra.mxu0 0
        %2169 = vmatprep.subr.bf16.mxu0 0
        %2170 = vmatpush2.bf16.msra.mxu0 0
        %2171 = vmatprep.subr.bf16.mxu0 0
        %2172 = vmatpush2.bf16.msra.mxu0 0
        %2173 = vmatprep.subr.bf16.mxu0 0
        %2174 = vmatpush2.bf16.msra.mxu0 0
        %2175 = vmatprep.subr.bf16.mxu0 0
        %2176 = vmatpush2.bf16.msra.mxu0 0
        %2177 = vmatprep.subr.bf16.mxu0 0
        %2178 = vmatpush2.bf16.msra.mxu0 0
        %2179 = vmatprep.subr.bf16.mxu0 0
        %2180 = vmatpush2.bf16.msra.mxu0 0
        %2181 = vmatprep.subr.bf16.mxu0 0
        %2182 = vmatpush2.bf16.msra.mxu0 0
        %2183 = vmatprep.mubr.bf16.mxu0 0
        %2184 = vmatmul.mubr.bf16.gmra.mxu0 %v2149
        %v2185 = vpop.f32.mrf.mxu0
        %v2186 = vadd.f32 0.0, %v2185
        %v2187 = vpop.f32.mrf.mxu0
        %v2188 = vpop.f32.mrf.mxu0
        %v2189 = vadd.f32 0.0, %v2188
        %v2190 = vpop.f32.mrf.mxu0
        %2191 = vdwg.mxu0
        %v2192 = vpack.c.bf16 %v2189, %v2186
        %v2193 = vld [vmem:[#allocation8 + $0x200] sm:$0xf]
        %v2194 = vld [vmem:[#allocation8 + $0x204] sm:$0xf]
        %v2195 = vld [vmem:[#allocation8 + $0x208] sm:$0xf]
        %v2196 = vld [vmem:[#allocation8 + $0x20c] sm:$0xf]
        %v2197 = vld [vmem:[#allocation8 + $0x210] sm:$0xf]
        %v2198 = vld [vmem:[#allocation8 + $0x214] sm:$0xf]
        %v2199 = vld [vmem:[#allocation8 + $0x218] sm:$0xf]
        %v2200 = vld [vmem:[#allocation8 + $0x21c] sm:$0xf]
        %v2201 = vld [vmem:[#allocation8 + $0x220] sm:$0xf]
        %v2202 = vld [vmem:[#allocation8 + $0x224] sm:$0xf]
        %v2203 = vld [vmem:[#allocation8 + $0x228] sm:$0xf]
        %v2204 = vld [vmem:[#allocation8 + $0x22c] sm:$0xf]
        %v2205 = vld [vmem:[#allocation8 + $0x230] sm:$0xf]
        %v2206 = vld [vmem:[#allocation8 + $0x234] sm:$0xf]
        %v2207 = vld [vmem:[#allocation8 + $0x238] sm:$0xf]
        %v2208 = vld [vmem:[#allocation8 + $0x23c] sm:$0xf]
        %v2225 = vunpack.c.l.b16 %v2193
        %v2226 = vunpack.c.l.b16 %v2194
        %v2227 = vunpack.c.l.b16 %v2195
        %v2228 = vunpack.c.l.b16 %v2196
        %v2229 = vunpack.c.l.b16 %v2197
        %v2230 = vunpack.c.l.b16 %v2198
        %v2231 = vunpack.c.l.b16 %v2199
        %v2232 = vunpack.c.l.b16 %v2200
        %v2233 = vunpack.c.l.b16 %v2201
        %v2234 = vunpack.c.l.b16 %v2202
        %v2235 = vunpack.c.l.b16 %v2203
        %v2236 = vunpack.c.l.b16 %v2204
        %v2237 = vunpack.c.l.b16 %v2205
        %v2238 = vunpack.c.l.b16 %v2206
        %v2239 = vunpack.c.l.b16 %v2207
        %v2240 = vunpack.c.l.b16 %v2208
        %v2241 = vpack.c.b16 %v2226, %v2225
        %v2242 = vpack.c.b16 %v2228, %v2227
        %v2243 = vpack.c.b16 %v2230, %v2229
        %v2244 = vpack.c.b16 %v2232, %v2231
        %v2245 = vpack.c.b16 %v2234, %v2233
        %v2246 = vpack.c.b16 %v2236, %v2235
        %v2247 = vpack.c.b16 %v2238, %v2237
        %v2248 = vpack.c.b16 %v2240, %v2239
        %2257 = vmatprep.subr.bf16.mxu0 0
        %2258 = vmatpush1.bf16.msra.mxu0 %v2248
        %2259 = vmatprep.subr.bf16.mxu0 0
        %2260 = vmatpush1.bf16.msra.mxu0 %v2247
        %2261 = vmatprep.subr.bf16.mxu0 0
        %2262 = vmatpush1.bf16.msra.mxu0 %v2246
        %2263 = vmatprep.subr.bf16.mxu0 0
        %2264 = vmatpush1.bf16.msra.mxu0 %v2245
        %2265 = vmatprep.subr.bf16.mxu0 0
        %2266 = vmatpush1.bf16.msra.mxu0 %v2244
        %2267 = vmatprep.subr.bf16.mxu0 0
        %2268 = vmatpush1.bf16.msra.mxu0 %v2243
        %2269 = vmatprep.subr.bf16.mxu0 0
        %2270 = vmatpush1.bf16.msra.mxu0 %v2242
        %2271 = vmatprep.subr.bf16.mxu0 0
        %2272 = vmatpush1.bf16.msra.mxu0 %v2241
        %2273 = vmatprep.subr.bf16.mxu0 0
        %2274 = vmatpush2.bf16.msra.mxu0 0
        %2275 = vmatprep.subr.bf16.mxu0 0
        %2276 = vmatpush2.bf16.msra.mxu0 0
        %2277 = vmatprep.subr.bf16.mxu0 0
        %2278 = vmatpush2.bf16.msra.mxu0 0
        %2279 = vmatprep.subr.bf16.mxu0 0
        %2280 = vmatpush2.bf16.msra.mxu0 0
        %2281 = vmatprep.subr.bf16.mxu0 0
        %2282 = vmatpush2.bf16.msra.mxu0 0
        %2283 = vmatprep.subr.bf16.mxu0 0
        %2284 = vmatpush2.bf16.msra.mxu0 0
        %2285 = vmatprep.subr.bf16.mxu0 0
        %2286 = vmatpush2.bf16.msra.mxu0 0
        %2287 = vmatprep.subr.bf16.mxu0 0
        %2288 = vmatpush2.bf16.msra.mxu0 0
        %2289 = vmatprep.mubr.bf16.mxu0 0
        %2290 = vmatmul.mubr.bf16.gmra.mxu0 %v2192
        %v2291 = vpop.f32.mrf.mxu0
        %v2292 = vadd.f32 0.0, %v2291
        %v2293 = vpop.f32.mrf.mxu0
        %v2294 = vpop.f32.mrf.mxu0
        %v2295 = vadd.f32 0.0, %v2294
        %v2296 = vpop.f32.mrf.mxu0
        %2297 = vdwg.mxu0
        %v2298 = vadd.f32 %v2132, %v2292
        %v2299 = vadd.f32 %v2133, %v2295
        %s2300 = scalar_lea.vmem %s5, 144
        %v2301 = vld [vmem:[%s2300] sm:$0xff]
        %v2302 = vld [vmem:[%s2300 + $0x8] sm:$0x1]
        %2303 = vset.pattern.permute.xlu0 0
        %2304 = vperm.xlu0 %2303, %v2301
        %v2305 = vpop.permute.xlu0 %2304
        %2306 = vset.pattern.permute.xlu0 0
        %2307 = vperm.xlu0 %2306, %v2302
        %v2308 = vpop.permute.xlu0 %2307
        %vm2309 = vcmp.eq.s32.totalorder %v809, %v2305
        %vm2310 = vcmp.eq.s32.totalorder %v809, %v2308
        %v2311 = vsel %vm2309, 1.0, 0.0
        %v2312 = vsel %vm2310, 1.0, 0.0
        %v2313 = vpack.c.bf16 %v2312, %v2311
        %v2315 = vsel %vm823, %v2313, 0
        %2317 = vmatprep.subr.bf16.mxu0 0
        %2318 = vmatpush1.bf16.msra.mxu0 0
        %2319 = vmatprep.subr.bf16.mxu0 0
        %2320 = vmatpush1.bf16.msra.mxu0 0
        %2321 = vmatprep.subr.bf16.mxu0 0
        %2322 = vmatpush1.bf16.msra.mxu0 0
        %2323 = vmatprep.subr.bf16.mxu0 0
        %2324 = vmatpush1.bf16.msra.mxu0 0
        %2325 = vmatprep.subr.bf16.mxu0 0
        %2326 = vmatpush1.bf16.msra.mxu0 %v807
        %2327 = vmatprep.subr.bf16.mxu0 0
        %2328 = vmatpush1.bf16.msra.mxu0 %v806
        %2329 = vmatprep.subr.bf16.mxu0 0
        %2330 = vmatpush1.bf16.msra.mxu0 %v805
        %2331 = vmatprep.subr.bf16.mxu0 0
        %2332 = vmatpush1.bf16.msra.mxu0 %v804
        %2333 = vmatprep.subr.bf16.mxu0 0
        %2334 = vmatpush2.bf16.msra.mxu0 0
        %2335 = vmatprep.subr.bf16.mxu0 0
        %2336 = vmatpush2.bf16.msra.mxu0 0
        %2337 = vmatprep.subr.bf16.mxu0 0
        %2338 = vmatpush2.bf16.msra.mxu0 0
        %2339 = vmatprep.subr.bf16.mxu0 0
        %2340 = vmatpush2.bf16.msra.mxu0 0
        %2341 = vmatprep.subr.bf16.mxu0 0
        %2342 = vmatpush2.bf16.msra.mxu0 0
        %2343 = vmatprep.subr.bf16.mxu0 0
        %2344 = vmatpush2.bf16.msra.mxu0 0
        %2345 = vmatprep.subr.bf16.mxu0 0
        %2346 = vmatpush2.bf16.msra.mxu0 0
        %2347 = vmatprep.subr.bf16.mxu0 0
        %2348 = vmatpush2.bf16.msra.mxu0 0
        %2349 = vmatprep.mubr.bf16.mxu0 0
        %2350 = vmatmul.mubr.bf16.gmra.mxu0 %v2315
        %v2351 = vpop.f32.mrf.mxu0
        %v2352 = vadd.f32 0.0, %v2351
        %v2353 = vpop.f32.mrf.mxu0
        %v2354 = vpop.f32.mrf.mxu0
        %v2355 = vadd.f32 0.0, %v2354
        %v2356 = vpop.f32.mrf.mxu0
        %2357 = vdwg.mxu0
        %v2358 = vpack.c.bf16 %v2355, %v2352
        %v2359 = vld [vmem:[#allocation8 + $0x240] sm:$0xf]
        %v2360 = vld [vmem:[#allocation8 + $0x244] sm:$0xf]
        %v2361 = vld [vmem:[#allocation8 + $0x248] sm:$0xf]
        %v2362 = vld [vmem:[#allocation8 + $0x24c] sm:$0xf]
        %v2363 = vld [vmem:[#allocation8 + $0x250] sm:$0xf]
        %v2364 = vld [vmem:[#allocation8 + $0x254] sm:$0xf]
        %v2365 = vld [vmem:[#allocation8 + $0x258] sm:$0xf]
        %v2366 = vld [vmem:[#allocation8 + $0x25c] sm:$0xf]
        %v2367 = vld [vmem:[#allocation8 + $0x260] sm:$0xf]
        %v2368 = vld [vmem:[#allocation8 + $0x264] sm:$0xf]
        %v2369 = vld [vmem:[#allocation8 + $0x268] sm:$0xf]
        %v2370 = vld [vmem:[#allocation8 + $0x26c] sm:$0xf]
        %v2371 = vld [vmem:[#allocation8 + $0x270] sm:$0xf]
        %v2372 = vld [vmem:[#allocation8 + $0x274] sm:$0xf]
        %v2373 = vld [vmem:[#allocation8 + $0x278] sm:$0xf]
        %v2374 = vld [vmem:[#allocation8 + $0x27c] sm:$0xf]
        %v2391 = vunpack.c.l.b16 %v2359
        %v2392 = vunpack.c.l.b16 %v2360
        %v2393 = vunpack.c.l.b16 %v2361
        %v2394 = vunpack.c.l.b16 %v2362
        %v2395 = vunpack.c.l.b16 %v2363
        %v2396 = vunpack.c.l.b16 %v2364
        %v2397 = vunpack.c.l.b16 %v2365
        %v2398 = vunpack.c.l.b16 %v2366
        %v2399 = vunpack.c.l.b16 %v2367
        %v2400 = vunpack.c.l.b16 %v2368
        %v2401 = vunpack.c.l.b16 %v2369
        %v2402 = vunpack.c.l.b16 %v2370
        %v2403 = vunpack.c.l.b16 %v2371
        %v2404 = vunpack.c.l.b16 %v2372
        %v2405 = vunpack.c.l.b16 %v2373
        %v2406 = vunpack.c.l.b16 %v2374
        %v2407 = vpack.c.b16 %v2392, %v2391
        %v2408 = vpack.c.b16 %v2394, %v2393
        %v2409 = vpack.c.b16 %v2396, %v2395
        %v2410 = vpack.c.b16 %v2398, %v2397
        %v2411 = vpack.c.b16 %v2400, %v2399
        %v2412 = vpack.c.b16 %v2402, %v2401
        %v2413 = vpack.c.b16 %v2404, %v2403
        %v2414 = vpack.c.b16 %v2406, %v2405
        %2423 = vmatprep.subr.bf16.mxu0 0
        %2424 = vmatpush1.bf16.msra.mxu0 %v2414
        %2425 = vmatprep.subr.bf16.mxu0 0
        %2426 = vmatpush1.bf16.msra.mxu0 %v2413
        %2427 = vmatprep.subr.bf16.mxu0 0
        %2428 = vmatpush1.bf16.msra.mxu0 %v2412
        %2429 = vmatprep.subr.bf16.mxu0 0
        %2430 = vmatpush1.bf16.msra.mxu0 %v2411
        %2431 = vmatprep.subr.bf16.mxu0 0
        %2432 = vmatpush1.bf16.msra.mxu0 %v2410
        %2433 = vmatprep.subr.bf16.mxu0 0
        %2434 = vmatpush1.bf16.msra.mxu0 %v2409
        %2435 = vmatprep.subr.bf16.mxu0 0
        %2436 = vmatpush1.bf16.msra.mxu0 %v2408
        %2437 = vmatprep.subr.bf16.mxu0 0
        %2438 = vmatpush1.bf16.msra.mxu0 %v2407
        %2439 = vmatprep.subr.bf16.mxu0 0
        %2440 = vmatpush2.bf16.msra.mxu0 0
        %2441 = vmatprep.subr.bf16.mxu0 0
        %2442 = vmatpush2.bf16.msra.mxu0 0
        %2443 = vmatprep.subr.bf16.mxu0 0
        %2444 = vmatpush2.bf16.msra.mxu0 0
        %2445 = vmatprep.subr.bf16.mxu0 0
        %2446 = vmatpush2.bf16.msra.mxu0 0
        %2447 = vmatprep.subr.bf16.mxu0 0
        %2448 = vmatpush2.bf16.msra.mxu0 0
        %2449 = vmatprep.subr.bf16.mxu0 0
        %2450 = vmatpush2.bf16.msra.mxu0 0
        %2451 = vmatprep.subr.bf16.mxu0 0
        %2452 = vmatpush2.bf16.msra.mxu0 0
        %2453 = vmatprep.subr.bf16.mxu0 0
        %2454 = vmatpush2.bf16.msra.mxu0 0
        %2455 = vmatprep.mubr.bf16.mxu0 0
        %2456 = vmatmul.mubr.bf16.gmra.mxu0 %v2358
        %v2457 = vpop.f32.mrf.mxu0
        %v2458 = vadd.f32 0.0, %v2457
        %v2459 = vpop.f32.mrf.mxu0
        %v2460 = vpop.f32.mrf.mxu0
        %v2461 = vadd.f32 0.0, %v2460
        %v2462 = vpop.f32.mrf.mxu0
        %2463 = vdwg.mxu0
        %v2464 = vadd.f32 %v2298, %v2458
        %v2465 = vadd.f32 %v2299, %v2461
        %s2466 = scalar_lea.vmem %s5, 160
        %v2467 = vld [vmem:[%s2466] sm:$0xff]
        %v2468 = vld [vmem:[%s2466 + $0x8] sm:$0x1]
        %2469 = vset.pattern.permute.xlu0 0
        %2470 = vperm.xlu0 %2469, %v2467
        %v2471 = vpop.permute.xlu0 %2470
        %2472 = vset.pattern.permute.xlu0 0
        %2473 = vperm.xlu0 %2472, %v2468
        %v2474 = vpop.permute.xlu0 %2473
        %vm2475 = vcmp.eq.s32.totalorder %v809, %v2471
        %vm2476 = vcmp.eq.s32.totalorder %v809, %v2474
        %v2477 = vsel %vm2475, 1.0, 0.0
        %v2478 = vsel %vm2476, 1.0, 0.0
        %v2479 = vpack.c.bf16 %v2478, %v2477
        %v2481 = vsel %vm823, %v2479, 0
        %2483 = vmatprep.subr.bf16.mxu0 0
        %2484 = vmatpush1.bf16.msra.mxu0 0
        %2485 = vmatprep.subr.bf16.mxu0 0
        %2486 = vmatpush1.bf16.msra.mxu0 0
        %2487 = vmatprep.subr.bf16.mxu0 0
        %2488 = vmatpush1.bf16.msra.mxu0 0
        %2489 = vmatprep.subr.bf16.mxu0 0
        %2490 = vmatpush1.bf16.msra.mxu0 0
        %2491 = vmatprep.subr.bf16.mxu0 0
        %2492 = vmatpush1.bf16.msra.mxu0 %v807
        %2493 = vmatprep.subr.bf16.mxu0 0
        %2494 = vmatpush1.bf16.msra.mxu0 %v806
        %2495 = vmatprep.subr.bf16.mxu0 0
        %2496 = vmatpush1.bf16.msra.mxu0 %v805
        %2497 = vmatprep.subr.bf16.mxu0 0
        %2498 = vmatpush1.bf16.msra.mxu0 %v804
        %2499 = vmatprep.subr.bf16.mxu0 0
        %2500 = vmatpush2.bf16.msra.mxu0 0
        %2501 = vmatprep.subr.bf16.mxu0 0
        %2502 = vmatpush2.bf16.msra.mxu0 0
        %2503 = vmatprep.subr.bf16.mxu0 0
        %2504 = vmatpush2.bf16.msra.mxu0 0
        %2505 = vmatprep.subr.bf16.mxu0 0
        %2506 = vmatpush2.bf16.msra.mxu0 0
        %2507 = vmatprep.subr.bf16.mxu0 0
        %2508 = vmatpush2.bf16.msra.mxu0 0
        %2509 = vmatprep.subr.bf16.mxu0 0
        %2510 = vmatpush2.bf16.msra.mxu0 0
        %2511 = vmatprep.subr.bf16.mxu0 0
        %2512 = vmatpush2.bf16.msra.mxu0 0
        %2513 = vmatprep.subr.bf16.mxu0 0
        %2514 = vmatpush2.bf16.msra.mxu0 0
        %2515 = vmatprep.mubr.bf16.mxu0 0
        %2516 = vmatmul.mubr.bf16.gmra.mxu0 %v2481
        %v2517 = vpop.f32.mrf.mxu0
        %v2518 = vadd.f32 0.0, %v2517
        %v2519 = vpop.f32.mrf.mxu0
        %v2520 = vpop.f32.mrf.mxu0
        %v2521 = vadd.f32 0.0, %v2520
        %v2522 = vpop.f32.mrf.mxu0
        %2523 = vdwg.mxu0
        %v2524 = vpack.c.bf16 %v2521, %v2518
        %v2525 = vld [vmem:[#allocation8 + $0x280] sm:$0xf]
        %v2526 = vld [vmem:[#allocation8 + $0x284] sm:$0xf]
        %v2527 = vld [vmem:[#allocation8 + $0x288] sm:$0xf]
        %v2528 = vld [vmem:[#allocation8 + $0x28c] sm:$0xf]
        %v2529 = vld [vmem:[#allocation8 + $0x290] sm:$0xf]
        %v2530 = vld [vmem:[#allocation8 + $0x294] sm:$0xf]
        %v2531 = vld [vmem:[#allocation8 + $0x298] sm:$0xf]
        %v2532 = vld [vmem:[#allocation8 + $0x29c] sm:$0xf]
        %v2533 = vld [vmem:[#allocation8 + $0x2a0] sm:$0xf]
        %v2534 = vld [vmem:[#allocation8 + $0x2a4] sm:$0xf]
        %v2535 = vld [vmem:[#allocation8 + $0x2a8] sm:$0xf]
        %v2536 = vld [vmem:[#allocation8 + $0x2ac] sm:$0xf]
        %v2537 = vld [vmem:[#allocation8 + $0x2b0] sm:$0xf]
        %v2538 = vld [vmem:[#allocation8 + $0x2b4] sm:$0xf]
        %v2539 = vld [vmem:[#allocation8 + $0x2b8] sm:$0xf]
        %v2540 = vld [vmem:[#allocation8 + $0x2bc] sm:$0xf]
        %v2557 = vunpack.c.l.b16 %v2525
        %v2558 = vunpack.c.l.b16 %v2526
        %v2559 = vunpack.c.l.b16 %v2527
        %v2560 = vunpack.c.l.b16 %v2528
        %v2561 = vunpack.c.l.b16 %v2529
        %v2562 = vunpack.c.l.b16 %v2530
        %v2563 = vunpack.c.l.b16 %v2531
        %v2564 = vunpack.c.l.b16 %v2532
        %v2565 = vunpack.c.l.b16 %v2533
        %v2566 = vunpack.c.l.b16 %v2534
        %v2567 = vunpack.c.l.b16 %v2535
        %v2568 = vunpack.c.l.b16 %v2536
        %v2569 = vunpack.c.l.b16 %v2537
        %v2570 = vunpack.c.l.b16 %v2538
        %v2571 = vunpack.c.l.b16 %v2539
        %v2572 = vunpack.c.l.b16 %v2540
        %v2573 = vpack.c.b16 %v2558, %v2557
        %v2574 = vpack.c.b16 %v2560, %v2559
        %v2575 = vpack.c.b16 %v2562, %v2561
        %v2576 = vpack.c.b16 %v2564, %v2563
        %v2577 = vpack.c.b16 %v2566, %v2565
        %v2578 = vpack.c.b16 %v2568, %v2567
        %v2579 = vpack.c.b16 %v2570, %v2569
        %v2580 = vpack.c.b16 %v2572, %v2571
        %2589 = vmatprep.subr.bf16.mxu0 0
        %2590 = vmatpush1.bf16.msra.mxu0 %v2580
        %2591 = vmatprep.subr.bf16.mxu0 0
        %2592 = vmatpush1.bf16.msra.mxu0 %v2579
        %2593 = vmatprep.subr.bf16.mxu0 0
        %2594 = vmatpush1.bf16.msra.mxu0 %v2578
        %2595 = vmatprep.subr.bf16.mxu0 0
        %2596 = vmatpush1.bf16.msra.mxu0 %v2577
        %2597 = vmatprep.subr.bf16.mxu0 0
        %2598 = vmatpush1.bf16.msra.mxu0 %v2576
        %2599 = vmatprep.subr.bf16.mxu0 0
        %2600 = vmatpush1.bf16.msra.mxu0 %v2575
        %2601 = vmatprep.subr.bf16.mxu0 0
        %2602 = vmatpush1.bf16.msra.mxu0 %v2574
        %2603 = vmatprep.subr.bf16.mxu0 0
        %2604 = vmatpush1.bf16.msra.mxu0 %v2573
        %2605 = vmatprep.subr.bf16.mxu0 0
        %2606 = vmatpush2.bf16.msra.mxu0 0
        %2607 = vmatprep.subr.bf16.mxu0 0
        %2608 = vmatpush2.bf16.msra.mxu0 0
        %2609 = vmatprep.subr.bf16.mxu0 0
        %2610 = vmatpush2.bf16.msra.mxu0 0
        %2611 = vmatprep.subr.bf16.mxu0 0
        %2612 = vmatpush2.bf16.msra.mxu0 0
        %2613 = vmatprep.subr.bf16.mxu0 0
        %2614 = vmatpush2.bf16.msra.mxu0 0
        %2615 = vmatprep.subr.bf16.mxu0 0
        %2616 = vmatpush2.bf16.msra.mxu0 0
        %2617 = vmatprep.subr.bf16.mxu0 0
        %2618 = vmatpush2.bf16.msra.mxu0 0
        %2619 = vmatprep.subr.bf16.mxu0 0
        %2620 = vmatpush2.bf16.msra.mxu0 0
        %2621 = vmatprep.mubr.bf16.mxu0 0
        %2622 = vmatmul.mubr.bf16.gmra.mxu0 %v2524
        %v2623 = vpop.f32.mrf.mxu0
        %v2624 = vadd.f32 0.0, %v2623
        %v2625 = vpop.f32.mrf.mxu0
        %v2626 = vpop.f32.mrf.mxu0
        %v2627 = vadd.f32 0.0, %v2626
        %v2628 = vpop.f32.mrf.mxu0
        %2629 = vdwg.mxu0
        %v2630 = vadd.f32 %v2464, %v2624
        %v2631 = vadd.f32 %v2465, %v2627
        %s2632 = scalar_lea.vmem %s5, 176
        %v2633 = vld [vmem:[%s2632] sm:$0xff]
        %v2634 = vld [vmem:[%s2632 + $0x8] sm:$0x1]
        %2635 = vset.pattern.permute.xlu0 0
        %2636 = vperm.xlu0 %2635, %v2633
        %v2637 = vpop.permute.xlu0 %2636
        %2638 = vset.pattern.permute.xlu0 0
        %2639 = vperm.xlu0 %2638, %v2634
        %v2640 = vpop.permute.xlu0 %2639
        %vm2641 = vcmp.eq.s32.totalorder %v809, %v2637
        %vm2642 = vcmp.eq.s32.totalorder %v809, %v2640
        %v2643 = vsel %vm2641, 1.0, 0.0
        %v2644 = vsel %vm2642, 1.0, 0.0
        %v2645 = vpack.c.bf16 %v2644, %v2643
        %v2647 = vsel %vm823, %v2645, 0
        %2649 = vmatprep.subr.bf16.mxu0 0
        %2650 = vmatpush1.bf16.msra.mxu0 0
        %2651 = vmatprep.subr.bf16.mxu0 0
        %2652 = vmatpush1.bf16.msra.mxu0 0
        %2653 = vmatprep.subr.bf16.mxu0 0
        %2654 = vmatpush1.bf16.msra.mxu0 0
        %2655 = vmatprep.subr.bf16.mxu0 0
        %2656 = vmatpush1.bf16.msra.mxu0 0
        %2657 = vmatprep.subr.bf16.mxu0 0
        %2658 = vmatpush1.bf16.msra.mxu0 %v807
        %2659 = vmatprep.subr.bf16.mxu0 0
        %2660 = vmatpush1.bf16.msra.mxu0 %v806
        %2661 = vmatprep.subr.bf16.mxu0 0
        %2662 = vmatpush1.bf16.msra.mxu0 %v805
        %2663 = vmatprep.subr.bf16.mxu0 0
        %2664 = vmatpush1.bf16.msra.mxu0 %v804
        %2665 = vmatprep.subr.bf16.mxu0 0
        %2666 = vmatpush2.bf16.msra.mxu0 0
        %2667 = vmatprep.subr.bf16.mxu0 0
        %2668 = vmatpush2.bf16.msra.mxu0 0
        %2669 = vmatprep.subr.bf16.mxu0 0
        %2670 = vmatpush2.bf16.msra.mxu0 0
        %2671 = vmatprep.subr.bf16.mxu0 0
        %2672 = vmatpush2.bf16.msra.mxu0 0
        %2673 = vmatprep.subr.bf16.mxu0 0
        %2674 = vmatpush2.bf16.msra.mxu0 0
        %2675 = vmatprep.subr.bf16.mxu0 0
        %2676 = vmatpush2.bf16.msra.mxu0 0
        %2677 = vmatprep.subr.bf16.mxu0 0
        %2678 = vmatpush2.bf16.msra.mxu0 0
        %2679 = vmatprep.subr.bf16.mxu0 0
        %2680 = vmatpush2.bf16.msra.mxu0 0
        %2681 = vmatprep.mubr.bf16.mxu0 0
        %2682 = vmatmul.mubr.bf16.gmra.mxu0 %v2647
        %v2683 = vpop.f32.mrf.mxu0
        %v2684 = vadd.f32 0.0, %v2683
        %v2685 = vpop.f32.mrf.mxu0
        %v2686 = vpop.f32.mrf.mxu0
        %v2687 = vadd.f32 0.0, %v2686
        %v2688 = vpop.f32.mrf.mxu0
        %2689 = vdwg.mxu0
        %v2690 = vpack.c.bf16 %v2687, %v2684
        %v2691 = vld [vmem:[#allocation8 + $0x2c0] sm:$0xf]
        %v2692 = vld [vmem:[#allocation8 + $0x2c4] sm:$0xf]
        %v2693 = vld [vmem:[#allocation8 + $0x2c8] sm:$0xf]
        %v2694 = vld [vmem:[#allocation8 + $0x2cc] sm:$0xf]
        %v2695 = vld [vmem:[#allocation8 + $0x2d0] sm:$0xf]
        %v2696 = vld [vmem:[#allocation8 + $0x2d4] sm:$0xf]
        %v2697 = vld [vmem:[#allocation8 + $0x2d8] sm:$0xf]
        %v2698 = vld [vmem:[#allocation8 + $0x2dc] sm:$0xf]
        %v2699 = vld [vmem:[#allocation8 + $0x2e0] sm:$0xf]
        %v2700 = vld [vmem:[#allocation8 + $0x2e4] sm:$0xf]
        %v2701 = vld [vmem:[#allocation8 + $0x2e8] sm:$0xf]
        %v2702 = vld [vmem:[#allocation8 + $0x2ec] sm:$0xf]
        %v2703 = vld [vmem:[#allocation8 + $0x2f0] sm:$0xf]
        %v2704 = vld [vmem:[#allocation8 + $0x2f4] sm:$0xf]
        %v2705 = vld [vmem:[#allocation8 + $0x2f8] sm:$0xf]
        %v2706 = vld [vmem:[#allocation8 + $0x2fc] sm:$0xf]
        %v2723 = vunpack.c.l.b16 %v2691
        %v2724 = vunpack.c.l.b16 %v2692
        %v2725 = vunpack.c.l.b16 %v2693
        %v2726 = vunpack.c.l.b16 %v2694
        %v2727 = vunpack.c.l.b16 %v2695
        %v2728 = vunpack.c.l.b16 %v2696
        %v2729 = vunpack.c.l.b16 %v2697
        %v2730 = vunpack.c.l.b16 %v2698
        %v2731 = vunpack.c.l.b16 %v2699
        %v2732 = vunpack.c.l.b16 %v2700
        %v2733 = vunpack.c.l.b16 %v2701
        %v2734 = vunpack.c.l.b16 %v2702
        %v2735 = vunpack.c.l.b16 %v2703
        %v2736 = vunpack.c.l.b16 %v2704
        %v2737 = vunpack.c.l.b16 %v2705
        %v2738 = vunpack.c.l.b16 %v2706
        %v2739 = vpack.c.b16 %v2724, %v2723
        %v2740 = vpack.c.b16 %v2726, %v2725
        %v2741 = vpack.c.b16 %v2728, %v2727
        %v2742 = vpack.c.b16 %v2730, %v2729
        %v2743 = vpack.c.b16 %v2732, %v2731
        %v2744 = vpack.c.b16 %v2734, %v2733
        %v2745 = vpack.c.b16 %v2736, %v2735
        %v2746 = vpack.c.b16 %v2738, %v2737
        %2755 = vmatprep.subr.bf16.mxu0 0
        %2756 = vmatpush1.bf16.msra.mxu0 %v2746
        %2757 = vmatprep.subr.bf16.mxu0 0
        %2758 = vmatpush1.bf16.msra.mxu0 %v2745
        %2759 = vmatprep.subr.bf16.mxu0 0
        %2760 = vmatpush1.bf16.msra.mxu0 %v2744
        %2761 = vmatprep.subr.bf16.mxu0 0
        %2762 = vmatpush1.bf16.msra.mxu0 %v2743
        %2763 = vmatprep.subr.bf16.mxu0 0
        %2764 = vmatpush1.bf16.msra.mxu0 %v2742
        %2765 = vmatprep.subr.bf16.mxu0 0
        %2766 = vmatpush1.bf16.msra.mxu0 %v2741
        %2767 = vmatprep.subr.bf16.mxu0 0
        %2768 = vmatpush1.bf16.msra.mxu0 %v2740
        %2769 = vmatprep.subr.bf16.mxu0 0
        %2770 = vmatpush1.bf16.msra.mxu0 %v2739
        %2771 = vmatprep.subr.bf16.mxu0 0
        %2772 = vmatpush2.bf16.msra.mxu0 0
        %2773 = vmatprep.subr.bf16.mxu0 0
        %2774 = vmatpush2.bf16.msra.mxu0 0
        %2775 = vmatprep.subr.bf16.mxu0 0
        %2776 = vmatpush2.bf16.msra.mxu0 0
        %2777 = vmatprep.subr.bf16.mxu0 0
        %2778 = vmatpush2.bf16.msra.mxu0 0
        %2779 = vmatprep.subr.bf16.mxu0 0
        %2780 = vmatpush2.bf16.msra.mxu0 0
        %2781 = vmatprep.subr.bf16.mxu0 0
        %2782 = vmatpush2.bf16.msra.mxu0 0
        %2783 = vmatprep.subr.bf16.mxu0 0
        %2784 = vmatpush2.bf16.msra.mxu0 0
        %2785 = vmatprep.subr.bf16.mxu0 0
        %2786 = vmatpush2.bf16.msra.mxu0 0
        %2787 = vmatprep.mubr.bf16.mxu0 0
        %2788 = vmatmul.mubr.bf16.gmra.mxu0 %v2690
        %v2789 = vpop.f32.mrf.mxu0
        %v2790 = vadd.f32 0.0, %v2789
        %v2791 = vpop.f32.mrf.mxu0
        %v2792 = vpop.f32.mrf.mxu0
        %v2793 = vadd.f32 0.0, %v2792
        %v2794 = vpop.f32.mrf.mxu0
        %2795 = vdwg.mxu0
        %v2796 = vadd.f32 %v2630, %v2790
        %v2797 = vadd.f32 %v2631, %v2793
        %s2798 = scalar_lea.vmem %s5, 192
        %v2799 = vld [vmem:[%s2798] sm:$0xff]
        %v2800 = vld [vmem:[%s2798 + $0x8] sm:$0x1]
        %2801 = vset.pattern.permute.xlu0 0
        %2802 = vperm.xlu0 %2801, %v2799
        %v2803 = vpop.permute.xlu0 %2802
        %2804 = vset.pattern.permute.xlu0 0
        %2805 = vperm.xlu0 %2804, %v2800
        %v2806 = vpop.permute.xlu0 %2805
        %vm2807 = vcmp.eq.s32.totalorder %v809, %v2803
        %vm2808 = vcmp.eq.s32.totalorder %v809, %v2806
        %v2809 = vsel %vm2807, 1.0, 0.0
        %v2810 = vsel %vm2808, 1.0, 0.0
        %v2811 = vpack.c.bf16 %v2810, %v2809
        %v2813 = vsel %vm823, %v2811, 0
        %2815 = vmatprep.subr.bf16.mxu0 0
        %2816 = vmatpush1.bf16.msra.mxu0 0
        %2817 = vmatprep.subr.bf16.mxu0 0
        %2818 = vmatpush1.bf16.msra.mxu0 0
        %2819 = vmatprep.subr.bf16.mxu0 0
        %2820 = vmatpush1.bf16.msra.mxu0 0
        %2821 = vmatprep.subr.bf16.mxu0 0
        %2822 = vmatpush1.bf16.msra.mxu0 0
        %2823 = vmatprep.subr.bf16.mxu0 0
        %2824 = vmatpush1.bf16.msra.mxu0 %v807
        %2825 = vmatprep.subr.bf16.mxu0 0
        %2826 = vmatpush1.bf16.msra.mxu0 %v806
        %2827 = vmatprep.subr.bf16.mxu0 0
        %2828 = vmatpush1.bf16.msra.mxu0 %v805
        %2829 = vmatprep.subr.bf16.mxu0 0
        %2830 = vmatpush1.bf16.msra.mxu0 %v804
        %2831 = vmatprep.subr.bf16.mxu0 0
        %2832 = vmatpush2.bf16.msra.mxu0 0
        %2833 = vmatprep.subr.bf16.mxu0 0
        %2834 = vmatpush2.bf16.msra.mxu0 0
        %2835 = vmatprep.subr.bf16.mxu0 0
        %2836 = vmatpush2.bf16.msra.mxu0 0
        %2837 = vmatprep.subr.bf16.mxu0 0
        %2838 = vmatpush2.bf16.msra.mxu0 0
        %2839 = vmatprep.subr.bf16.mxu0 0
        %2840 = vmatpush2.bf16.msra.mxu0 0
        %2841 = vmatprep.subr.bf16.mxu0 0
        %2842 = vmatpush2.bf16.msra.mxu0 0
        %2843 = vmatprep.subr.bf16.mxu0 0
        %2844 = vmatpush2.bf16.msra.mxu0 0
        %2845 = vmatprep.subr.bf16.mxu0 0
        %2846 = vmatpush2.bf16.msra.mxu0 0
        %2847 = vmatprep.mubr.bf16.mxu0 0
        %2848 = vmatmul.mubr.bf16.gmra.mxu0 %v2813
        %v2849 = vpop.f32.mrf.mxu0
        %v2850 = vadd.f32 0.0, %v2849
        %v2851 = vpop.f32.mrf.mxu0
        %v2852 = vpop.f32.mrf.mxu0
        %v2853 = vadd.f32 0.0, %v2852
        %v2854 = vpop.f32.mrf.mxu0
        %2855 = vdwg.mxu0
        %v2856 = vpack.c.bf16 %v2853, %v2850
        %v2857 = vld [vmem:[#allocation8 + $0x300] sm:$0xf]
        %v2858 = vld [vmem:[#allocation8 + $0x304] sm:$0xf]
        %v2859 = vld [vmem:[#allocation8 + $0x308] sm:$0xf]
        %v2860 = vld [vmem:[#allocation8 + $0x30c] sm:$0xf]
        %v2861 = vld [vmem:[#allocation8 + $0x310] sm:$0xf]
        %v2862 = vld [vmem:[#allocation8 + $0x314] sm:$0xf]
        %v2863 = vld [vmem:[#allocation8 + $0x318] sm:$0xf]
        %v2864 = vld [vmem:[#allocation8 + $0x31c] sm:$0xf]
        %v2865 = vld [vmem:[#allocation8 + $0x320] sm:$0xf]
        %v2866 = vld [vmem:[#allocation8 + $0x324] sm:$0xf]
        %v2867 = vld [vmem:[#allocation8 + $0x328] sm:$0xf]
        %v2868 = vld [vmem:[#allocation8 + $0x32c] sm:$0xf]
        %v2869 = vld [vmem:[#allocation8 + $0x330] sm:$0xf]
        %v2870 = vld [vmem:[#allocation8 + $0x334] sm:$0xf]
        %v2871 = vld [vmem:[#allocation8 + $0x338] sm:$0xf]
        %v2872 = vld [vmem:[#allocation8 + $0x33c] sm:$0xf]
        %v2889 = vunpack.c.l.b16 %v2857
        %v2890 = vunpack.c.l.b16 %v2858
        %v2891 = vunpack.c.l.b16 %v2859
        %v2892 = vunpack.c.l.b16 %v2860
        %v2893 = vunpack.c.l.b16 %v2861
        %v2894 = vunpack.c.l.b16 %v2862
        %v2895 = vunpack.c.l.b16 %v2863
        %v2896 = vunpack.c.l.b16 %v2864
        %v2897 = vunpack.c.l.b16 %v2865
        %v2898 = vunpack.c.l.b16 %v2866
        %v2899 = vunpack.c.l.b16 %v2867
        %v2900 = vunpack.c.l.b16 %v2868
        %v2901 = vunpack.c.l.b16 %v2869
        %v2902 = vunpack.c.l.b16 %v2870
        %v2903 = vunpack.c.l.b16 %v2871
        %v2904 = vunpack.c.l.b16 %v2872
        %v2905 = vpack.c.b16 %v2890, %v2889
        %v2906 = vpack.c.b16 %v2892, %v2891
        %v2907 = vpack.c.b16 %v2894, %v2893
        %v2908 = vpack.c.b16 %v2896, %v2895
        %v2909 = vpack.c.b16 %v2898, %v2897
        %v2910 = vpack.c.b16 %v2900, %v2899
        %v2911 = vpack.c.b16 %v2902, %v2901
        %v2912 = vpack.c.b16 %v2904, %v2903
        %2921 = vmatprep.subr.bf16.mxu0 0
        %2922 = vmatpush1.bf16.msra.mxu0 %v2912
        %2923 = vmatprep.subr.bf16.mxu0 0
        %2924 = vmatpush1.bf16.msra.mxu0 %v2911
        %2925 = vmatprep.subr.bf16.mxu0 0
        %2926 = vmatpush1.bf16.msra.mxu0 %v2910
        %2927 = vmatprep.subr.bf16.mxu0 0
        %2928 = vmatpush1.bf16.msra.mxu0 %v2909
        %2929 = vmatprep.subr.bf16.mxu0 0
        %2930 = vmatpush1.bf16.msra.mxu0 %v2908
        %2931 = vmatprep.subr.bf16.mxu0 0
        %2932 = vmatpush1.bf16.msra.mxu0 %v2907
        %2933 = vmatprep.subr.bf16.mxu0 0
        %2934 = vmatpush1.bf16.msra.mxu0 %v2906
        %2935 = vmatprep.subr.bf16.mxu0 0
        %2936 = vmatpush1.bf16.msra.mxu0 %v2905
        %2937 = vmatprep.subr.bf16.mxu0 0
        %2938 = vmatpush2.bf16.msra.mxu0 0
        %2939 = vmatprep.subr.bf16.mxu0 0
        %2940 = vmatpush2.bf16.msra.mxu0 0
        %2941 = vmatprep.subr.bf16.mxu0 0
        %2942 = vmatpush2.bf16.msra.mxu0 0
        %2943 = vmatprep.subr.bf16.mxu0 0
        %2944 = vmatpush2.bf16.msra.mxu0 0
        %2945 = vmatprep.subr.bf16.mxu0 0
        %2946 = vmatpush2.bf16.msra.mxu0 0
        %2947 = vmatprep.subr.bf16.mxu0 0
        %2948 = vmatpush2.bf16.msra.mxu0 0
        %2949 = vmatprep.subr.bf16.mxu0 0
        %2950 = vmatpush2.bf16.msra.mxu0 0
        %2951 = vmatprep.subr.bf16.mxu0 0
        %2952 = vmatpush2.bf16.msra.mxu0 0
        %2953 = vmatprep.mubr.bf16.mxu0 0
        %2954 = vmatmul.mubr.bf16.gmra.mxu0 %v2856
        %v2955 = vpop.f32.mrf.mxu0
        %v2956 = vadd.f32 0.0, %v2955
        %v2957 = vpop.f32.mrf.mxu0
        %v2958 = vpop.f32.mrf.mxu0
        %v2959 = vadd.f32 0.0, %v2958
        %v2960 = vpop.f32.mrf.mxu0
        %2961 = vdwg.mxu0
        %v2962 = vadd.f32 %v2796, %v2956
        %v2963 = vadd.f32 %v2797, %v2959
        %s2964 = scalar_lea.vmem %s5, 208
        %v2965 = vld [vmem:[%s2964] sm:$0xff]
        %v2966 = vld [vmem:[%s2964 + $0x8] sm:$0x1]
        %2967 = vset.pattern.permute.xlu0 0
        %2968 = vperm.xlu0 %2967, %v2965
        %v2969 = vpop.permute.xlu0 %2968
        %2970 = vset.pattern.permute.xlu0 0
        %2971 = vperm.xlu0 %2970, %v2966
        %v2972 = vpop.permute.xlu0 %2971
        %vm2973 = vcmp.eq.s32.totalorder %v809, %v2969
        %vm2974 = vcmp.eq.s32.totalorder %v809, %v2972
        %v2975 = vsel %vm2973, 1.0, 0.0
        %v2976 = vsel %vm2974, 1.0, 0.0
        %v2977 = vpack.c.bf16 %v2976, %v2975
        %v2979 = vsel %vm823, %v2977, 0
        %2981 = vmatprep.subr.bf16.mxu0 0
        %2982 = vmatpush1.bf16.msra.mxu0 0
        %2983 = vmatprep.subr.bf16.mxu0 0
        %2984 = vmatpush1.bf16.msra.mxu0 0
        %2985 = vmatprep.subr.bf16.mxu0 0
        %2986 = vmatpush1.bf16.msra.mxu0 0
        %2987 = vmatprep.subr.bf16.mxu0 0
        %2988 = vmatpush1.bf16.msra.mxu0 0
        %2989 = vmatprep.subr.bf16.mxu0 0
        %2990 = vmatpush1.bf16.msra.mxu0 %v807
        %2991 = vmatprep.subr.bf16.mxu0 0
        %2992 = vmatpush1.bf16.msra.mxu0 %v806
        %2993 = vmatprep.subr.bf16.mxu0 0
        %2994 = vmatpush1.bf16.msra.mxu0 %v805
        %2995 = vmatprep.subr.bf16.mxu0 0
        %2996 = vmatpush1.bf16.msra.mxu0 %v804
        %2997 = vmatprep.subr.bf16.mxu0 0
        %2998 = vmatpush2.bf16.msra.mxu0 0
        %2999 = vmatprep.subr.bf16.mxu0 0
        %3000 = vmatpush2.bf16.msra.mxu0 0
        %3001 = vmatprep.subr.bf16.mxu0 0
        %3002 = vmatpush2.bf16.msra.mxu0 0
        %3003 = vmatprep.subr.bf16.mxu0 0
        %3004 = vmatpush2.bf16.msra.mxu0 0
        %3005 = vmatprep.subr.bf16.mxu0 0
        %3006 = vmatpush2.bf16.msra.mxu0 0
        %3007 = vmatprep.subr.bf16.mxu0 0
        %3008 = vmatpush2.bf16.msra.mxu0 0
        %3009 = vmatprep.subr.bf16.mxu0 0
        %3010 = vmatpush2.bf16.msra.mxu0 0
        %3011 = vmatprep.subr.bf16.mxu0 0
        %3012 = vmatpush2.bf16.msra.mxu0 0
        %3013 = vmatprep.mubr.bf16.mxu0 0
        %3014 = vmatmul.mubr.bf16.gmra.mxu0 %v2979
        %v3015 = vpop.f32.mrf.mxu0
        %v3016 = vadd.f32 0.0, %v3015
        %v3017 = vpop.f32.mrf.mxu0
        %v3018 = vpop.f32.mrf.mxu0
        %v3019 = vadd.f32 0.0, %v3018
        %v3020 = vpop.f32.mrf.mxu0
        %3021 = vdwg.mxu0
        %v3022 = vpack.c.bf16 %v3019, %v3016
        %v3023 = vld [vmem:[#allocation8 + $0x340] sm:$0xf]
        %v3024 = vld [vmem:[#allocation8 + $0x344] sm:$0xf]
        %v3025 = vld [vmem:[#allocation8 + $0x348] sm:$0xf]
        %v3026 = vld [vmem:[#allocation8 + $0x34c] sm:$0xf]
        %v3027 = vld [vmem:[#allocation8 + $0x350] sm:$0xf]
        %v3028 = vld [vmem:[#allocation8 + $0x354] sm:$0xf]
        %v3029 = vld [vmem:[#allocation8 + $0x358] sm:$0xf]
        %v3030 = vld [vmem:[#allocation8 + $0x35c] sm:$0xf]
        %v3031 = vld [vmem:[#allocation8 + $0x360] sm:$0xf]
        %v3032 = vld [vmem:[#allocation8 + $0x364] sm:$0xf]
        %v3033 = vld [vmem:[#allocation8 + $0x368] sm:$0xf]
        %v3034 = vld [vmem:[#allocation8 + $0x36c] sm:$0xf]
        %v3035 = vld [vmem:[#allocation8 + $0x370] sm:$0xf]
        %v3036 = vld [vmem:[#allocation8 + $0x374] sm:$0xf]
        %v3037 = vld [vmem:[#allocation8 + $0x378] sm:$0xf]
        %v3038 = vld [vmem:[#allocation8 + $0x37c] sm:$0xf]
        %v3055 = vunpack.c.l.b16 %v3023
        %v3056 = vunpack.c.l.b16 %v3024
        %v3057 = vunpack.c.l.b16 %v3025
        %v3058 = vunpack.c.l.b16 %v3026
        %v3059 = vunpack.c.l.b16 %v3027
        %v3060 = vunpack.c.l.b16 %v3028
        %v3061 = vunpack.c.l.b16 %v3029
        %v3062 = vunpack.c.l.b16 %v3030
        %v3063 = vunpack.c.l.b16 %v3031
        %v3064 = vunpack.c.l.b16 %v3032
        %v3065 = vunpack.c.l.b16 %v3033
        %v3066 = vunpack.c.l.b16 %v3034
        %v3067 = vunpack.c.l.b16 %v3035
        %v3068 = vunpack.c.l.b16 %v3036
        %v3069 = vunpack.c.l.b16 %v3037
        %v3070 = vunpack.c.l.b16 %v3038
        %v3071 = vpack.c.b16 %v3056, %v3055
        %v3072 = vpack.c.b16 %v3058, %v3057
        %v3073 = vpack.c.b16 %v3060, %v3059
        %v3074 = vpack.c.b16 %v3062, %v3061
        %v3075 = vpack.c.b16 %v3064, %v3063
        %v3076 = vpack.c.b16 %v3066, %v3065
        %v3077 = vpack.c.b16 %v3068, %v3067
        %v3078 = vpack.c.b16 %v3070, %v3069
        %3087 = vmatprep.subr.bf16.mxu0 0
        %3088 = vmatpush1.bf16.msra.mxu0 %v3078
        %3089 = vmatprep.subr.bf16.mxu0 0
        %3090 = vmatpush1.bf16.msra.mxu0 %v3077
        %3091 = vmatprep.subr.bf16.mxu0 0
        %3092 = vmatpush1.bf16.msra.mxu0 %v3076
        %3093 = vmatprep.subr.bf16.mxu0 0
        %3094 = vmatpush1.bf16.msra.mxu0 %v3075
        %3095 = vmatprep.subr.bf16.mxu0 0
        %3096 = vmatpush1.bf16.msra.mxu0 %v3074
        %3097 = vmatprep.subr.bf16.mxu0 0
        %3098 = vmatpush1.bf16.msra.mxu0 %v3073
        %3099 = vmatprep.subr.bf16.mxu0 0
        %3100 = vmatpush1.bf16.msra.mxu0 %v3072
        %3101 = vmatprep.subr.bf16.mxu0 0
        %3102 = vmatpush1.bf16.msra.mxu0 %v3071
        %3103 = vmatprep.subr.bf16.mxu0 0
        %3104 = vmatpush2.bf16.msra.mxu0 0
        %3105 = vmatprep.subr.bf16.mxu0 0
        %3106 = vmatpush2.bf16.msra.mxu0 0
        %3107 = vmatprep.subr.bf16.mxu0 0
        %3108 = vmatpush2.bf16.msra.mxu0 0
        %3109 = vmatprep.subr.bf16.mxu0 0
        %3110 = vmatpush2.bf16.msra.mxu0 0
        %3111 = vmatprep.subr.bf16.mxu0 0
        %3112 = vmatpush2.bf16.msra.mxu0 0
        %3113 = vmatprep.subr.bf16.mxu0 0
        %3114 = vmatpush2.bf16.msra.mxu0 0
        %3115 = vmatprep.subr.bf16.mxu0 0
        %3116 = vmatpush2.bf16.msra.mxu0 0
        %3117 = vmatprep.subr.bf16.mxu0 0
        %3118 = vmatpush2.bf16.msra.mxu0 0
        %3119 = vmatprep.mubr.bf16.mxu0 0
        %3120 = vmatmul.mubr.bf16.gmra.mxu0 %v3022
        %v3121 = vpop.f32.mrf.mxu0
        %v3122 = vadd.f32 0.0, %v3121
        %v3123 = vpop.f32.mrf.mxu0
        %v3124 = vpop.f32.mrf.mxu0
        %v3125 = vadd.f32 0.0, %v3124
        %v3126 = vpop.f32.mrf.mxu0
        %3127 = vdwg.mxu0
        %v3128 = vadd.f32 %v2962, %v3122
        %v3129 = vadd.f32 %v2963, %v3125
        %s3130 = scalar_lea.vmem %s5, 224
        %v3131 = vld [vmem:[%s3130] sm:$0xff]
        %v3132 = vld [vmem:[%s3130 + $0x8] sm:$0x1]
        %3133 = vset.pattern.permute.xlu0 0
        %3134 = vperm.xlu0 %3133, %v3131
        %v3135 = vpop.permute.xlu0 %3134
        %3136 = vset.pattern.permute.xlu0 0
        %3137 = vperm.xlu0 %3136, %v3132
        %v3138 = vpop.permute.xlu0 %3137
        %vm3139 = vcmp.eq.s32.totalorder %v809, %v3135
        %vm3140 = vcmp.eq.s32.totalorder %v809, %v3138
        %v3141 = vsel %vm3139, 1.0, 0.0
        %v3142 = vsel %vm3140, 1.0, 0.0
        %v3143 = vpack.c.bf16 %v3142, %v3141
        %v3145 = vsel %vm823, %v3143, 0
        %3147 = vmatprep.subr.bf16.mxu0 0
        %3148 = vmatpush1.bf16.msra.mxu0 0
        %3149 = vmatprep.subr.bf16.mxu0 0
        %3150 = vmatpush1.bf16.msra.mxu0 0
        %3151 = vmatprep.subr.bf16.mxu0 0
        %3152 = vmatpush1.bf16.msra.mxu0 0
        %3153 = vmatprep.subr.bf16.mxu0 0
        %3154 = vmatpush1.bf16.msra.mxu0 0
        %3155 = vmatprep.subr.bf16.mxu0 0
        %3156 = vmatpush1.bf16.msra.mxu0 %v807
        %3157 = vmatprep.subr.bf16.mxu0 0
        %3158 = vmatpush1.bf16.msra.mxu0 %v806
        %3159 = vmatprep.subr.bf16.mxu0 0
        %3160 = vmatpush1.bf16.msra.mxu0 %v805
        %3161 = vmatprep.subr.bf16.mxu0 0
        %3162 = vmatpush1.bf16.msra.mxu0 %v804
        %3163 = vmatprep.subr.bf16.mxu0 0
        %3164 = vmatpush2.bf16.msra.mxu0 0
        %3165 = vmatprep.subr.bf16.mxu0 0
        %3166 = vmatpush2.bf16.msra.mxu0 0
        %3167 = vmatprep.subr.bf16.mxu0 0
        %3168 = vmatpush2.bf16.msra.mxu0 0
        %3169 = vmatprep.subr.bf16.mxu0 0
        %3170 = vmatpush2.bf16.msra.mxu0 0
        %3171 = vmatprep.subr.bf16.mxu0 0
        %3172 = vmatpush2.bf16.msra.mxu0 0
        %3173 = vmatprep.subr.bf16.mxu0 0
        %3174 = vmatpush2.bf16.msra.mxu0 0
        %3175 = vmatprep.subr.bf16.mxu0 0
        %3176 = vmatpush2.bf16.msra.mxu0 0
        %3177 = vmatprep.subr.bf16.mxu0 0
        %3178 = vmatpush2.bf16.msra.mxu0 0
        %3179 = vmatprep.mubr.bf16.mxu0 0
        %3180 = vmatmul.mubr.bf16.gmra.mxu0 %v3145
        %v3181 = vpop.f32.mrf.mxu0
        %v3182 = vadd.f32 0.0, %v3181
        %v3183 = vpop.f32.mrf.mxu0
        %v3184 = vpop.f32.mrf.mxu0
        %v3185 = vadd.f32 0.0, %v3184
        %v3186 = vpop.f32.mrf.mxu0
        %3187 = vdwg.mxu0
        %v3188 = vpack.c.bf16 %v3185, %v3182
        %v3189 = vld [vmem:[#allocation8 + $0x380] sm:$0xf]
        %v3190 = vld [vmem:[#allocation8 + $0x384] sm:$0xf]
        %v3191 = vld [vmem:[#allocation8 + $0x388] sm:$0xf]
        %v3192 = vld [vmem:[#allocation8 + $0x38c] sm:$0xf]
        %v3193 = vld [vmem:[#allocation8 + $0x390] sm:$0xf]
        %v3194 = vld [vmem:[#allocation8 + $0x394] sm:$0xf]
        %v3195 = vld [vmem:[#allocation8 + $0x398] sm:$0xf]
        %v3196 = vld [vmem:[#allocation8 + $0x39c] sm:$0xf]
        %v3197 = vld [vmem:[#allocation8 + $0x3a0] sm:$0xf]
        %v3198 = vld [vmem:[#allocation8 + $0x3a4] sm:$0xf]
        %v3199 = vld [vmem:[#allocation8 + $0x3a8] sm:$0xf]
        %v3200 = vld [vmem:[#allocation8 + $0x3ac] sm:$0xf]
        %v3201 = vld [vmem:[#allocation8 + $0x3b0] sm:$0xf]
        %v3202 = vld [vmem:[#allocation8 + $0x3b4] sm:$0xf]
        %v3203 = vld [vmem:[#allocation8 + $0x3b8] sm:$0xf]
        %v3204 = vld [vmem:[#allocation8 + $0x3bc] sm:$0xf]
        %v3221 = vunpack.c.l.b16 %v3189
        %v3222 = vunpack.c.l.b16 %v3190
        %v3223 = vunpack.c.l.b16 %v3191
        %v3224 = vunpack.c.l.b16 %v3192
        %v3225 = vunpack.c.l.b16 %v3193
        %v3226 = vunpack.c.l.b16 %v3194
        %v3227 = vunpack.c.l.b16 %v3195
        %v3228 = vunpack.c.l.b16 %v3196
        %v3229 = vunpack.c.l.b16 %v3197
        %v3230 = vunpack.c.l.b16 %v3198
        %v3231 = vunpack.c.l.b16 %v3199
        %v3232 = vunpack.c.l.b16 %v3200
        %v3233 = vunpack.c.l.b16 %v3201
        %v3234 = vunpack.c.l.b16 %v3202
        %v3235 = vunpack.c.l.b16 %v3203
        %v3236 = vunpack.c.l.b16 %v3204
        %v3237 = vpack.c.b16 %v3222, %v3221
        %v3238 = vpack.c.b16 %v3224, %v3223
        %v3239 = vpack.c.b16 %v3226, %v3225
        %v3240 = vpack.c.b16 %v3228, %v3227
        %v3241 = vpack.c.b16 %v3230, %v3229
        %v3242 = vpack.c.b16 %v3232, %v3231
        %v3243 = vpack.c.b16 %v3234, %v3233
        %v3244 = vpack.c.b16 %v3236, %v3235
        %3253 = vmatprep.subr.bf16.mxu0 0
        %3254 = vmatpush1.bf16.msra.mxu0 %v3244
        %3255 = vmatprep.subr.bf16.mxu0 0
        %3256 = vmatpush1.bf16.msra.mxu0 %v3243
        %3257 = vmatprep.subr.bf16.mxu0 0
        %3258 = vmatpush1.bf16.msra.mxu0 %v3242
        %3259 = vmatprep.subr.bf16.mxu0 0
        %3260 = vmatpush1.bf16.msra.mxu0 %v3241
        %3261 = vmatprep.subr.bf16.mxu0 0
        %3262 = vmatpush1.bf16.msra.mxu0 %v3240
        %3263 = vmatprep.subr.bf16.mxu0 0
        %3264 = vmatpush1.bf16.msra.mxu0 %v3239
        %3265 = vmatprep.subr.bf16.mxu0 0
        %3266 = vmatpush1.bf16.msra.mxu0 %v3238
        %3267 = vmatprep.subr.bf16.mxu0 0
        %3268 = vmatpush1.bf16.msra.mxu0 %v3237
        %3269 = vmatprep.subr.bf16.mxu0 0
        %3270 = vmatpush2.bf16.msra.mxu0 0
        %3271 = vmatprep.subr.bf16.mxu0 0
        %3272 = vmatpush2.bf16.msra.mxu0 0
        %3273 = vmatprep.subr.bf16.mxu0 0
        %3274 = vmatpush2.bf16.msra.mxu0 0
        %3275 = vmatprep.subr.bf16.mxu0 0
        %3276 = vmatpush2.bf16.msra.mxu0 0
        %3277 = vmatprep.subr.bf16.mxu0 0
        %3278 = vmatpush2.bf16.msra.mxu0 0
        %3279 = vmatprep.subr.bf16.mxu0 0
        %3280 = vmatpush2.bf16.msra.mxu0 0
        %3281 = vmatprep.subr.bf16.mxu0 0
        %3282 = vmatpush2.bf16.msra.mxu0 0
        %3283 = vmatprep.subr.bf16.mxu0 0
        %3284 = vmatpush2.bf16.msra.mxu0 0
        %3285 = vmatprep.mubr.bf16.mxu0 0
        %3286 = vmatmul.mubr.bf16.gmra.mxu0 %v3188
        %v3287 = vpop.f32.mrf.mxu0
        %v3288 = vadd.f32 0.0, %v3287
        %v3289 = vpop.f32.mrf.mxu0
        %v3290 = vpop.f32.mrf.mxu0
        %v3291 = vadd.f32 0.0, %v3290
        %v3292 = vpop.f32.mrf.mxu0
        %3293 = vdwg.mxu0
        %v3294 = vadd.f32 %v3128, %v3288
        %v3295 = vadd.f32 %v3129, %v3291
        %s3296 = scalar_lea.vmem %s5, 240
        %v3297 = vld [vmem:[%s3296] sm:$0xff]
        %v3298 = vld [vmem:[%s3296 + $0x8] sm:$0x1]
        %3299 = vset.pattern.permute.xlu0 0
        %3300 = vperm.xlu0 %3299, %v3297
        %v3301 = vpop.permute.xlu0 %3300
        %3302 = vset.pattern.permute.xlu0 0
        %3303 = vperm.xlu0 %3302, %v3298
        %v3304 = vpop.permute.xlu0 %3303
        %vm3305 = vcmp.eq.s32.totalorder %v809, %v3301
        %vm3306 = vcmp.eq.s32.totalorder %v809, %v3304
        %v3307 = vsel %vm3305, 1.0, 0.0
        %v3308 = vsel %vm3306, 1.0, 0.0
        %v3309 = vpack.c.bf16 %v3308, %v3307
        %v3311 = vsel %vm823, %v3309, 0
        %3313 = vmatprep.subr.bf16.mxu0 0
        %3314 = vmatpush1.bf16.msra.mxu0 0
        %3315 = vmatprep.subr.bf16.mxu0 0
        %3316 = vmatpush1.bf16.msra.mxu0 0
        %3317 = vmatprep.subr.bf16.mxu0 0
        %3318 = vmatpush1.bf16.msra.mxu0 0
        %3319 = vmatprep.subr.bf16.mxu0 0
        %3320 = vmatpush1.bf16.msra.mxu0 0
        %3321 = vmatprep.subr.bf16.mxu0 0
        %3322 = vmatpush1.bf16.msra.mxu0 %v807
        %3323 = vmatprep.subr.bf16.mxu0 0
        %3324 = vmatpush1.bf16.msra.mxu0 %v806
        %3325 = vmatprep.subr.bf16.mxu0 0
        %3326 = vmatpush1.bf16.msra.mxu0 %v805
        %3327 = vmatprep.subr.bf16.mxu0 0
        %3328 = vmatpush1.bf16.msra.mxu0 %v804
        %3329 = vmatprep.subr.bf16.mxu0 0
        %3330 = vmatpush2.bf16.msra.mxu0 0
        %3331 = vmatprep.subr.bf16.mxu0 0
        %3332 = vmatpush2.bf16.msra.mxu0 0
        %3333 = vmatprep.subr.bf16.mxu0 0
        %3334 = vmatpush2.bf16.msra.mxu0 0
        %3335 = vmatprep.subr.bf16.mxu0 0
        %3336 = vmatpush2.bf16.msra.mxu0 0
        %3337 = vmatprep.subr.bf16.mxu0 0
        %3338 = vmatpush2.bf16.msra.mxu0 0
        %3339 = vmatprep.subr.bf16.mxu0 0
        %3340 = vmatpush2.bf16.msra.mxu0 0
        %3341 = vmatprep.subr.bf16.mxu0 0
        %3342 = vmatpush2.bf16.msra.mxu0 0
        %3343 = vmatprep.subr.bf16.mxu0 0
        %3344 = vmatpush2.bf16.msra.mxu0 0
        %3345 = vmatprep.mubr.bf16.mxu0 0
        %3346 = vmatmul.mubr.bf16.gmra.mxu0 %v3311
        %v3347 = vpop.f32.mrf.mxu0
        %v3348 = vadd.f32 0.0, %v3347
        %v3349 = vpop.f32.mrf.mxu0
        %v3350 = vpop.f32.mrf.mxu0
        %v3351 = vadd.f32 0.0, %v3350
        %v3352 = vpop.f32.mrf.mxu0
        %3353 = vdwg.mxu0
        %v3354 = vpack.c.bf16 %v3351, %v3348
        %v3355 = vld [vmem:[#allocation8 + $0x3c0] sm:$0xf]
        %v3356 = vld [vmem:[#allocation8 + $0x3c4] sm:$0xf]
        %v3357 = vld [vmem:[#allocation8 + $0x3c8] sm:$0xf]
        %v3358 = vld [vmem:[#allocation8 + $0x3cc] sm:$0xf]
        %v3359 = vld [vmem:[#allocation8 + $0x3d0] sm:$0xf]
        %v3360 = vld [vmem:[#allocation8 + $0x3d4] sm:$0xf]
        %v3361 = vld [vmem:[#allocation8 + $0x3d8] sm:$0xf]
        %v3362 = vld [vmem:[#allocation8 + $0x3dc] sm:$0xf]
        %v3363 = vld [vmem:[#allocation8 + $0x3e0] sm:$0xf]
        %v3364 = vld [vmem:[#allocation8 + $0x3e4] sm:$0xf]
        %v3365 = vld [vmem:[#allocation8 + $0x3e8] sm:$0xf]
        %v3366 = vld [vmem:[#allocation8 + $0x3ec] sm:$0xf]
        %v3367 = vld [vmem:[#allocation8 + $0x3f0] sm:$0xf]
        %v3368 = vld [vmem:[#allocation8 + $0x3f4] sm:$0xf]
        %v3369 = vld [vmem:[#allocation8 + $0x3f8] sm:$0xf]
        %v3370 = vld [vmem:[#allocation8 + $0x3fc] sm:$0xf]
        %v3387 = vunpack.c.l.b16 %v3355
        %v3388 = vunpack.c.l.b16 %v3356
        %v3389 = vunpack.c.l.b16 %v3357
        %v3390 = vunpack.c.l.b16 %v3358
        %v3391 = vunpack.c.l.b16 %v3359
        %v3392 = vunpack.c.l.b16 %v3360
        %v3393 = vunpack.c.l.b16 %v3361
        %v3394 = vunpack.c.l.b16 %v3362
        %v3395 = vunpack.c.l.b16 %v3363
        %v3396 = vunpack.c.l.b16 %v3364
        %v3397 = vunpack.c.l.b16 %v3365
        %v3398 = vunpack.c.l.b16 %v3366
        %v3399 = vunpack.c.l.b16 %v3367
        %v3400 = vunpack.c.l.b16 %v3368
        %v3401 = vunpack.c.l.b16 %v3369
        %v3402 = vunpack.c.l.b16 %v3370
        %v3403 = vpack.c.b16 %v3388, %v3387
        %v3404 = vpack.c.b16 %v3390, %v3389
        %v3405 = vpack.c.b16 %v3392, %v3391
        %v3406 = vpack.c.b16 %v3394, %v3393
        %v3407 = vpack.c.b16 %v3396, %v3395
        %v3408 = vpack.c.b16 %v3398, %v3397
        %v3409 = vpack.c.b16 %v3400, %v3399
        %v3410 = vpack.c.b16 %v3402, %v3401
        %3419 = vmatprep.subr.bf16.mxu0 0
        %3420 = vmatpush1.bf16.msra.mxu0 %v3410
        %3421 = vmatprep.subr.bf16.mxu0 0
        %3422 = vmatpush1.bf16.msra.mxu0 %v3409
        %3423 = vmatprep.subr.bf16.mxu0 0
        %3424 = vmatpush1.bf16.msra.mxu0 %v3408
        %3425 = vmatprep.subr.bf16.mxu0 0
        %3426 = vmatpush1.bf16.msra.mxu0 %v3407
        %3427 = vmatprep.subr.bf16.mxu0 0
        %3428 = vmatpush1.bf16.msra.mxu0 %v3406
        %3429 = vmatprep.subr.bf16.mxu0 0
        %3430 = vmatpush1.bf16.msra.mxu0 %v3405
        %3431 = vmatprep.subr.bf16.mxu0 0
        %3432 = vmatpush1.bf16.msra.mxu0 %v3404
        %3433 = vmatprep.subr.bf16.mxu0 0
        %3434 = vmatpush1.bf16.msra.mxu0 %v3403
        %3435 = vmatprep.subr.bf16.mxu0 0
        %3436 = vmatpush2.bf16.msra.mxu0 0
        %3437 = vmatprep.subr.bf16.mxu0 0
        %3438 = vmatpush2.bf16.msra.mxu0 0
        %3439 = vmatprep.subr.bf16.mxu0 0
        %3440 = vmatpush2.bf16.msra.mxu0 0
        %3441 = vmatprep.subr.bf16.mxu0 0
        %3442 = vmatpush2.bf16.msra.mxu0 0
        %3443 = vmatprep.subr.bf16.mxu0 0
        %3444 = vmatpush2.bf16.msra.mxu0 0
        %3445 = vmatprep.subr.bf16.mxu0 0
        %3446 = vmatpush2.bf16.msra.mxu0 0
        %3447 = vmatprep.subr.bf16.mxu0 0
        %3448 = vmatpush2.bf16.msra.mxu0 0
        %3449 = vmatprep.subr.bf16.mxu0 0
        %3450 = vmatpush2.bf16.msra.mxu0 0
        %3451 = vmatprep.mubr.bf16.mxu0 0
        %3452 = vmatmul.mubr.bf16.gmra.mxu0 %v3354
        %v3453 = vpop.f32.mrf.mxu0
        %v3454 = vadd.f32 0.0, %v3453
        %v3455 = vpop.f32.mrf.mxu0
        %v3456 = vpop.f32.mrf.mxu0
        %v3457 = vadd.f32 0.0, %v3456
        %v3458 = vpop.f32.mrf.mxu0
        %3459 = vdwg.mxu0
        %v3460 = vadd.f32 %v3294, %v3454
        %v3461 = vadd.f32 %v3295, %v3457
        %v3462 = vld [vmem:[%s4] sm:$0x1]
        %v3464 = vlaneseq
        %v3465 = vshrl.u32 %v3464, 7
        %v3466 = vsub.s32 0, %v3465
        %v3467 = vrot.slane %v3462, %v3466
        %v3469 = vadd.f32 %v3460, %v3467
        %v3470 = vadd.f32 %v3461, %v3467
        %v3471 = vmax.f32 %v3469, 0.0
        %v3472 = vmax.f32 %v3470, 0.0
        %v3473 = vpack.c.bf16 %v3472, %v3471
        %v3474 = vld [vmem:[%s8] sm:$0x1]
        %3475 = vset.pattern.permute.xlu0 0
        %3476 = vperm.xlu0 %3475, %v3474
        %v3477 = vpop.permute.xlu0 %3476
        %v3478 = vlaneseq
        %v3479 = vshrl.u32 %v3478, 7
        %v3480 = vsub.s32 0, %v3479
        %v3481 = vrot.slane %v3477, %v3480
        %vm3482 = vcmp.eq.s32.totalorder %v809, %v3481
        %v3483 = vsel %vm3482, 1.0, 0.0
        %v3484 = vpack.c.bf16 %v3483, %v3483
        %vm3485 = vcmask 72704
        %v3487 = vsel %vm3485, %v3484, 0
        %vm3489 = vcmask 1043456
        %vm3490 = vcmask 1044480
        %v3491 = vsel %vm3489, 4294967295, 65535
        %v3492 = vsel %vm3490, %v3491, 0
        %v3494 = vand.u32 %v3473, %v3492
        %3496 = vmatprep.subr.bf16.mxu0 0
        %3497 = vmatpush1.bf16.msra.mxu0 0
        %3498 = vmatprep.subr.bf16.mxu0 0
        %3499 = vmatpush1.bf16.msra.mxu0 0
        %3500 = vmatprep.subr.bf16.mxu0 0
        %3501 = vmatpush1.bf16.msra.mxu0 0
        %3502 = vmatprep.subr.bf16.mxu0 0
        %3503 = vmatpush1.bf16.msra.mxu0 0
        %3504 = vmatprep.subr.bf16.mxu0 0
        %3505 = vmatpush1.bf16.msra.mxu0 0
        %3506 = vmatprep.subr.bf16.mxu0 0
        %3507 = vmatpush1.bf16.msra.mxu0 0
        %3508 = vmatprep.subr.bf16.mxu0 0
        %3509 = vmatpush1.bf16.msra.mxu0 0
        %3510 = vmatprep.subr.bf16.mxu0 0
        %3511 = vmatpush1.bf16.msra.mxu0 %v3494
        %3512 = vmatprep.subr.bf16.mxu0 0
        %3513 = vmatpush2.bf16.msra.mxu0 0
        %3514 = vmatprep.subr.bf16.mxu0 0
        %3515 = vmatpush2.bf16.msra.mxu0 0
        %3516 = vmatprep.subr.bf16.mxu0 0
        %3517 = vmatpush2.bf16.msra.mxu0 0
        %3518 = vmatprep.subr.bf16.mxu0 0
        %3519 = vmatpush2.bf16.msra.mxu0 0
        %3520 = vmatprep.subr.bf16.mxu0 0
        %3521 = vmatpush2.bf16.msra.mxu0 0
        %3522 = vmatprep.subr.bf16.mxu0 0
        %3523 = vmatpush2.bf16.msra.mxu0 0
        %3524 = vmatprep.subr.bf16.mxu0 0
        %3525 = vmatpush2.bf16.msra.mxu0 0
        %3526 = vmatprep.subr.bf16.mxu0 0
        %3527 = vmatpush2.bf16.msra.mxu0 0
        %3528 = vmatprep.mubr.bf16.mxu0 0
        %3529 = vmatmul.mubr.bf16.gmra.mxu0 %v3487
        %v3530 = vpop.f32.mrf.mxu0
        %v3531 = vadd.f32 0.0, %v3530
        %v3532 = vpop.f32.mrf.mxu0
        %v3533 = vpop.f32.mrf.mxu0
        %v3534 = vpop.f32.mrf.mxu0
        %3535 = vdwg.mxu0
        %v3536 = vpack.c.bf16 %v3531, %v3531
        %v3537 = vld [vmem:[#allocation9] sm:$0xf]
        %v3538 = vld [vmem:[#allocation9 + $0x4] sm:$0xf]
        %v3539 = vld [vmem:[#allocation9 + $0x8] sm:$0xf]
        %v3540 = vld [vmem:[#allocation9 + $0xc] sm:$0xf]
        %v3541 = vld [vmem:[#allocation9 + $0x10] sm:$0xf]
        %v3542 = vld [vmem:[#allocation9 + $0x14] sm:$0xf]
        %v3543 = vld [vmem:[#allocation9 + $0x18] sm:$0xf]
        %v3544 = vld [vmem:[#allocation9 + $0x1c] sm:$0xf]
        %v3545 = vld [vmem:[#allocation9 + $0x20] sm:$0xf]
        %v3546 = vld [vmem:[#allocation9 + $0x24] sm:$0xf]
        %v3547 = vld [vmem:[#allocation9 + $0x28] sm:$0xf]
        %v3548 = vld [vmem:[#allocation9 + $0x2c] sm:$0xf]
        %v3549 = vld [vmem:[#allocation9 + $0x30] sm:$0xf]
        %v3550 = vld [vmem:[#allocation9 + $0x34] sm:$0xf]
        %v3551 = vld [vmem:[#allocation9 + $0x38] sm:$0xf]
        %v3552 = vld [vmem:[#allocation9 + $0x3c] sm:$0xf]
        %s3553 = scalar_lea.vmem %s8, 1
        %v3554 = vld [vmem:[%s3553] sm:$0x1]
        %3555 = vset.pattern.permute.xlu0 0
        %3556 = vperm.xlu0 %3555, %v3554
        %v3557 = vpop.permute.xlu0 %3556
        %v3558 = vlaneseq
        %v3559 = vshrl.u32 %v3558, 7
        %v3560 = vsub.s32 0, %v3559
        %v3561 = vrot.slane %v3557, %v3560
        %vm3562 = vcmp.eq.s32.totalorder %v809, %v3561
        %v3563 = vsel %vm3562, 1.0, 0.0
        %v3564 = vpack.c.bf16 %v3563, %v3563
        %v3566 = vsel %vm3485, %v3564, 0
        %3568 = vmatprep.subr.bf16.mxu0 0
        %3569 = vmatpush1.bf16.msra.mxu0 0
        %3570 = vmatprep.subr.bf16.mxu0 0
        %3571 = vmatpush1.bf16.msra.mxu0 0
        %3572 = vmatprep.subr.bf16.mxu0 0
        %3573 = vmatpush1.bf16.msra.mxu0 0
        %3574 = vmatprep.subr.bf16.mxu0 0
        %3575 = vmatpush1.bf16.msra.mxu0 0
        %3576 = vmatprep.subr.bf16.mxu0 0
        %3577 = vmatpush1.bf16.msra.mxu0 0
        %3578 = vmatprep.subr.bf16.mxu0 0
        %3579 = vmatpush1.bf16.msra.mxu0 0
        %3580 = vmatprep.subr.bf16.mxu0 0
        %3581 = vmatpush1.bf16.msra.mxu0 0
        %3582 = vmatprep.subr.bf16.mxu0 0
        %3583 = vmatpush1.bf16.msra.mxu0 %v3494
        %3584 = vmatprep.subr.bf16.mxu0 0
        %3585 = vmatpush2.bf16.msra.mxu0 0
        %3586 = vmatprep.subr.bf16.mxu0 0
        %3587 = vmatpush2.bf16.msra.mxu0 0
        %3588 = vmatprep.subr.bf16.mxu0 0
        %3589 = vmatpush2.bf16.msra.mxu0 0
        %3590 = vmatprep.subr.bf16.mxu0 0
        %3591 = vmatpush2.bf16.msra.mxu0 0
        %3592 = vmatprep.subr.bf16.mxu0 0
        %3593 = vmatpush2.bf16.msra.mxu0 0
        %3594 = vmatprep.subr.bf16.mxu0 0
        %3595 = vmatpush2.bf16.msra.mxu0 0
        %3596 = vmatprep.subr.bf16.mxu0 0
        %3597 = vmatpush2.bf16.msra.mxu0 0
        %3598 = vmatprep.subr.bf16.mxu0 0
        %3599 = vmatpush2.bf16.msra.mxu0 0
        %3600 = vmatprep.mubr.bf16.mxu0 0
        %3601 = vmatmul.mubr.bf16.gmra.mxu0 %v3566
        %v3602 = vpop.f32.mrf.mxu0
        %v3603 = vadd.f32 0.0, %v3602
        %v3604 = vpop.f32.mrf.mxu0
        %v3605 = vpop.f32.mrf.mxu0
        %v3606 = vpop.f32.mrf.mxu0
        %3607 = vdwg.mxu0
        %v3608 = vpack.c.bf16 %v3603, %v3603
        %v3609 = vld [vmem:[#allocation9 + $0x40] sm:$0xf]
        %v3610 = vld [vmem:[#allocation9 + $0x44] sm:$0xf]
        %v3611 = vld [vmem:[#allocation9 + $0x48] sm:$0xf]
        %v3612 = vld [vmem:[#allocation9 + $0x4c] sm:$0xf]
        %v3613 = vld [vmem:[#allocation9 + $0x50] sm:$0xf]
        %v3614 = vld [vmem:[#allocation9 + $0x54] sm:$0xf]
        %v3615 = vld [vmem:[#allocation9 + $0x58] sm:$0xf]
        %v3616 = vld [vmem:[#allocation9 + $0x5c] sm:$0xf]
        %v3617 = vld [vmem:[#allocation9 + $0x60] sm:$0xf]
        %v3618 = vld [vmem:[#allocation9 + $0x64] sm:$0xf]
        %v3619 = vld [vmem:[#allocation9 + $0x68] sm:$0xf]
        %v3620 = vld [vmem:[#allocation9 + $0x6c] sm:$0xf]
        %v3621 = vld [vmem:[#allocation9 + $0x70] sm:$0xf]
        %v3622 = vld [vmem:[#allocation9 + $0x74] sm:$0xf]
        %v3623 = vld [vmem:[#allocation9 + $0x78] sm:$0xf]
        %v3624 = vld [vmem:[#allocation9 + $0x7c] sm:$0xf]
        %v3641 = vunpack.c.l.b16 %v3609
        %v3642 = vunpack.c.l.b16 %v3610
        %v3643 = vunpack.c.l.b16 %v3611
        %v3644 = vunpack.c.l.b16 %v3612
        %v3645 = vunpack.c.l.b16 %v3613
        %v3646 = vunpack.c.l.b16 %v3614
        %v3647 = vunpack.c.l.b16 %v3615
        %v3648 = vunpack.c.l.b16 %v3616
        %v3649 = vunpack.c.l.b16 %v3617
        %v3650 = vunpack.c.l.b16 %v3618
        %v3651 = vunpack.c.l.b16 %v3619
        %v3652 = vunpack.c.l.b16 %v3620
        %v3653 = vunpack.c.l.b16 %v3621
        %v3654 = vunpack.c.l.b16 %v3622
        %v3655 = vunpack.c.l.b16 %v3623
        %v3656 = vunpack.c.l.b16 %v3624
        %v3657 = vpack.c.b16 %v3642, %v3641
        %v3658 = vpack.c.b16 %v3644, %v3643
        %v3659 = vpack.c.b16 %v3646, %v3645
        %v3660 = vpack.c.b16 %v3648, %v3647
        %v3661 = vpack.c.b16 %v3650, %v3649
        %v3662 = vpack.c.b16 %v3652, %v3651
        %v3663 = vpack.c.b16 %v3654, %v3653
        %v3664 = vpack.c.b16 %v3656, %v3655
        %3673 = vmatprep.subr.bf16.mxu0 0
        %3674 = vmatpush1.bf16.msra.mxu0 %v3664
        %3675 = vmatprep.subr.bf16.mxu0 0
        %3676 = vmatpush1.bf16.msra.mxu0 %v3663
        %3677 = vmatprep.subr.bf16.mxu0 0
        %3678 = vmatpush1.bf16.msra.mxu0 %v3662
        %3679 = vmatprep.subr.bf16.mxu0 0
        %3680 = vmatpush1.bf16.msra.mxu0 %v3661
        %3681 = vmatprep.subr.bf16.mxu0 0
        %3682 = vmatpush1.bf16.msra.mxu0 %v3660
        %3683 = vmatprep.subr.bf16.mxu0 0
        %3684 = vmatpush1.bf16.msra.mxu0 %v3659
        %3685 = vmatprep.subr.bf16.mxu0 0
        %3686 = vmatpush1.bf16.msra.mxu0 %v3658
        %3687 = vmatprep.subr.bf16.mxu0 0
        %3688 = vmatpush1.bf16.msra.mxu0 %v3657
        %3689 = vmatprep.subr.bf16.mxu0 0
        %3690 = vmatpush2.bf16.msra.mxu0 0
        %3691 = vmatprep.subr.bf16.mxu0 0
        %3692 = vmatpush2.bf16.msra.mxu0 0
        %3693 = vmatprep.subr.bf16.mxu0 0
        %3694 = vmatpush2.bf16.msra.mxu0 0
        %3695 = vmatprep.subr.bf16.mxu0 0
        %3696 = vmatpush2.bf16.msra.mxu0 0
        %3697 = vmatprep.subr.bf16.mxu0 0
        %3698 = vmatpush2.bf16.msra.mxu0 0
        %3699 = vmatprep.subr.bf16.mxu0 0
        %3700 = vmatpush2.bf16.msra.mxu0 0
        %3701 = vmatprep.subr.bf16.mxu0 0
        %3702 = vmatpush2.bf16.msra.mxu0 0
        %3703 = vmatprep.subr.bf16.mxu0 0
        %3704 = vmatpush2.bf16.msra.mxu0 0
        %3705 = vmatprep.mubr.bf16.mxu0 0
        %3706 = vmatmul.mubr.bf16.gmra.mxu0 %v3608
        %v3707 = vpop.f32.mrf.mxu0
        %v3708 = vadd.f32 0.0, %v3707
        %v3709 = vpop.f32.mrf.mxu0
        %v3710 = vpop.f32.mrf.mxu0
        %v3711 = vpop.f32.mrf.mxu0
        %3712 = vdwg.mxu0
        %v3729 = vunpack.c.l.b16 %v3537
        %v3730 = vunpack.c.l.b16 %v3538
        %v3731 = vunpack.c.l.b16 %v3539
        %v3732 = vunpack.c.l.b16 %v3540
        %v3733 = vunpack.c.l.b16 %v3541
        %v3734 = vunpack.c.l.b16 %v3542
        %v3735 = vunpack.c.l.b16 %v3543
        %v3736 = vunpack.c.l.b16 %v3544
        %v3737 = vunpack.c.l.b16 %v3545
        %v3738 = vunpack.c.l.b16 %v3546
        %v3739 = vunpack.c.l.b16 %v3547
        %v3740 = vunpack.c.l.b16 %v3548
        %v3741 = vunpack.c.l.b16 %v3549
        %v3742 = vunpack.c.l.b16 %v3550
        %v3743 = vunpack.c.l.b16 %v3551
        %v3744 = vunpack.c.l.b16 %v3552
        %v3745 = vpack.c.b16 %v3730, %v3729
        %v3746 = vpack.c.b16 %v3732, %v3731
        %v3747 = vpack.c.b16 %v3734, %v3733
        %v3748 = vpack.c.b16 %v3736, %v3735
        %v3749 = vpack.c.b16 %v3738, %v3737
        %v3750 = vpack.c.b16 %v3740, %v3739
        %v3751 = vpack.c.b16 %v3742, %v3741
        %v3752 = vpack.c.b16 %v3744, %v3743
        %3761 = vmatprep.subr.bf16.mxu0 0
        %3762 = vmatpush1.bf16.msra.mxu0 %v3752
        %3763 = vmatprep.subr.bf16.mxu0 0
        %3764 = vmatpush1.bf16.msra.mxu0 %v3751
        %3765 = vmatprep.subr.bf16.mxu0 0
        %3766 = vmatpush1.bf16.msra.mxu0 %v3750
        %3767 = vmatprep.subr.bf16.mxu0 0
        %3768 = vmatpush1.bf16.msra.mxu0 %v3749
        %3769 = vmatprep.subr.bf16.mxu0 0
        %3770 = vmatpush1.bf16.msra.mxu0 %v3748
        %3771 = vmatprep.subr.bf16.mxu0 0
        %3772 = vmatpush1.bf16.msra.mxu0 %v3747
        %3773 = vmatprep.subr.bf16.mxu0 0
        %3774 = vmatpush1.bf16.msra.mxu0 %v3746
        %3775 = vmatprep.subr.bf16.mxu0 0
        %3776 = vmatpush1.bf16.msra.mxu0 %v3745
        %3777 = vmatprep.subr.bf16.mxu0 0
        %3778 = vmatpush2.bf16.msra.mxu0 0
        %3779 = vmatprep.subr.bf16.mxu0 0
        %3780 = vmatpush2.bf16.msra.mxu0 0
        %3781 = vmatprep.subr.bf16.mxu0 0
        %3782 = vmatpush2.bf16.msra.mxu0 0
        %3783 = vmatprep.subr.bf16.mxu0 0
        %3784 = vmatpush2.bf16.msra.mxu0 0
        %3785 = vmatprep.subr.bf16.mxu0 0
        %3786 = vmatpush2.bf16.msra.mxu0 0
        %3787 = vmatprep.subr.bf16.mxu0 0
        %3788 = vmatpush2.bf16.msra.mxu0 0
        %3789 = vmatprep.subr.bf16.mxu0 0
        %3790 = vmatpush2.bf16.msra.mxu0 0
        %3791 = vmatprep.subr.bf16.mxu0 0
        %3792 = vmatpush2.bf16.msra.mxu0 0
        %3793 = vmatprep.mubr.bf16.mxu0 0
        %3794 = vmatmul.mubr.bf16.gmra.mxu0 %v3536
        %v3795 = vpop.f32.mrf.mxu0
        %v3796 = vadd.f32 %v3708, %v3795
        %v3797 = vpop.f32.mrf.mxu0
        %v3798 = vpop.f32.mrf.mxu0
        %v3799 = vpop.f32.mrf.mxu0
        %3800 = vdwg.mxu0
        %s3801 = scalar_lea.vmem %s8, 2
        %v3802 = vld [vmem:[%s3801] sm:$0x1]
        %3803 = vset.pattern.permute.xlu0 0
        %3804 = vperm.xlu0 %3803, %v3802
        %v3805 = vpop.permute.xlu0 %3804
        %v3806 = vlaneseq
        %v3807 = vshrl.u32 %v3806, 7
        %v3808 = vsub.s32 0, %v3807
        %v3809 = vrot.slane %v3805, %v3808
        %vm3810 = vcmp.eq.s32.totalorder %v809, %v3809
        %v3811 = vsel %vm3810, 1.0, 0.0
        %v3812 = vpack.c.bf16 %v3811, %v3811
        %v3814 = vsel %vm3485, %v3812, 0
        %3816 = vmatprep.subr.bf16.mxu0 0
        %3817 = vmatpush1.bf16.msra.mxu0 0
        %3818 = vmatprep.subr.bf16.mxu0 0
        %3819 = vmatpush1.bf16.msra.mxu0 0
        %3820 = vmatprep.subr.bf16.mxu0 0
        %3821 = vmatpush1.bf16.msra.mxu0 0
        %3822 = vmatprep.subr.bf16.mxu0 0
        %3823 = vmatpush1.bf16.msra.mxu0 0
        %3824 = vmatprep.subr.bf16.mxu0 0
        %3825 = vmatpush1.bf16.msra.mxu0 0
        %3826 = vmatprep.subr.bf16.mxu0 0
        %3827 = vmatpush1.bf16.msra.mxu0 0
        %3828 = vmatprep.subr.bf16.mxu0 0
        %3829 = vmatpush1.bf16.msra.mxu0 0
        %3830 = vmatprep.subr.bf16.mxu0 0
        %3831 = vmatpush1.bf16.msra.mxu0 %v3494
        %3832 = vmatprep.subr.bf16.mxu0 0
        %3833 = vmatpush2.bf16.msra.mxu0 0
        %3834 = vmatprep.subr.bf16.mxu0 0
        %3835 = vmatpush2.bf16.msra.mxu0 0
        %3836 = vmatprep.subr.bf16.mxu0 0
        %3837 = vmatpush2.bf16.msra.mxu0 0
        %3838 = vmatprep.subr.bf16.mxu0 0
        %3839 = vmatpush2.bf16.msra.mxu0 0
        %3840 = vmatprep.subr.bf16.mxu0 0
        %3841 = vmatpush2.bf16.msra.mxu0 0
        %3842 = vmatprep.subr.bf16.mxu0 0
        %3843 = vmatpush2.bf16.msra.mxu0 0
        %3844 = vmatprep.subr.bf16.mxu0 0
        %3845 = vmatpush2.bf16.msra.mxu0 0
        %3846 = vmatprep.subr.bf16.mxu0 0
        %3847 = vmatpush2.bf16.msra.mxu0 0
        %3848 = vmatprep.mubr.bf16.mxu0 0
        %3849 = vmatmul.mubr.bf16.gmra.mxu0 %v3814
        %v3850 = vpop.f32.mrf.mxu0
        %v3851 = vadd.f32 0.0, %v3850
        %v3852 = vpop.f32.mrf.mxu0
        %v3853 = vpop.f32.mrf.mxu0
        %v3854 = vpop.f32.mrf.mxu0
        %3855 = vdwg.mxu0
        %v3856 = vpack.c.bf16 %v3851, %v3851
        %v3857 = vld [vmem:[#allocation9 + $0x80] sm:$0xf]
        %v3858 = vld [vmem:[#allocation9 + $0x84] sm:$0xf]
        %v3859 = vld [vmem:[#allocation9 + $0x88] sm:$0xf]
        %v3860 = vld [vmem:[#allocation9 + $0x8c] sm:$0xf]
        %v3861 = vld [vmem:[#allocation9 + $0x90] sm:$0xf]
        %v3862 = vld [vmem:[#allocation9 + $0x94] sm:$0xf]
        %v3863 = vld [vmem:[#allocation9 + $0x98] sm:$0xf]
        %v3864 = vld [vmem:[#allocation9 + $0x9c] sm:$0xf]
        %v3865 = vld [vmem:[#allocation9 + $0xa0] sm:$0xf]
        %v3866 = vld [vmem:[#allocation9 + $0xa4] sm:$0xf]
        %v3867 = vld [vmem:[#allocation9 + $0xa8] sm:$0xf]
        %v3868 = vld [vmem:[#allocation9 + $0xac] sm:$0xf]
        %v3869 = vld [vmem:[#allocation9 + $0xb0] sm:$0xf]
        %v3870 = vld [vmem:[#allocation9 + $0xb4] sm:$0xf]
        %v3871 = vld [vmem:[#allocation9 + $0xb8] sm:$0xf]
        %v3872 = vld [vmem:[#allocation9 + $0xbc] sm:$0xf]
        %v3889 = vunpack.c.l.b16 %v3857
        %v3890 = vunpack.c.l.b16 %v3858
        %v3891 = vunpack.c.l.b16 %v3859
        %v3892 = vunpack.c.l.b16 %v3860
        %v3893 = vunpack.c.l.b16 %v3861
        %v3894 = vunpack.c.l.b16 %v3862
        %v3895 = vunpack.c.l.b16 %v3863
        %v3896 = vunpack.c.l.b16 %v3864
        %v3897 = vunpack.c.l.b16 %v3865
        %v3898 = vunpack.c.l.b16 %v3866
        %v3899 = vunpack.c.l.b16 %v3867
        %v3900 = vunpack.c.l.b16 %v3868
        %v3901 = vunpack.c.l.b16 %v3869
        %v3902 = vunpack.c.l.b16 %v3870
        %v3903 = vunpack.c.l.b16 %v3871
        %v3904 = vunpack.c.l.b16 %v3872
        %v3905 = vpack.c.b16 %v3890, %v3889
        %v3906 = vpack.c.b16 %v3892, %v3891
        %v3907 = vpack.c.b16 %v3894, %v3893
        %v3908 = vpack.c.b16 %v3896, %v3895
        %v3909 = vpack.c.b16 %v3898, %v3897
        %v3910 = vpack.c.b16 %v3900, %v3899
        %v3911 = vpack.c.b16 %v3902, %v3901
        %v3912 = vpack.c.b16 %v3904, %v3903
        %3921 = vmatprep.subr.bf16.mxu0 0
        %3922 = vmatpush1.bf16.msra.mxu0 %v3912
        %3923 = vmatprep.subr.bf16.mxu0 0
        %3924 = vmatpush1.bf16.msra.mxu0 %v3911
        %3925 = vmatprep.subr.bf16.mxu0 0
        %3926 = vmatpush1.bf16.msra.mxu0 %v3910
        %3927 = vmatprep.subr.bf16.mxu0 0
        %3928 = vmatpush1.bf16.msra.mxu0 %v3909
        %3929 = vmatprep.subr.bf16.mxu0 0
        %3930 = vmatpush1.bf16.msra.mxu0 %v3908
        %3931 = vmatprep.subr.bf16.mxu0 0
        %3932 = vmatpush1.bf16.msra.mxu0 %v3907
        %3933 = vmatprep.subr.bf16.mxu0 0
        %3934 = vmatpush1.bf16.msra.mxu0 %v3906
        %3935 = vmatprep.subr.bf16.mxu0 0
        %3936 = vmatpush1.bf16.msra.mxu0 %v3905
        %3937 = vmatprep.subr.bf16.mxu0 0
        %3938 = vmatpush2.bf16.msra.mxu0 0
        %3939 = vmatprep.subr.bf16.mxu0 0
        %3940 = vmatpush2.bf16.msra.mxu0 0
        %3941 = vmatprep.subr.bf16.mxu0 0
        %3942 = vmatpush2.bf16.msra.mxu0 0
        %3943 = vmatprep.subr.bf16.mxu0 0
        %3944 = vmatpush2.bf16.msra.mxu0 0
        %3945 = vmatprep.subr.bf16.mxu0 0
        %3946 = vmatpush2.bf16.msra.mxu0 0
        %3947 = vmatprep.subr.bf16.mxu0 0
        %3948 = vmatpush2.bf16.msra.mxu0 0
        %3949 = vmatprep.subr.bf16.mxu0 0
        %3950 = vmatpush2.bf16.msra.mxu0 0
        %3951 = vmatprep.subr.bf16.mxu0 0
        %3952 = vmatpush2.bf16.msra.mxu0 0
        %3953 = vmatprep.mubr.bf16.mxu0 0
        %3954 = vmatmul.mubr.bf16.gmra.mxu0 %v3856
        %v3955 = vpop.f32.mrf.mxu0
        %v3956 = vadd.f32 0.0, %v3955
        %v3957 = vpop.f32.mrf.mxu0
        %v3958 = vpop.f32.mrf.mxu0
        %v3959 = vpop.f32.mrf.mxu0
        %3960 = vdwg.mxu0
        %v3961 = vadd.f32 %v3796, %v3956
        %s3962 = scalar_lea.vmem %s8, 3
        %v3963 = vld [vmem:[%s3962] sm:$0x1]
        %3964 = vset.pattern.permute.xlu0 0
        %3965 = vperm.xlu0 %3964, %v3963
        %v3966 = vpop.permute.xlu0 %3965
        %v3967 = vlaneseq
        %v3968 = vshrl.u32 %v3967, 7
        %v3969 = vsub.s32 0, %v3968
        %v3970 = vrot.slane %v3966, %v3969
        %vm3971 = vcmp.eq.s32.totalorder %v809, %v3970
        %v3972 = vsel %vm3971, 1.0, 0.0
        %v3973 = vpack.c.bf16 %v3972, %v3972
        %v3975 = vsel %vm3485, %v3973, 0
        %3977 = vmatprep.subr.bf16.mxu0 0
        %3978 = vmatpush1.bf16.msra.mxu0 0
        %3979 = vmatprep.subr.bf16.mxu0 0
        %3980 = vmatpush1.bf16.msra.mxu0 0
        %3981 = vmatprep.subr.bf16.mxu0 0
        %3982 = vmatpush1.bf16.msra.mxu0 0
        %3983 = vmatprep.subr.bf16.mxu0 0
        %3984 = vmatpush1.bf16.msra.mxu0 0
        %3985 = vmatprep.subr.bf16.mxu0 0
        %3986 = vmatpush1.bf16.msra.mxu0 0
        %3987 = vmatprep.subr.bf16.mxu0 0
        %3988 = vmatpush1.bf16.msra.mxu0 0
        %3989 = vmatprep.subr.bf16.mxu0 0
        %3990 = vmatpush1.bf16.msra.mxu0 0
        %3991 = vmatprep.subr.bf16.mxu0 0
        %3992 = vmatpush1.bf16.msra.mxu0 %v3494
        %3993 = vmatprep.subr.bf16.mxu0 0
        %3994 = vmatpush2.bf16.msra.mxu0 0
        %3995 = vmatprep.subr.bf16.mxu0 0
        %3996 = vmatpush2.bf16.msra.mxu0 0
        %3997 = vmatprep.subr.bf16.mxu0 0
        %3998 = vmatpush2.bf16.msra.mxu0 0
        %3999 = vmatprep.subr.bf16.mxu0 0
        %4000 = vmatpush2.bf16.msra.mxu0 0
        %4001 = vmatprep.subr.bf16.mxu0 0
        %4002 = vmatpush2.bf16.msra.mxu0 0
        %4003 = vmatprep.subr.bf16.mxu0 0
        %4004 = vmatpush2.bf16.msra.mxu0 0
        %4005 = vmatprep.subr.bf16.mxu0 0
        %4006 = vmatpush2.bf16.msra.mxu0 0
        %4007 = vmatprep.subr.bf16.mxu0 0
        %4008 = vmatpush2.bf16.msra.mxu0 0
        %4009 = vmatprep.mubr.bf16.mxu0 0
        %4010 = vmatmul.mubr.bf16.gmra.mxu0 %v3975
        %v4011 = vpop.f32.mrf.mxu0
        %v4012 = vadd.f32 0.0, %v4011
        %v4013 = vpop.f32.mrf.mxu0
        %v4014 = vpop.f32.mrf.mxu0
        %v4015 = vpop.f32.mrf.mxu0
        %4016 = vdwg.mxu0
        %v4017 = vpack.c.bf16 %v4012, %v4012
        %v4018 = vld [vmem:[#allocation9 + $0xc0] sm:$0xf]
        %v4019 = vld [vmem:[#allocation9 + $0xc4] sm:$0xf]
        %v4020 = vld [vmem:[#allocation9 + $0xc8] sm:$0xf]
        %v4021 = vld [vmem:[#allocation9 + $0xcc] sm:$0xf]
        %v4022 = vld [vmem:[#allocation9 + $0xd0] sm:$0xf]
        %v4023 = vld [vmem:[#allocation9 + $0xd4] sm:$0xf]
        %v4024 = vld [vmem:[#allocation9 + $0xd8] sm:$0xf]
        %v4025 = vld [vmem:[#allocation9 + $0xdc] sm:$0xf]
        %v4026 = vld [vmem:[#allocation9 + $0xe0] sm:$0xf]
        %v4027 = vld [vmem:[#allocation9 + $0xe4] sm:$0xf]
        %v4028 = vld [vmem:[#allocation9 + $0xe8] sm:$0xf]
        %v4029 = vld [vmem:[#allocation9 + $0xec] sm:$0xf]
        %v4030 = vld [vmem:[#allocation9 + $0xf0] sm:$0xf]
        %v4031 = vld [vmem:[#allocation9 + $0xf4] sm:$0xf]
        %v4032 = vld [vmem:[#allocation9 + $0xf8] sm:$0xf]
        %v4033 = vld [vmem:[#allocation9 + $0xfc] sm:$0xf]
        %v4050 = vunpack.c.l.b16 %v4018
        %v4051 = vunpack.c.l.b16 %v4019
        %v4052 = vunpack.c.l.b16 %v4020
        %v4053 = vunpack.c.l.b16 %v4021
        %v4054 = vunpack.c.l.b16 %v4022
        %v4055 = vunpack.c.l.b16 %v4023
        %v4056 = vunpack.c.l.b16 %v4024
        %v4057 = vunpack.c.l.b16 %v4025
        %v4058 = vunpack.c.l.b16 %v4026
        %v4059 = vunpack.c.l.b16 %v4027
        %v4060 = vunpack.c.l.b16 %v4028
        %v4061 = vunpack.c.l.b16 %v4029
        %v4062 = vunpack.c.l.b16 %v4030
        %v4063 = vunpack.c.l.b16 %v4031
        %v4064 = vunpack.c.l.b16 %v4032
        %v4065 = vunpack.c.l.b16 %v4033
        %v4066 = vpack.c.b16 %v4051, %v4050
        %v4067 = vpack.c.b16 %v4053, %v4052
        %v4068 = vpack.c.b16 %v4055, %v4054
        %v4069 = vpack.c.b16 %v4057, %v4056
        %v4070 = vpack.c.b16 %v4059, %v4058
        %v4071 = vpack.c.b16 %v4061, %v4060
        %v4072 = vpack.c.b16 %v4063, %v4062
        %v4073 = vpack.c.b16 %v4065, %v4064
        %4082 = vmatprep.subr.bf16.mxu0 0
        %4083 = vmatpush1.bf16.msra.mxu0 %v4073
        %4084 = vmatprep.subr.bf16.mxu0 0
        %4085 = vmatpush1.bf16.msra.mxu0 %v4072
        %4086 = vmatprep.subr.bf16.mxu0 0
        %4087 = vmatpush1.bf16.msra.mxu0 %v4071
        %4088 = vmatprep.subr.bf16.mxu0 0
        %4089 = vmatpush1.bf16.msra.mxu0 %v4070
        %4090 = vmatprep.subr.bf16.mxu0 0
        %4091 = vmatpush1.bf16.msra.mxu0 %v4069
        %4092 = vmatprep.subr.bf16.mxu0 0
        %4093 = vmatpush1.bf16.msra.mxu0 %v4068
        %4094 = vmatprep.subr.bf16.mxu0 0
        %4095 = vmatpush1.bf16.msra.mxu0 %v4067
        %4096 = vmatprep.subr.bf16.mxu0 0
        %4097 = vmatpush1.bf16.msra.mxu0 %v4066
        %4098 = vmatprep.subr.bf16.mxu0 0
        %4099 = vmatpush2.bf16.msra.mxu0 0
        %4100 = vmatprep.subr.bf16.mxu0 0
        %4101 = vmatpush2.bf16.msra.mxu0 0
        %4102 = vmatprep.subr.bf16.mxu0 0
        %4103 = vmatpush2.bf16.msra.mxu0 0
        %4104 = vmatprep.subr.bf16.mxu0 0
        %4105 = vmatpush2.bf16.msra.mxu0 0
        %4106 = vmatprep.subr.bf16.mxu0 0
        %4107 = vmatpush2.bf16.msra.mxu0 0
        %4108 = vmatprep.subr.bf16.mxu0 0
        %4109 = vmatpush2.bf16.msra.mxu0 0
        %4110 = vmatprep.subr.bf16.mxu0 0
        %4111 = vmatpush2.bf16.msra.mxu0 0
        %4112 = vmatprep.subr.bf16.mxu0 0
        %4113 = vmatpush2.bf16.msra.mxu0 0
        %4114 = vmatprep.mubr.bf16.mxu0 0
        %4115 = vmatmul.mubr.bf16.gmra.mxu0 %v4017
        %v4116 = vpop.f32.mrf.mxu0
        %v4117 = vadd.f32 0.0, %v4116
        %v4118 = vpop.f32.mrf.mxu0
        %v4119 = vpop.f32.mrf.mxu0
        %v4120 = vpop.f32.mrf.mxu0
        %4121 = vdwg.mxu0
        %v4122 = vadd.f32 %v3961, %v4117
        %s4123 = scalar_lea.vmem %s8, 4
        %v4124 = vld [vmem:[%s4123] sm:$0x1]
        %4125 = vset.pattern.permute.xlu0 0
        %4126 = vperm.xlu0 %4125, %v4124
        %v4127 = vpop.permute.xlu0 %4126
        %v4128 = vlaneseq
        %v4129 = vshrl.u32 %v4128, 7
        %v4130 = vsub.s32 0, %v4129
        %v4131 = vrot.slane %v4127, %v4130
        %vm4132 = vcmp.eq.s32.totalorder %v809, %v4131
        %v4133 = vsel %vm4132, 1.0, 0.0
        %v4134 = vpack.c.bf16 %v4133, %v4133
        %v4136 = vsel %vm3485, %v4134, 0
        %4138 = vmatprep.subr.bf16.mxu0 0
        %4139 = vmatpush1.bf16.msra.mxu0 0
        %4140 = vmatprep.subr.bf16.mxu0 0
        %4141 = vmatpush1.bf16.msra.mxu0 0
        %4142 = vmatprep.subr.bf16.mxu0 0
        %4143 = vmatpush1.bf16.msra.mxu0 0
        %4144 = vmatprep.subr.bf16.mxu0 0
        %4145 = vmatpush1.bf16.msra.mxu0 0
        %4146 = vmatprep.subr.bf16.mxu0 0
        %4147 = vmatpush1.bf16.msra.mxu0 0
        %4148 = vmatprep.subr.bf16.mxu0 0
        %4149 = vmatpush1.bf16.msra.mxu0 0
        %4150 = vmatprep.subr.bf16.mxu0 0
        %4151 = vmatpush1.bf16.msra.mxu0 0
        %4152 = vmatprep.subr.bf16.mxu0 0
        %4153 = vmatpush1.bf16.msra.mxu0 %v3494
        %4154 = vmatprep.subr.bf16.mxu0 0
        %4155 = vmatpush2.bf16.msra.mxu0 0
        %4156 = vmatprep.subr.bf16.mxu0 0
        %4157 = vmatpush2.bf16.msra.mxu0 0
        %4158 = vmatprep.subr.bf16.mxu0 0
        %4159 = vmatpush2.bf16.msra.mxu0 0
        %4160 = vmatprep.subr.bf16.mxu0 0
        %4161 = vmatpush2.bf16.msra.mxu0 0
        %4162 = vmatprep.subr.bf16.mxu0 0
        %4163 = vmatpush2.bf16.msra.mxu0 0
        %4164 = vmatprep.subr.bf16.mxu0 0
        %4165 = vmatpush2.bf16.msra.mxu0 0
        %4166 = vmatprep.subr.bf16.mxu0 0
        %4167 = vmatpush2.bf16.msra.mxu0 0
        %4168 = vmatprep.subr.bf16.mxu0 0
        %4169 = vmatpush2.bf16.msra.mxu0 0
        %4170 = vmatprep.mubr.bf16.mxu0 0
        %4171 = vmatmul.mubr.bf16.gmra.mxu0 %v4136
        %v4172 = vpop.f32.mrf.mxu0
        %v4173 = vadd.f32 0.0, %v4172
        %v4174 = vpop.f32.mrf.mxu0
        %v4175 = vpop.f32.mrf.mxu0
        %v4176 = vpop.f32.mrf.mxu0
        %4177 = vdwg.mxu0
        %v4178 = vpack.c.bf16 %v4173, %v4173
        %v4179 = vld [vmem:[#allocation9 + $0x100] sm:$0xf]
        %v4180 = vld [vmem:[#allocation9 + $0x104] sm:$0xf]
        %v4181 = vld [vmem:[#allocation9 + $0x108] sm:$0xf]
        %v4182 = vld [vmem:[#allocation9 + $0x10c] sm:$0xf]
        %v4183 = vld [vmem:[#allocation9 + $0x110] sm:$0xf]
        %v4184 = vld [vmem:[#allocation9 + $0x114] sm:$0xf]
        %v4185 = vld [vmem:[#allocation9 + $0x118] sm:$0xf]
        %v4186 = vld [vmem:[#allocation9 + $0x11c] sm:$0xf]
        %v4187 = vld [vmem:[#allocation9 + $0x120] sm:$0xf]
        %v4188 = vld [vmem:[#allocation9 + $0x124] sm:$0xf]
        %v4189 = vld [vmem:[#allocation9 + $0x128] sm:$0xf]
        %v4190 = vld [vmem:[#allocation9 + $0x12c] sm:$0xf]
        %v4191 = vld [vmem:[#allocation9 + $0x130] sm:$0xf]
        %v4192 = vld [vmem:[#allocation9 + $0x134] sm:$0xf]
        %v4193 = vld [vmem:[#allocation9 + $0x138] sm:$0xf]
        %v4194 = vld [vmem:[#allocation9 + $0x13c] sm:$0xf]
        %v4211 = vunpack.c.l.b16 %v4179
        %v4212 = vunpack.c.l.b16 %v4180
        %v4213 = vunpack.c.l.b16 %v4181
        %v4214 = vunpack.c.l.b16 %v4182
        %v4215 = vunpack.c.l.b16 %v4183
        %v4216 = vunpack.c.l.b16 %v4184
        %v4217 = vunpack.c.l.b16 %v4185
        %v4218 = vunpack.c.l.b16 %v4186
        %v4219 = vunpack.c.l.b16 %v4187
        %v4220 = vunpack.c.l.b16 %v4188
        %v4221 = vunpack.c.l.b16 %v4189
        %v4222 = vunpack.c.l.b16 %v4190
        %v4223 = vunpack.c.l.b16 %v4191
        %v4224 = vunpack.c.l.b16 %v4192
        %v4225 = vunpack.c.l.b16 %v4193
        %v4226 = vunpack.c.l.b16 %v4194
        %v4227 = vpack.c.b16 %v4212, %v4211
        %v4228 = vpack.c.b16 %v4214, %v4213
        %v4229 = vpack.c.b16 %v4216, %v4215
        %v4230 = vpack.c.b16 %v4218, %v4217
        %v4231 = vpack.c.b16 %v4220, %v4219
        %v4232 = vpack.c.b16 %v4222, %v4221
        %v4233 = vpack.c.b16 %v4224, %v4223
        %v4234 = vpack.c.b16 %v4226, %v4225
        %4243 = vmatprep.subr.bf16.mxu0 0
        %4244 = vmatpush1.bf16.msra.mxu0 %v4234
        %4245 = vmatprep.subr.bf16.mxu0 0
        %4246 = vmatpush1.bf16.msra.mxu0 %v4233
        %4247 = vmatprep.subr.bf16.mxu0 0
        %4248 = vmatpush1.bf16.msra.mxu0 %v4232
        %4249 = vmatprep.subr.bf16.mxu0 0
        %4250 = vmatpush1.bf16.msra.mxu0 %v4231
        %4251 = vmatprep.subr.bf16.mxu0 0
        %4252 = vmatpush1.bf16.msra.mxu0 %v4230
        %4253 = vmatprep.subr.bf16.mxu0 0
        %4254 = vmatpush1.bf16.msra.mxu0 %v4229
        %4255 = vmatprep.subr.bf16.mxu0 0
        %4256 = vmatpush1.bf16.msra.mxu0 %v4228
        %4257 = vmatprep.subr.bf16.mxu0 0
        %4258 = vmatpush1.bf16.msra.mxu0 %v4227
        %4259 = vmatprep.subr.bf16.mxu0 0
        %4260 = vmatpush2.bf16.msra.mxu0 0
        %4261 = vmatprep.subr.bf16.mxu0 0
        %4262 = vmatpush2.bf16.msra.mxu0 0
        %4263 = vmatprep.subr.bf16.mxu0 0
        %4264 = vmatpush2.bf16.msra.mxu0 0
        %4265 = vmatprep.subr.bf16.mxu0 0
        %4266 = vmatpush2.bf16.msra.mxu0 0
        %4267 = vmatprep.subr.bf16.mxu0 0
        %4268 = vmatpush2.bf16.msra.mxu0 0
        %4269 = vmatprep.subr.bf16.mxu0 0
        %4270 = vmatpush2.bf16.msra.mxu0 0
        %4271 = vmatprep.subr.bf16.mxu0 0
        %4272 = vmatpush2.bf16.msra.mxu0 0
        %4273 = vmatprep.subr.bf16.mxu0 0
        %4274 = vmatpush2.bf16.msra.mxu0 0
        %4275 = vmatprep.mubr.bf16.mxu0 0
        %4276 = vmatmul.mubr.bf16.gmra.mxu0 %v4178
        %v4277 = vpop.f32.mrf.mxu0
        %v4278 = vadd.f32 0.0, %v4277
        %v4279 = vpop.f32.mrf.mxu0
        %v4280 = vpop.f32.mrf.mxu0
        %v4281 = vpop.f32.mrf.mxu0
        %4282 = vdwg.mxu0
        %v4283 = vadd.f32 %v4122, %v4278
        %s4284 = scalar_lea.vmem %s8, 5
        %v4285 = vld [vmem:[%s4284] sm:$0x1]
        %4286 = vset.pattern.permute.xlu0 0
        %4287 = vperm.xlu0 %4286, %v4285
        %v4288 = vpop.permute.xlu0 %4287
        %v4289 = vlaneseq
        %v4290 = vshrl.u32 %v4289, 7
        %v4291 = vsub.s32 0, %v4290
        %v4292 = vrot.slane %v4288, %v4291
        %vm4293 = vcmp.eq.s32.totalorder %v809, %v4292
        %v4294 = vsel %vm4293, 1.0, 0.0
        %v4295 = vpack.c.bf16 %v4294, %v4294
        %v4297 = vsel %vm3485, %v4295, 0
        %4299 = vmatprep.subr.bf16.mxu0 0
        %4300 = vmatpush1.bf16.msra.mxu0 0
        %4301 = vmatprep.subr.bf16.mxu0 0
        %4302 = vmatpush1.bf16.msra.mxu0 0
        %4303 = vmatprep.subr.bf16.mxu0 0
        %4304 = vmatpush1.bf16.msra.mxu0 0
        %4305 = vmatprep.subr.bf16.mxu0 0
        %4306 = vmatpush1.bf16.msra.mxu0 0
        %4307 = vmatprep.subr.bf16.mxu0 0
        %4308 = vmatpush1.bf16.msra.mxu0 0
        %4309 = vmatprep.subr.bf16.mxu0 0
        %4310 = vmatpush1.bf16.msra.mxu0 0
        %4311 = vmatprep.subr.bf16.mxu0 0
        %4312 = vmatpush1.bf16.msra.mxu0 0
        %4313 = vmatprep.subr.bf16.mxu0 0
        %4314 = vmatpush1.bf16.msra.mxu0 %v3494
        %4315 = vmatprep.subr.bf16.mxu0 0
        %4316 = vmatpush2.bf16.msra.mxu0 0
        %4317 = vmatprep.subr.bf16.mxu0 0
        %4318 = vmatpush2.bf16.msra.mxu0 0
        %4319 = vmatprep.subr.bf16.mxu0 0
        %4320 = vmatpush2.bf16.msra.mxu0 0
        %4321 = vmatprep.subr.bf16.mxu0 0
        %4322 = vmatpush2.bf16.msra.mxu0 0
        %4323 = vmatprep.subr.bf16.mxu0 0
        %4324 = vmatpush2.bf16.msra.mxu0 0
        %4325 = vmatprep.subr.bf16.mxu0 0
        %4326 = vmatpush2.bf16.msra.mxu0 0
        %4327 = vmatprep.subr.bf16.mxu0 0
        %4328 = vmatpush2.bf16.msra.mxu0 0
        %4329 = vmatprep.subr.bf16.mxu0 0
        %4330 = vmatpush2.bf16.msra.mxu0 0
        %4331 = vmatprep.mubr.bf16.mxu0 0
        %4332 = vmatmul.mubr.bf16.gmra.mxu0 %v4297
        %v4333 = vpop.f32.mrf.mxu0
        %v4334 = vadd.f32 0.0, %v4333
        %v4335 = vpop.f32.mrf.mxu0
        %v4336 = vpop.f32.mrf.mxu0
        %v4337 = vpop.f32.mrf.mxu0
        %4338 = vdwg.mxu0
        %v4339 = vpack.c.bf16 %v4334, %v4334
        %v4340 = vld [vmem:[#allocation9 + $0x140] sm:$0xf]
        %v4341 = vld [vmem:[#allocation9 + $0x144] sm:$0xf]
        %v4342 = vld [vmem:[#allocation9 + $0x148] sm:$0xf]
        %v4343 = vld [vmem:[#allocation9 + $0x14c] sm:$0xf]
        %v4344 = vld [vmem:[#allocation9 + $0x150] sm:$0xf]
        %v4345 = vld [vmem:[#allocation9 + $0x154] sm:$0xf]
        %v4346 = vld [vmem:[#allocation9 + $0x158] sm:$0xf]
        %v4347 = vld [vmem:[#allocation9 + $0x15c] sm:$0xf]
        %v4348 = vld [vmem:[#allocation9 + $0x160] sm:$0xf]
        %v4349 = vld [vmem:[#allocation9 + $0x164] sm:$0xf]
        %v4350 = vld [vmem:[#allocation9 + $0x168] sm:$0xf]
        %v4351 = vld [vmem:[#allocation9 + $0x16c] sm:$0xf]
        %v4352 = vld [vmem:[#allocation9 + $0x170] sm:$0xf]
        %v4353 = vld [vmem:[#allocation9 + $0x174] sm:$0xf]
        %v4354 = vld [vmem:[#allocation9 + $0x178] sm:$0xf]
        %v4355 = vld [vmem:[#allocation9 + $0x17c] sm:$0xf]
        %v4372 = vunpack.c.l.b16 %v4340
        %v4373 = vunpack.c.l.b16 %v4341
        %v4374 = vunpack.c.l.b16 %v4342
        %v4375 = vunpack.c.l.b16 %v4343
        %v4376 = vunpack.c.l.b16 %v4344
        %v4377 = vunpack.c.l.b16 %v4345
        %v4378 = vunpack.c.l.b16 %v4346
        %v4379 = vunpack.c.l.b16 %v4347
        %v4380 = vunpack.c.l.b16 %v4348
        %v4381 = vunpack.c.l.b16 %v4349
        %v4382 = vunpack.c.l.b16 %v4350
        %v4383 = vunpack.c.l.b16 %v4351
        %v4384 = vunpack.c.l.b16 %v4352
        %v4385 = vunpack.c.l.b16 %v4353
        %v4386 = vunpack.c.l.b16 %v4354
        %v4387 = vunpack.c.l.b16 %v4355
        %v4388 = vpack.c.b16 %v4373, %v4372
        %v4389 = vpack.c.b16 %v4375, %v4374
        %v4390 = vpack.c.b16 %v4377, %v4376
        %v4391 = vpack.c.b16 %v4379, %v4378
        %v4392 = vpack.c.b16 %v4381, %v4380
        %v4393 = vpack.c.b16 %v4383, %v4382
        %v4394 = vpack.c.b16 %v4385, %v4384
        %v4395 = vpack.c.b16 %v4387, %v4386
        %4404 = vmatprep.subr.bf16.mxu0 0
        %4405 = vmatpush1.bf16.msra.mxu0 %v4395
        %4406 = vmatprep.subr.bf16.mxu0 0
        %4407 = vmatpush1.bf16.msra.mxu0 %v4394
        %4408 = vmatprep.subr.bf16.mxu0 0
        %4409 = vmatpush1.bf16.msra.mxu0 %v4393
        %4410 = vmatprep.subr.bf16.mxu0 0
        %4411 = vmatpush1.bf16.msra.mxu0 %v4392
        %4412 = vmatprep.subr.bf16.mxu0 0
        %4413 = vmatpush1.bf16.msra.mxu0 %v4391
        %4414 = vmatprep.subr.bf16.mxu0 0
        %4415 = vmatpush1.bf16.msra.mxu0 %v4390
        %4416 = vmatprep.subr.bf16.mxu0 0
        %4417 = vmatpush1.bf16.msra.mxu0 %v4389
        %4418 = vmatprep.subr.bf16.mxu0 0
        %4419 = vmatpush1.bf16.msra.mxu0 %v4388
        %4420 = vmatprep.subr.bf16.mxu0 0
        %4421 = vmatpush2.bf16.msra.mxu0 0
        %4422 = vmatprep.subr.bf16.mxu0 0
        %4423 = vmatpush2.bf16.msra.mxu0 0
        %4424 = vmatprep.subr.bf16.mxu0 0
        %4425 = vmatpush2.bf16.msra.mxu0 0
        %4426 = vmatprep.subr.bf16.mxu0 0
        %4427 = vmatpush2.bf16.msra.mxu0 0
        %4428 = vmatprep.subr.bf16.mxu0 0
        %4429 = vmatpush2.bf16.msra.mxu0 0
        %4430 = vmatprep.subr.bf16.mxu0 0
        %4431 = vmatpush2.bf16.msra.mxu0 0
        %4432 = vmatprep.subr.bf16.mxu0 0
        %4433 = vmatpush2.bf16.msra.mxu0 0
        %4434 = vmatprep.subr.bf16.mxu0 0
        %4435 = vmatpush2.bf16.msra.mxu0 0
        %4436 = vmatprep.mubr.bf16.mxu0 0
        %4437 = vmatmul.mubr.bf16.gmra.mxu0 %v4339
        %v4438 = vpop.f32.mrf.mxu0
        %v4439 = vadd.f32 0.0, %v4438
        %v4440 = vpop.f32.mrf.mxu0
        %v4441 = vpop.f32.mrf.mxu0
        %v4442 = vpop.f32.mrf.mxu0
        %4443 = vdwg.mxu0
        %v4444 = vadd.f32 %v4283, %v4439
        %s4445 = scalar_lea.vmem %s8, 6
        %v4446 = vld [vmem:[%s4445] sm:$0x1]
        %4447 = vset.pattern.permute.xlu0 0
        %4448 = vperm.xlu0 %4447, %v4446
        %v4449 = vpop.permute.xlu0 %4448
        %v4450 = vlaneseq
        %v4451 = vshrl.u32 %v4450, 7
        %v4452 = vsub.s32 0, %v4451
        %v4453 = vrot.slane %v4449, %v4452
        %vm4454 = vcmp.eq.s32.totalorder %v809, %v4453
        %v4455 = vsel %vm4454, 1.0, 0.0
        %v4456 = vpack.c.bf16 %v4455, %v4455
        %v4458 = vsel %vm3485, %v4456, 0
        %4460 = vmatprep.subr.bf16.mxu0 0
        %4461 = vmatpush1.bf16.msra.mxu0 0
        %4462 = vmatprep.subr.bf16.mxu0 0
        %4463 = vmatpush1.bf16.msra.mxu0 0
        %4464 = vmatprep.subr.bf16.mxu0 0
        %4465 = vmatpush1.bf16.msra.mxu0 0
        %4466 = vmatprep.subr.bf16.mxu0 0
        %4467 = vmatpush1.bf16.msra.mxu0 0
        %4468 = vmatprep.subr.bf16.mxu0 0
        %4469 = vmatpush1.bf16.msra.mxu0 0
        %4470 = vmatprep.subr.bf16.mxu0 0
        %4471 = vmatpush1.bf16.msra.mxu0 0
        %4472 = vmatprep.subr.bf16.mxu0 0
        %4473 = vmatpush1.bf16.msra.mxu0 0
        %4474 = vmatprep.subr.bf16.mxu0 0
        %4475 = vmatpush1.bf16.msra.mxu0 %v3494
        %4476 = vmatprep.subr.bf16.mxu0 0
        %4477 = vmatpush2.bf16.msra.mxu0 0
        %4478 = vmatprep.subr.bf16.mxu0 0
        %4479 = vmatpush2.bf16.msra.mxu0 0
        %4480 = vmatprep.subr.bf16.mxu0 0
        %4481 = vmatpush2.bf16.msra.mxu0 0
        %4482 = vmatprep.subr.bf16.mxu0 0
        %4483 = vmatpush2.bf16.msra.mxu0 0
        %4484 = vmatprep.subr.bf16.mxu0 0
        %4485 = vmatpush2.bf16.msra.mxu0 0
        %4486 = vmatprep.subr.bf16.mxu0 0
        %4487 = vmatpush2.bf16.msra.mxu0 0
        %4488 = vmatprep.subr.bf16.mxu0 0
        %4489 = vmatpush2.bf16.msra.mxu0 0
        %4490 = vmatprep.subr.bf16.mxu0 0
        %4491 = vmatpush2.bf16.msra.mxu0 0
        %4492 = vmatprep.mubr.bf16.mxu0 0
        %4493 = vmatmul.mubr.bf16.gmra.mxu0 %v4458
        %v4494 = vpop.f32.mrf.mxu0
        %v4495 = vadd.f32 0.0, %v4494
        %v4496 = vpop.f32.mrf.mxu0
        %v4497 = vpop.f32.mrf.mxu0
        %v4498 = vpop.f32.mrf.mxu0
        %4499 = vdwg.mxu0
        %v4500 = vpack.c.bf16 %v4495, %v4495
        %v4501 = vld [vmem:[#allocation9 + $0x180] sm:$0xf]
        %v4502 = vld [vmem:[#allocation9 + $0x184] sm:$0xf]
        %v4503 = vld [vmem:[#allocation9 + $0x188] sm:$0xf]
        %v4504 = vld [vmem:[#allocation9 + $0x18c] sm:$0xf]
        %v4505 = vld [vmem:[#allocation9 + $0x190] sm:$0xf]
        %v4506 = vld [vmem:[#allocation9 + $0x194] sm:$0xf]
        %v4507 = vld [vmem:[#allocation9 + $0x198] sm:$0xf]
        %v4508 = vld [vmem:[#allocation9 + $0x19c] sm:$0xf]
        %v4509 = vld [vmem:[#allocation9 + $0x1a0] sm:$0xf]
        %v4510 = vld [vmem:[#allocation9 + $0x1a4] sm:$0xf]
        %v4511 = vld [vmem:[#allocation9 + $0x1a8] sm:$0xf]
        %v4512 = vld [vmem:[#allocation9 + $0x1ac] sm:$0xf]
        %v4513 = vld [vmem:[#allocation9 + $0x1b0] sm:$0xf]
        %v4514 = vld [vmem:[#allocation9 + $0x1b4] sm:$0xf]
        %v4515 = vld [vmem:[#allocation9 + $0x1b8] sm:$0xf]
        %v4516 = vld [vmem:[#allocation9 + $0x1bc] sm:$0xf]
        %v4533 = vunpack.c.l.b16 %v4501
        %v4534 = vunpack.c.l.b16 %v4502
        %v4535 = vunpack.c.l.b16 %v4503
        %v4536 = vunpack.c.l.b16 %v4504
        %v4537 = vunpack.c.l.b16 %v4505
        %v4538 = vunpack.c.l.b16 %v4506
        %v4539 = vunpack.c.l.b16 %v4507
        %v4540 = vunpack.c.l.b16 %v4508
        %v4541 = vunpack.c.l.b16 %v4509
        %v4542 = vunpack.c.l.b16 %v4510
        %v4543 = vunpack.c.l.b16 %v4511
        %v4544 = vunpack.c.l.b16 %v4512
        %v4545 = vunpack.c.l.b16 %v4513
        %v4546 = vunpack.c.l.b16 %v4514
        %v4547 = vunpack.c.l.b16 %v4515
        %v4548 = vunpack.c.l.b16 %v4516
        %v4549 = vpack.c.b16 %v4534, %v4533
        %v4550 = vpack.c.b16 %v4536, %v4535
        %v4551 = vpack.c.b16 %v4538, %v4537
        %v4552 = vpack.c.b16 %v4540, %v4539
        %v4553 = vpack.c.b16 %v4542, %v4541
        %v4554 = vpack.c.b16 %v4544, %v4543
        %v4555 = vpack.c.b16 %v4546, %v4545
        %v4556 = vpack.c.b16 %v4548, %v4547
        %4565 = vmatprep.subr.bf16.mxu0 0
        %4566 = vmatpush1.bf16.msra.mxu0 %v4556
        %4567 = vmatprep.subr.bf16.mxu0 0
        %4568 = vmatpush1.bf16.msra.mxu0 %v4555
        %4569 = vmatprep.subr.bf16.mxu0 0
        %4570 = vmatpush1.bf16.msra.mxu0 %v4554
        %4571 = vmatprep.subr.bf16.mxu0 0
        %4572 = vmatpush1.bf16.msra.mxu0 %v4553
        %4573 = vmatprep.subr.bf16.mxu0 0
        %4574 = vmatpush1.bf16.msra.mxu0 %v4552
        %4575 = vmatprep.subr.bf16.mxu0 0
        %4576 = vmatpush1.bf16.msra.mxu0 %v4551
        %4577 = vmatprep.subr.bf16.mxu0 0
        %4578 = vmatpush1.bf16.msra.mxu0 %v4550
        %4579 = vmatprep.subr.bf16.mxu0 0
        %4580 = vmatpush1.bf16.msra.mxu0 %v4549
        %4581 = vmatprep.subr.bf16.mxu0 0
        %4582 = vmatpush2.bf16.msra.mxu0 0
        %4583 = vmatprep.subr.bf16.mxu0 0
        %4584 = vmatpush2.bf16.msra.mxu0 0
        %4585 = vmatprep.subr.bf16.mxu0 0
        %4586 = vmatpush2.bf16.msra.mxu0 0
        %4587 = vmatprep.subr.bf16.mxu0 0
        %4588 = vmatpush2.bf16.msra.mxu0 0
        %4589 = vmatprep.subr.bf16.mxu0 0
        %4590 = vmatpush2.bf16.msra.mxu0 0
        %4591 = vmatprep.subr.bf16.mxu0 0
        %4592 = vmatpush2.bf16.msra.mxu0 0
        %4593 = vmatprep.subr.bf16.mxu0 0
        %4594 = vmatpush2.bf16.msra.mxu0 0
        %4595 = vmatprep.subr.bf16.mxu0 0
        %4596 = vmatpush2.bf16.msra.mxu0 0
        %4597 = vmatprep.mubr.bf16.mxu0 0
        %4598 = vmatmul.mubr.bf16.gmra.mxu0 %v4500
        %v4599 = vpop.f32.mrf.mxu0
        %v4600 = vadd.f32 0.0, %v4599
        %v4601 = vpop.f32.mrf.mxu0
        %v4602 = vpop.f32.mrf.mxu0
        %v4603 = vpop.f32.mrf.mxu0
        %4604 = vdwg.mxu0
        %v4605 = vadd.f32 %v4444, %v4600
        %s4606 = scalar_lea.vmem %s8, 7
        %v4607 = vld [vmem:[%s4606] sm:$0x1]
        %4608 = vset.pattern.permute.xlu0 0
        %4609 = vperm.xlu0 %4608, %v4607
        %v4610 = vpop.permute.xlu0 %4609
        %v4611 = vlaneseq
        %v4612 = vshrl.u32 %v4611, 7
        %v4613 = vsub.s32 0, %v4612
        %v4614 = vrot.slane %v4610, %v4613
        %vm4615 = vcmp.eq.s32.totalorder %v809, %v4614
        %v4616 = vsel %vm4615, 1.0, 0.0
        %v4617 = vpack.c.bf16 %v4616, %v4616
        %v4619 = vsel %vm3485, %v4617, 0
        %4621 = vmatprep.subr.bf16.mxu0 0
        %4622 = vmatpush1.bf16.msra.mxu0 0
        %4623 = vmatprep.subr.bf16.mxu0 0
        %4624 = vmatpush1.bf16.msra.mxu0 0
        %4625 = vmatprep.subr.bf16.mxu0 0
        %4626 = vmatpush1.bf16.msra.mxu0 0
        %4627 = vmatprep.subr.bf16.mxu0 0
        %4628 = vmatpush1.bf16.msra.mxu0 0
        %4629 = vmatprep.subr.bf16.mxu0 0
        %4630 = vmatpush1.bf16.msra.mxu0 0
        %4631 = vmatprep.subr.bf16.mxu0 0
        %4632 = vmatpush1.bf16.msra.mxu0 0
        %4633 = vmatprep.subr.bf16.mxu0 0
        %4634 = vmatpush1.bf16.msra.mxu0 0
        %4635 = vmatprep.subr.bf16.mxu0 0
        %4636 = vmatpush1.bf16.msra.mxu0 %v3494
        %4637 = vmatprep.subr.bf16.mxu0 0
        %4638 = vmatpush2.bf16.msra.mxu0 0
        %4639 = vmatprep.subr.bf16.mxu0 0
        %4640 = vmatpush2.bf16.msra.mxu0 0
        %4641 = vmatprep.subr.bf16.mxu0 0
        %4642 = vmatpush2.bf16.msra.mxu0 0
        %4643 = vmatprep.subr.bf16.mxu0 0
        %4644 = vmatpush2.bf16.msra.mxu0 0
        %4645 = vmatprep.subr.bf16.mxu0 0
        %4646 = vmatpush2.bf16.msra.mxu0 0
        %4647 = vmatprep.subr.bf16.mxu0 0
        %4648 = vmatpush2.bf16.msra.mxu0 0
        %4649 = vmatprep.subr.bf16.mxu0 0
        %4650 = vmatpush2.bf16.msra.mxu0 0
        %4651 = vmatprep.subr.bf16.mxu0 0
        %4652 = vmatpush2.bf16.msra.mxu0 0
        %4653 = vmatprep.mubr.bf16.mxu0 0
        %4654 = vmatmul.mubr.bf16.gmra.mxu0 %v4619
        %v4655 = vpop.f32.mrf.mxu0
        %v4656 = vadd.f32 0.0, %v4655
        %v4657 = vpop.f32.mrf.mxu0
        %v4658 = vpop.f32.mrf.mxu0
        %v4659 = vpop.f32.mrf.mxu0
        %4660 = vdwg.mxu0
        %v4661 = vpack.c.bf16 %v4656, %v4656
        %v4662 = vld [vmem:[#allocation9 + $0x1c0] sm:$0xf]
        %v4663 = vld [vmem:[#allocation9 + $0x1c4] sm:$0xf]
        %v4664 = vld [vmem:[#allocation9 + $0x1c8] sm:$0xf]
        %v4665 = vld [vmem:[#allocation9 + $0x1cc] sm:$0xf]
        %v4666 = vld [vmem:[#allocation9 + $0x1d0] sm:$0xf]
        %v4667 = vld [vmem:[#allocation9 + $0x1d4] sm:$0xf]
        %v4668 = vld [vmem:[#allocation9 + $0x1d8] sm:$0xf]
        %v4669 = vld [vmem:[#allocation9 + $0x1dc] sm:$0xf]
        %v4670 = vld [vmem:[#allocation9 + $0x1e0] sm:$0xf]
        %v4671 = vld [vmem:[#allocation9 + $0x1e4] sm:$0xf]
        %v4672 = vld [vmem:[#allocation9 + $0x1e8] sm:$0xf]
        %v4673 = vld [vmem:[#allocation9 + $0x1ec] sm:$0xf]
        %v4674 = vld [vmem:[#allocation9 + $0x1f0] sm:$0xf]
        %v4675 = vld [vmem:[#allocation9 + $0x1f4] sm:$0xf]
        %v4676 = vld [vmem:[#allocation9 + $0x1f8] sm:$0xf]
        %v4677 = vld [vmem:[#allocation9 + $0x1fc] sm:$0xf]
        %v4694 = vunpack.c.l.b16 %v4662
        %v4695 = vunpack.c.l.b16 %v4663
        %v4696 = vunpack.c.l.b16 %v4664
        %v4697 = vunpack.c.l.b16 %v4665
        %v4698 = vunpack.c.l.b16 %v4666
        %v4699 = vunpack.c.l.b16 %v4667
        %v4700 = vunpack.c.l.b16 %v4668
        %v4701 = vunpack.c.l.b16 %v4669
        %v4702 = vunpack.c.l.b16 %v4670
        %v4703 = vunpack.c.l.b16 %v4671
        %v4704 = vunpack.c.l.b16 %v4672
        %v4705 = vunpack.c.l.b16 %v4673
        %v4706 = vunpack.c.l.b16 %v4674
        %v4707 = vunpack.c.l.b16 %v4675
        %v4708 = vunpack.c.l.b16 %v4676
        %v4709 = vunpack.c.l.b16 %v4677
        %v4710 = vpack.c.b16 %v4695, %v4694
        %v4711 = vpack.c.b16 %v4697, %v4696
        %v4712 = vpack.c.b16 %v4699, %v4698
        %v4713 = vpack.c.b16 %v4701, %v4700
        %v4714 = vpack.c.b16 %v4703, %v4702
        %v4715 = vpack.c.b16 %v4705, %v4704
        %v4716 = vpack.c.b16 %v4707, %v4706
        %v4717 = vpack.c.b16 %v4709, %v4708
        %4726 = vmatprep.subr.bf16.mxu0 0
        %4727 = vmatpush1.bf16.msra.mxu0 %v4717
        %4728 = vmatprep.subr.bf16.mxu0 0
        %4729 = vmatpush1.bf16.msra.mxu0 %v4716
        %4730 = vmatprep.subr.bf16.mxu0 0
        %4731 = vmatpush1.bf16.msra.mxu0 %v4715
        %4732 = vmatprep.subr.bf16.mxu0 0
        %4733 = vmatpush1.bf16.msra.mxu0 %v4714
        %4734 = vmatprep.subr.bf16.mxu0 0
        %4735 = vmatpush1.bf16.msra.mxu0 %v4713
        %4736 = vmatprep.subr.bf16.mxu0 0
        %4737 = vmatpush1.bf16.msra.mxu0 %v4712
        %4738 = vmatprep.subr.bf16.mxu0 0
        %4739 = vmatpush1.bf16.msra.mxu0 %v4711
        %4740 = vmatprep.subr.bf16.mxu0 0
        %4741 = vmatpush1.bf16.msra.mxu0 %v4710
        %4742 = vmatprep.subr.bf16.mxu0 0
        %4743 = vmatpush2.bf16.msra.mxu0 0
        %4744 = vmatprep.subr.bf16.mxu0 0
        %4745 = vmatpush2.bf16.msra.mxu0 0
        %4746 = vmatprep.subr.bf16.mxu0 0
        %4747 = vmatpush2.bf16.msra.mxu0 0
        %4748 = vmatprep.subr.bf16.mxu0 0
        %4749 = vmatpush2.bf16.msra.mxu0 0
        %4750 = vmatprep.subr.bf16.mxu0 0
        %4751 = vmatpush2.bf16.msra.mxu0 0
        %4752 = vmatprep.subr.bf16.mxu0 0
        %4753 = vmatpush2.bf16.msra.mxu0 0
        %4754 = vmatprep.subr.bf16.mxu0 0
        %4755 = vmatpush2.bf16.msra.mxu0 0
        %4756 = vmatprep.subr.bf16.mxu0 0
        %4757 = vmatpush2.bf16.msra.mxu0 0
        %4758 = vmatprep.mubr.bf16.mxu0 0
        %4759 = vmatmul.mubr.bf16.gmra.mxu0 %v4661
        %v4760 = vpop.f32.mrf.mxu0
        %v4761 = vadd.f32 0.0, %v4760
        %v4762 = vpop.f32.mrf.mxu0
        %v4763 = vpop.f32.mrf.mxu0
        %v4764 = vpop.f32.mrf.mxu0
        %4765 = vdwg.mxu0
        %v4766 = vadd.f32 %v4605, %v4761
        %s4767 = scalar_lea.vmem %s8, 8
        %v4768 = vld [vmem:[%s4767] sm:$0x1]
        %4769 = vset.pattern.permute.xlu0 0
        %4770 = vperm.xlu0 %4769, %v4768
        %v4771 = vpop.permute.xlu0 %4770
        %v4772 = vlaneseq
        %v4773 = vshrl.u32 %v4772, 7
        %v4774 = vsub.s32 0, %v4773
        %v4775 = vrot.slane %v4771, %v4774
        %vm4776 = vcmp.eq.s32.totalorder %v809, %v4775
        %v4777 = vsel %vm4776, 1.0, 0.0
        %v4778 = vpack.c.bf16 %v4777, %v4777
        %v4780 = vsel %vm3485, %v4778, 0
        %4782 = vmatprep.subr.bf16.mxu0 0
        %4783 = vmatpush1.bf16.msra.mxu0 0
        %4784 = vmatprep.subr.bf16.mxu0 0
        %4785 = vmatpush1.bf16.msra.mxu0 0
        %4786 = vmatprep.subr.bf16.mxu0 0
        %4787 = vmatpush1.bf16.msra.mxu0 0
        %4788 = vmatprep.subr.bf16.mxu0 0
        %4789 = vmatpush1.bf16.msra.mxu0 0
        %4790 = vmatprep.subr.bf16.mxu0 0
        %4791 = vmatpush1.bf16.msra.mxu0 0
        %4792 = vmatprep.subr.bf16.mxu0 0
        %4793 = vmatpush1.bf16.msra.mxu0 0
        %4794 = vmatprep.subr.bf16.mxu0 0
        %4795 = vmatpush1.bf16.msra.mxu0 0
        %4796 = vmatprep.subr.bf16.mxu0 0
        %4797 = vmatpush1.bf16.msra.mxu0 %v3494
        %4798 = vmatprep.subr.bf16.mxu0 0
        %4799 = vmatpush2.bf16.msra.mxu0 0
        %4800 = vmatprep.subr.bf16.mxu0 0
        %4801 = vmatpush2.bf16.msra.mxu0 0
        %4802 = vmatprep.subr.bf16.mxu0 0
        %4803 = vmatpush2.bf16.msra.mxu0 0
        %4804 = vmatprep.subr.bf16.mxu0 0
        %4805 = vmatpush2.bf16.msra.mxu0 0
        %4806 = vmatprep.subr.bf16.mxu0 0
        %4807 = vmatpush2.bf16.msra.mxu0 0
        %4808 = vmatprep.subr.bf16.mxu0 0
        %4809 = vmatpush2.bf16.msra.mxu0 0
        %4810 = vmatprep.subr.bf16.mxu0 0
        %4811 = vmatpush2.bf16.msra.mxu0 0
        %4812 = vmatprep.subr.bf16.mxu0 0
        %4813 = vmatpush2.bf16.msra.mxu0 0
        %4814 = vmatprep.mubr.bf16.mxu0 0
        %4815 = vmatmul.mubr.bf16.gmra.mxu0 %v4780
        %v4816 = vpop.f32.mrf.mxu0
        %v4817 = vadd.f32 0.0, %v4816
        %v4818 = vpop.f32.mrf.mxu0
        %v4819 = vpop.f32.mrf.mxu0
        %v4820 = vpop.f32.mrf.mxu0
        %4821 = vdwg.mxu0
        %v4822 = vpack.c.bf16 %v4817, %v4817
        %v4823 = vld [vmem:[#allocation9 + $0x200] sm:$0xf]
        %v4824 = vld [vmem:[#allocation9 + $0x204] sm:$0xf]
        %v4825 = vld [vmem:[#allocation9 + $0x208] sm:$0xf]
        %v4826 = vld [vmem:[#allocation9 + $0x20c] sm:$0xf]
        %v4827 = vld [vmem:[#allocation9 + $0x210] sm:$0xf]
        %v4828 = vld [vmem:[#allocation9 + $0x214] sm:$0xf]
        %v4829 = vld [vmem:[#allocation9 + $0x218] sm:$0xf]
        %v4830 = vld [vmem:[#allocation9 + $0x21c] sm:$0xf]
        %v4831 = vld [vmem:[#allocation9 + $0x220] sm:$0xf]
        %v4832 = vld [vmem:[#allocation9 + $0x224] sm:$0xf]
        %v4833 = vld [vmem:[#allocation9 + $0x228] sm:$0xf]
        %v4834 = vld [vmem:[#allocation9 + $0x22c] sm:$0xf]
        %v4835 = vld [vmem:[#allocation9 + $0x230] sm:$0xf]
        %v4836 = vld [vmem:[#allocation9 + $0x234] sm:$0xf]
        %v4837 = vld [vmem:[#allocation9 + $0x238] sm:$0xf]
        %v4838 = vld [vmem:[#allocation9 + $0x23c] sm:$0xf]
        %v4855 = vunpack.c.l.b16 %v4823
        %v4856 = vunpack.c.l.b16 %v4824
        %v4857 = vunpack.c.l.b16 %v4825
        %v4858 = vunpack.c.l.b16 %v4826
        %v4859 = vunpack.c.l.b16 %v4827
        %v4860 = vunpack.c.l.b16 %v4828
        %v4861 = vunpack.c.l.b16 %v4829
        %v4862 = vunpack.c.l.b16 %v4830
        %v4863 = vunpack.c.l.b16 %v4831
        %v4864 = vunpack.c.l.b16 %v4832
        %v4865 = vunpack.c.l.b16 %v4833
        %v4866 = vunpack.c.l.b16 %v4834
        %v4867 = vunpack.c.l.b16 %v4835
        %v4868 = vunpack.c.l.b16 %v4836
        %v4869 = vunpack.c.l.b16 %v4837
        %v4870 = vunpack.c.l.b16 %v4838
        %v4871 = vpack.c.b16 %v4856, %v4855
        %v4872 = vpack.c.b16 %v4858, %v4857
        %v4873 = vpack.c.b16 %v4860, %v4859
        %v4874 = vpack.c.b16 %v4862, %v4861
        %v4875 = vpack.c.b16 %v4864, %v4863
        %v4876 = vpack.c.b16 %v4866, %v4865
        %v4877 = vpack.c.b16 %v4868, %v4867
        %v4878 = vpack.c.b16 %v4870, %v4869
        %4887 = vmatprep.subr.bf16.mxu0 0
        %4888 = vmatpush1.bf16.msra.mxu0 %v4878
        %4889 = vmatprep.subr.bf16.mxu0 0
        %4890 = vmatpush1.bf16.msra.mxu0 %v4877
        %4891 = vmatprep.subr.bf16.mxu0 0
        %4892 = vmatpush1.bf16.msra.mxu0 %v4876
        %4893 = vmatprep.subr.bf16.mxu0 0
        %4894 = vmatpush1.bf16.msra.mxu0 %v4875
        %4895 = vmatprep.subr.bf16.mxu0 0
        %4896 = vmatpush1.bf16.msra.mxu0 %v4874
        %4897 = vmatprep.subr.bf16.mxu0 0
        %4898 = vmatpush1.bf16.msra.mxu0 %v4873
        %4899 = vmatprep.subr.bf16.mxu0 0
        %4900 = vmatpush1.bf16.msra.mxu0 %v4872
        %4901 = vmatprep.subr.bf16.mxu0 0
        %4902 = vmatpush1.bf16.msra.mxu0 %v4871
        %4903 = vmatprep.subr.bf16.mxu0 0
        %4904 = vmatpush2.bf16.msra.mxu0 0
        %4905 = vmatprep.subr.bf16.mxu0 0
        %4906 = vmatpush2.bf16.msra.mxu0 0
        %4907 = vmatprep.subr.bf16.mxu0 0
        %4908 = vmatpush2.bf16.msra.mxu0 0
        %4909 = vmatprep.subr.bf16.mxu0 0
        %4910 = vmatpush2.bf16.msra.mxu0 0
        %4911 = vmatprep.subr.bf16.mxu0 0
        %4912 = vmatpush2.bf16.msra.mxu0 0
        %4913 = vmatprep.subr.bf16.mxu0 0
        %4914 = vmatpush2.bf16.msra.mxu0 0
        %4915 = vmatprep.subr.bf16.mxu0 0
        %4916 = vmatpush2.bf16.msra.mxu0 0
        %4917 = vmatprep.subr.bf16.mxu0 0
        %4918 = vmatpush2.bf16.msra.mxu0 0
        %4919 = vmatprep.mubr.bf16.mxu0 0
        %4920 = vmatmul.mubr.bf16.gmra.mxu0 %v4822
        %v4921 = vpop.f32.mrf.mxu0
        %v4922 = vadd.f32 0.0, %v4921
        %v4923 = vpop.f32.mrf.mxu0
        %v4924 = vpop.f32.mrf.mxu0
        %v4925 = vpop.f32.mrf.mxu0
        %4926 = vdwg.mxu0
        %v4927 = vadd.f32 %v4766, %v4922
        %v4928 = vld [vmem:[%s7] sm:$0x1]
        %v4929 = vadd.f32 %v4927, %v4928
        %v4930 = vmax.f32 %v4929, 0.0
        %v4931 = vpack.c.bf16 %v4930, %v4930
        %v4932 = vld [vmem:[#allocation2] sm:$0x1]
        %vm4933 = vcmp.eq.s32.totalorder %v809, %v4932
        %v4934 = vsel %vm4933, 1.0, 0.0
        %v4935 = vpack.c.bf16 %v4934, %v4934
        %vm4936 = vcmask 7168
        %v4938 = vsel %vm4936, %v4935, 0
        %vm4940 = vcmask 1040384
        %v4941 = vsel 0, 4294967295, 65535
        %v4942 = vsel %vm4940, %v4941, 0
        %v4944 = vand.u32 %v4931, %v4942
        %4946 = vmatprep.subr.bf16.mxu0 0
        %4947 = vmatpush1.bf16.msra.mxu0 0
        %4948 = vmatprep.subr.bf16.mxu0 0
        %4949 = vmatpush1.bf16.msra.mxu0 0
        %4950 = vmatprep.subr.bf16.mxu0 0
        %4951 = vmatpush1.bf16.msra.mxu0 0
        %4952 = vmatprep.subr.bf16.mxu0 0
        %4953 = vmatpush1.bf16.msra.mxu0 0
        %4954 = vmatprep.subr.bf16.mxu0 0
        %4955 = vmatpush1.bf16.msra.mxu0 0
        %4956 = vmatprep.subr.bf16.mxu0 0
        %4957 = vmatpush1.bf16.msra.mxu0 0
        %4958 = vmatprep.subr.bf16.mxu0 0
        %4959 = vmatpush1.bf16.msra.mxu0 0
        %4960 = vmatprep.subr.bf16.mxu0 0
        %4961 = vmatpush1.bf16.msra.mxu0 %v4944
        %4962 = vmatprep.subr.bf16.mxu0 0
        %4963 = vmatpush2.bf16.msra.mxu0 0
        %4964 = vmatprep.subr.bf16.mxu0 0
        %4965 = vmatpush2.bf16.msra.mxu0 0
        %4966 = vmatprep.subr.bf16.mxu0 0
        %4967 = vmatpush2.bf16.msra.mxu0 0
        %4968 = vmatprep.subr.bf16.mxu0 0
        %4969 = vmatpush2.bf16.msra.mxu0 0
        %4970 = vmatprep.subr.bf16.mxu0 0
        %4971 = vmatpush2.bf16.msra.mxu0 0
        %4972 = vmatprep.subr.bf16.mxu0 0
        %4973 = vmatpush2.bf16.msra.mxu0 0
        %4974 = vmatprep.subr.bf16.mxu0 0
        %4975 = vmatpush2.bf16.msra.mxu0 0
        %4976 = vmatprep.subr.bf16.mxu0 0
        %4977 = vmatpush2.bf16.msra.mxu0 0
        %4978 = vmatprep.mubr.bf16.mxu0 0
        %4979 = vmatmul.mubr.bf16.gmra.mxu0 %v4938
        %v4980 = vpop.f32.mrf.mxu0
        %v4981 = vadd.f32 0.0, %v4980
        %v4982 = vpop.f32.mrf.mxu0
        %v4983 = vpop.f32.mrf.mxu0
        %v4984 = vpop.f32.mrf.mxu0
        %4985 = vdwg.mxu0
        %v4986 = vpack.c.bf16 %v4981, %v4981
        %v4987 = vld [vmem:[%s9] sm:$0xff]
        %v4988 = vld [vmem:[%s9 + $0x8] sm:$0xff]
        %v4989 = vld [vmem:[%s9 + $0x10] sm:$0xff]
        %v4990 = vld [vmem:[%s9 + $0x18] sm:$0xff]
        %v4991 = vld [vmem:[%s9 + $0x20] sm:$0xff]
        %v4992 = vld [vmem:[%s9 + $0x28] sm:$0xff]
        %v4993 = vld [vmem:[%s9 + $0x30] sm:$0xff]
        %v4994 = vld [vmem:[%s9 + $0x38] sm:$0xff]
        %v4995 = vld [vmem:[%s9 + $0x40] sm:$0xff]
        %v4996 = vld [vmem:[%s9 + $0x48] sm:$0xff]
        %v4997 = vld [vmem:[%s9 + $0x50] sm:$0xff]
        %v4998 = vld [vmem:[%s9 + $0x58] sm:$0xff]
        %v4999 = vld [vmem:[%s9 + $0x60] sm:$0xff]
        %v5000 = vld [vmem:[%s9 + $0x68] sm:$0xff]
        %v5001 = vld [vmem:[%s9 + $0x70] sm:$0xff]
        %v5002 = vld [vmem:[%s9 + $0x78] sm:$0xff]
        %v5003 = vld [vmem:[%s9 + $0x80] sm:$0xff]
        %v5004 = vld [vmem:[%s9 + $0x88] sm:$0xff]
        %v5005 = vld [vmem:[%s9 + $0x90] sm:$0xff]
        %v5006 = vld [vmem:[%s9 + $0x98] sm:$0xff]
        %v5007 = vld [vmem:[%s9 + $0xa0] sm:$0xff]
        %v5008 = vld [vmem:[%s9 + $0xa8] sm:$0xff]
        %v5009 = vld [vmem:[%s9 + $0xb0] sm:$0xff]
        %v5010 = vld [vmem:[%s9 + $0xb8] sm:$0xff]
        %v5011 = vld [vmem:[%s9 + $0xc0] sm:$0xff]
        %v5012 = vld [vmem:[%s9 + $0xc8] sm:$0xff]
        %v5013 = vld [vmem:[%s9 + $0xd0] sm:$0xff]
        %v5014 = vld [vmem:[%s9 + $0xd8] sm:$0xff]
        %v5015 = vld [vmem:[%s9 + $0xe0] sm:$0xff]
        %v5016 = vld [vmem:[%s9 + $0xe8] sm:$0xff]
        %v5017 = vld [vmem:[%s9 + $0xf0] sm:$0xff]
        %v5018 = vld [vmem:[%s9 + $0xf8] sm:$0xff]
        %v5019 = vld [vmem:[%s10] sm:$0xf]
        %v5052 = vunpack.c.l.b16 %v4987
        %v5053 = vunpack.c.h.b16 %v4987
        %v5054 = vunpack.c.l.b16 %v4988
        %v5055 = vunpack.c.h.b16 %v4988
        %v5056 = vunpack.c.l.b16 %v4989
        %v5057 = vunpack.c.h.b16 %v4989
        %v5058 = vunpack.c.l.b16 %v4990
        %v5059 = vunpack.c.h.b16 %v4990
        %v5060 = vunpack.c.l.b16 %v4991
        %v5061 = vunpack.c.h.b16 %v4991
        %v5062 = vunpack.c.l.b16 %v4992
        %v5063 = vunpack.c.h.b16 %v4992
        %v5064 = vunpack.c.l.b16 %v4993
        %v5065 = vunpack.c.h.b16 %v4993
        %v5066 = vunpack.c.l.b16 %v4994
        %v5067 = vunpack.c.h.b16 %v4994
        %v5068 = vunpack.c.l.b16 %v4995
        %v5069 = vunpack.c.h.b16 %v4995
        %v5070 = vunpack.c.l.b16 %v4996
        %v5071 = vunpack.c.h.b16 %v4996
        %v5072 = vunpack.c.l.b16 %v4997
        %v5073 = vunpack.c.h.b16 %v4997
        %v5074 = vunpack.c.l.b16 %v4998
        %v5075 = vunpack.c.h.b16 %v4998
        %v5076 = vunpack.c.l.b16 %v4999
        %v5077 = vunpack.c.h.b16 %v4999
        %v5078 = vunpack.c.l.b16 %v5000
        %v5079 = vunpack.c.h.b16 %v5000
        %v5080 = vunpack.c.l.b16 %v5001
        %v5081 = vunpack.c.h.b16 %v5001
        %v5082 = vunpack.c.l.b16 %v5002
        %v5083 = vunpack.c.h.b16 %v5002
        %v5084 = vunpack.c.l.b16 %v5003
        %v5085 = vunpack.c.h.b16 %v5003
        %v5086 = vunpack.c.l.b16 %v5004
        %v5087 = vunpack.c.h.b16 %v5004
        %v5088 = vunpack.c.l.b16 %v5005
        %v5089 = vunpack.c.h.b16 %v5005
        %v5090 = vunpack.c.l.b16 %v5006
        %v5091 = vunpack.c.h.b16 %v5006
        %v5092 = vunpack.c.l.b16 %v5007
        %v5093 = vunpack.c.h.b16 %v5007
        %v5094 = vunpack.c.l.b16 %v5008
        %v5095 = vunpack.c.h.b16 %v5008
        %v5096 = vunpack.c.l.b16 %v5009
        %v5097 = vunpack.c.h.b16 %v5009
        %v5098 = vunpack.c.l.b16 %v5010
        %v5099 = vunpack.c.h.b16 %v5010
        %v5100 = vunpack.c.l.b16 %v5011
        %v5101 = vunpack.c.h.b16 %v5011
        %v5102 = vunpack.c.l.b16 %v5012
        %v5103 = vunpack.c.h.b16 %v5012
        %v5104 = vunpack.c.l.b16 %v5013
        %v5105 = vunpack.c.h.b16 %v5013
        %v5106 = vunpack.c.l.b16 %v5014
        %v5107 = vunpack.c.h.b16 %v5014
        %v5108 = vunpack.c.l.b16 %v5015
        %v5109 = vunpack.c.h.b16 %v5015
        %v5110 = vunpack.c.l.b16 %v5016
        %v5111 = vunpack.c.h.b16 %v5016
        %v5112 = vunpack.c.l.b16 %v5017
        %v5113 = vunpack.c.h.b16 %v5017
        %v5114 = vunpack.c.l.b16 %v5018
        %v5115 = vunpack.c.h.b16 %v5018
        %v5116 = vpack.c.b16 %v5056, %v5052
        %v5117 = vpack.c.b16 %v5057, %v5053
        %v5118 = vpack.c.b16 %v5058, %v5054
        %v5119 = vpack.c.b16 %v5059, %v5055
        %v5120 = vpack.c.b16 %v5064, %v5060
        %v5121 = vpack.c.b16 %v5065, %v5061
        %v5122 = vpack.c.b16 %v5066, %v5062
        %v5123 = vpack.c.b16 %v5067, %v5063
        %v5124 = vpack.c.b16 %v5072, %v5068
        %v5125 = vpack.c.b16 %v5073, %v5069
        %v5126 = vpack.c.b16 %v5074, %v5070
        %v5127 = vpack.c.b16 %v5075, %v5071
        %v5128 = vpack.c.b16 %v5080, %v5076
        %v5129 = vpack.c.b16 %v5081, %v5077
        %v5130 = vpack.c.b16 %v5082, %v5078
        %v5131 = vpack.c.b16 %v5083, %v5079
        %v5132 = vpack.c.b16 %v5088, %v5084
        %v5133 = vpack.c.b16 %v5089, %v5085
        %v5134 = vpack.c.b16 %v5090, %v5086
        %v5135 = vpack.c.b16 %v5091, %v5087
        %v5136 = vpack.c.b16 %v5096, %v5092
        %v5137 = vpack.c.b16 %v5097, %v5093
        %v5138 = vpack.c.b16 %v5098, %v5094
        %v5139 = vpack.c.b16 %v5099, %v5095
        %v5140 = vpack.c.b16 %v5104, %v5100
        %v5141 = vpack.c.b16 %v5105, %v5101
        %v5142 = vpack.c.b16 %v5106, %v5102
        %v5143 = vpack.c.b16 %v5107, %v5103
        %v5144 = vpack.c.b16 %v5112, %v5108
        %v5145 = vpack.c.b16 %v5113, %v5109
        %v5146 = vpack.c.b16 %v5114, %v5110
        %v5147 = vpack.c.b16 %v5115, %v5111
        %v5181 = vlaneseq
        %v5182 = vshrl.u32 %v5181, 7
        %v5183 = vsub.s32 0, %v5182
        %v5184 = vrot.slane %v5019, %v5183
        %v5185 = vlaneseq
        %v5186 = vshrl.u32 %v5185, 7
        %v5187 = vsub.s32 1, %v5186
        %v5188 = vrot.slane %v5019, %v5187
        %v5189 = vlaneseq
        %v5190 = vshrl.u32 %v5189, 7
        %v5191 = vsub.s32 2, %v5190
        %v5192 = vrot.slane %v5019, %v5191
        %v5193 = vlaneseq
        %v5194 = vshrl.u32 %v5193, 7
        %v5195 = vsub.s32 3, %v5194
        %v5196 = vrot.slane %v5019, %v5195
        %5201 = vmatprep.subr.bf16.mxu0 %v5145
        %5202 = vmatpush1.bf16.msra.mxu0 %v5144
        %5203 = vmatprep.subr.bf16.mxu0 %v5141
        %5204 = vmatpush1.bf16.msra.mxu0 %v5140
        %5205 = vmatprep.subr.bf16.mxu0 %v5137
        %5206 = vmatpush1.bf16.msra.mxu0 %v5136
        %5207 = vmatprep.subr.bf16.mxu0 %v5133
        %5208 = vmatpush1.bf16.msra.mxu0 %v5132
        %5209 = vmatprep.subr.bf16.mxu0 %v5129
        %5210 = vmatpush1.bf16.msra.mxu0 %v5128
        %5211 = vmatprep.subr.bf16.mxu0 %v5125
        %5212 = vmatpush1.bf16.msra.mxu0 %v5124
        %5213 = vmatprep.subr.bf16.mxu0 %v5121
        %5214 = vmatpush1.bf16.msra.mxu0 %v5120
        %5215 = vmatprep.subr.bf16.mxu0 %v5117
        %5216 = vmatpush1.bf16.msra.mxu0 %v5116
        %5217 = vmatprep.subr.bf16.mxu0 0
        %5218 = vmatpush2.bf16.msra.mxu0 0
        %5219 = vmatprep.subr.bf16.mxu0 0
        %5220 = vmatpush2.bf16.msra.mxu0 0
        %5221 = vmatprep.subr.bf16.mxu0 0
        %5222 = vmatpush2.bf16.msra.mxu0 0
        %5223 = vmatprep.subr.bf16.mxu0 0
        %5224 = vmatpush2.bf16.msra.mxu0 0
        %5225 = vmatprep.subr.bf16.mxu0 0
        %5226 = vmatpush2.bf16.msra.mxu0 0
        %5227 = vmatprep.subr.bf16.mxu0 0
        %5228 = vmatpush2.bf16.msra.mxu0 0
        %5229 = vmatprep.subr.bf16.mxu0 0
        %5230 = vmatpush2.bf16.msra.mxu0 0
        %5231 = vmatprep.subr.bf16.mxu0 0
        %5232 = vmatpush2.bf16.msra.mxu0 0
        %5233 = vmatprep.mubr.bf16.mxu0 0
        %5234 = vmatmul.mubr.bf16.gmra.mxu0 %v4986
        %v5235 = vpop.f32.mrf.mxu0
        %v5236 = vadd.f32 %v5184, %v5235
        %v5237 = vpop.f32.mrf.mxu0
        %v5238 = vadd.f32 %v5188, %v5237
        %v5239 = vpop.f32.mrf.mxu0
        %v5240 = vpop.f32.mrf.mxu0
        %5241 = vdwg.mxu0
        %5242 = vmatprep.subr.bf16.mxu0 %v5147
        %5243 = vmatpush1.bf16.msra.mxu0 %v5146
        %5244 = vmatprep.subr.bf16.mxu0 %v5143
        %5245 = vmatpush1.bf16.msra.mxu0 %v5142
        %5246 = vmatprep.subr.bf16.mxu0 %v5139
        %5247 = vmatpush1.bf16.msra.mxu0 %v5138
        %5248 = vmatprep.subr.bf16.mxu0 %v5135
        %5249 = vmatpush1.bf16.msra.mxu0 %v5134
        %5250 = vmatprep.subr.bf16.mxu0 %v5131
        %5251 = vmatpush1.bf16.msra.mxu0 %v5130
        %5252 = vmatprep.subr.bf16.mxu0 %v5127
        %5253 = vmatpush1.bf16.msra.mxu0 %v5126
        %5254 = vmatprep.subr.bf16.mxu0 %v5123
        %5255 = vmatpush1.bf16.msra.mxu0 %v5122
        %5256 = vmatprep.subr.bf16.mxu0 %v5119
        %5257 = vmatpush1.bf16.msra.mxu0 %v5118
        %5258 = vmatprep.subr.bf16.mxu0 0
        %5259 = vmatpush2.bf16.msra.mxu0 0
        %5260 = vmatprep.subr.bf16.mxu0 0
        %5261 = vmatpush2.bf16.msra.mxu0 0
        %5262 = vmatprep.subr.bf16.mxu0 0
        %5263 = vmatpush2.bf16.msra.mxu0 0
        %5264 = vmatprep.subr.bf16.mxu0 0
        %5265 = vmatpush2.bf16.msra.mxu0 0
        %5266 = vmatprep.subr.bf16.mxu0 0
        %5267 = vmatpush2.bf16.msra.mxu0 0
        %5268 = vmatprep.subr.bf16.mxu0 0
        %5269 = vmatpush2.bf16.msra.mxu0 0
        %5270 = vmatprep.subr.bf16.mxu0 0
        %5271 = vmatpush2.bf16.msra.mxu0 0
        %5272 = vmatprep.subr.bf16.mxu0 0
        %5273 = vmatpush2.bf16.msra.mxu0 0
        %5274 = vmatprep.mubr.bf16.mxu0 0
        %5275 = vmatmul.mubr.bf16.gmra.mxu0 %v4986
        %v5276 = vpop.f32.mrf.mxu0
        %v5277 = vadd.f32 %v5192, %v5276
        %v5278 = vpop.f32.mrf.mxu0
        %v5279 = vadd.f32 %v5196, %v5278
        %v5280 = vpop.f32.mrf.mxu0
        %v5281 = vpop.f32.mrf.mxu0
        %5282 = vdwg.mxu0
        %v5283 = vmax.f32 %v5236, 0.0
        %v5284 = vmax.f32 %v5238, 0.0
        %v5285 = vmax.f32 %v5277, 0.0
        %v5286 = vmax.f32 %v5279, 0.0
        %v5287 = vpack.c.bf16 %v5283, %v5283
        %v5288 = vpack.c.bf16 %v5284, %v5284
        %v5289 = vpack.c.bf16 %v5285, %v5285
        %v5290 = vpack.c.bf16 %v5286, %v5286
        %v5291 = vld [vmem:[#allocation11] sm:$0xf]
        %v5292 = vld [vmem:[#allocation11 + $0x4] sm:$0xf]
        %v5293 = vld [vmem:[#allocation11 + $0x8] sm:$0xf]
        %v5294 = vld [vmem:[#allocation11 + $0xc] sm:$0xf]
        %v5295 = vld [vmem:[#allocation11 + $0x10] sm:$0xf]
        %v5296 = vld [vmem:[#allocation11 + $0x14] sm:$0xf]
        %v5297 = vld [vmem:[#allocation11 + $0x18] sm:$0xf]
        %v5298 = vld [vmem:[#allocation11 + $0x1c] sm:$0xf]
        %v5299 = vld [vmem:[#allocation11 + $0x20] sm:$0xf]
        %v5300 = vld [vmem:[#allocation11 + $0x24] sm:$0xf]
        %v5301 = vld [vmem:[#allocation11 + $0x28] sm:$0xf]
        %v5302 = vld [vmem:[#allocation11 + $0x2c] sm:$0xf]
        %v5303 = vld [vmem:[#allocation11 + $0x30] sm:$0xf]
        %v5304 = vld [vmem:[#allocation11 + $0x34] sm:$0xf]
        %v5305 = vld [vmem:[#allocation11 + $0x38] sm:$0xf]
        %v5306 = vld [vmem:[#allocation11 + $0x3c] sm:$0xf]
        %v5307 = vld [vmem:[#allocation11 + $0x40] sm:$0xf]
        %v5308 = vld [vmem:[#allocation11 + $0x44] sm:$0xf]
        %v5309 = vld [vmem:[#allocation11 + $0x48] sm:$0xf]
        %v5310 = vld [vmem:[#allocation11 + $0x4c] sm:$0xf]
        %v5311 = vld [vmem:[#allocation11 + $0x50] sm:$0xf]
        %v5312 = vld [vmem:[#allocation11 + $0x54] sm:$0xf]
        %v5313 = vld [vmem:[#allocation11 + $0x58] sm:$0xf]
        %v5314 = vld [vmem:[#allocation11 + $0x5c] sm:$0xf]
        %v5315 = vld [vmem:[#allocation11 + $0x60] sm:$0xf]
        %v5316 = vld [vmem:[#allocation11 + $0x64] sm:$0xf]
        %v5317 = vld [vmem:[#allocation11 + $0x68] sm:$0xf]
        %v5318 = vld [vmem:[#allocation11 + $0x6c] sm:$0xf]
        %v5319 = vld [vmem:[#allocation11 + $0x70] sm:$0xf]
        %v5320 = vld [vmem:[#allocation11 + $0x74] sm:$0xf]
        %v5321 = vld [vmem:[#allocation11 + $0x78] sm:$0xf]
        %v5322 = vld [vmem:[#allocation11 + $0x7c] sm:$0xf]
        %v5323 = vld [vmem:[#allocation11 + $0x80] sm:$0xf]
        %v5324 = vld [vmem:[#allocation11 + $0x84] sm:$0xf]
        %v5325 = vld [vmem:[#allocation11 + $0x88] sm:$0xf]
        %v5326 = vld [vmem:[#allocation11 + $0x8c] sm:$0xf]
        %v5327 = vld [vmem:[#allocation11 + $0x90] sm:$0xf]
        %v5328 = vld [vmem:[#allocation11 + $0x94] sm:$0xf]
        %v5329 = vld [vmem:[#allocation11 + $0x98] sm:$0xf]
        %v5330 = vld [vmem:[#allocation11 + $0x9c] sm:$0xf]
        %v5331 = vld [vmem:[#allocation11 + $0xa0] sm:$0xf]
        %v5332 = vld [vmem:[#allocation11 + $0xa4] sm:$0xf]
        %v5333 = vld [vmem:[#allocation11 + $0xa8] sm:$0xf]
        %v5334 = vld [vmem:[#allocation11 + $0xac] sm:$0xf]
        %v5335 = vld [vmem:[#allocation11 + $0xb0] sm:$0xf]
        %v5336 = vld [vmem:[#allocation11 + $0xb4] sm:$0xf]
        %v5337 = vld [vmem:[#allocation11 + $0xb8] sm:$0xf]
        %v5338 = vld [vmem:[#allocation11 + $0xbc] sm:$0xf]
        %v5339 = vld [vmem:[#allocation11 + $0xc0] sm:$0xf]
        %v5340 = vld [vmem:[#allocation11 + $0xc4] sm:$0xf]
        %v5341 = vld [vmem:[#allocation11 + $0xc8] sm:$0xf]
        %v5342 = vld [vmem:[#allocation11 + $0xcc] sm:$0xf]
        %v5343 = vld [vmem:[#allocation11 + $0xd0] sm:$0xf]
        %v5344 = vld [vmem:[#allocation11 + $0xd4] sm:$0xf]
        %v5345 = vld [vmem:[#allocation11 + $0xd8] sm:$0xf]
        %v5346 = vld [vmem:[#allocation11 + $0xdc] sm:$0xf]
        %v5347 = vld [vmem:[#allocation11 + $0xe0] sm:$0xf]
        %v5348 = vld [vmem:[#allocation11 + $0xe4] sm:$0xf]
        %v5349 = vld [vmem:[#allocation11 + $0xe8] sm:$0xf]
        %v5350 = vld [vmem:[#allocation11 + $0xec] sm:$0xf]
        %v5351 = vld [vmem:[#allocation11 + $0xf0] sm:$0xf]
        %v5352 = vld [vmem:[#allocation11 + $0xf4] sm:$0xf]
        %v5353 = vld [vmem:[#allocation11 + $0xf8] sm:$0xf]
        %v5354 = vld [vmem:[#allocation11 + $0xfc] sm:$0xf]
        %v5355 = vld [vmem:[%s13] sm:$0x1]
        %v5420 = vunpack.c.l.b16 %v5291
        %v5421 = vunpack.c.l.b16 %v5292
        %v5422 = vunpack.c.l.b16 %v5293
        %v5423 = vunpack.c.l.b16 %v5294
        %v5424 = vunpack.c.l.b16 %v5295
        %v5425 = vunpack.c.l.b16 %v5296
        %v5426 = vunpack.c.l.b16 %v5297
        %v5427 = vunpack.c.l.b16 %v5298
        %v5428 = vunpack.c.l.b16 %v5299
        %v5429 = vunpack.c.l.b16 %v5300
        %v5430 = vunpack.c.l.b16 %v5301
        %v5431 = vunpack.c.l.b16 %v5302
        %v5432 = vunpack.c.l.b16 %v5303
        %v5433 = vunpack.c.l.b16 %v5304
        %v5434 = vunpack.c.l.b16 %v5305
        %v5435 = vunpack.c.l.b16 %v5306
        %v5436 = vunpack.c.l.b16 %v5307
        %v5437 = vunpack.c.l.b16 %v5308
        %v5438 = vunpack.c.l.b16 %v5309
        %v5439 = vunpack.c.l.b16 %v5310
        %v5440 = vunpack.c.l.b16 %v5311
        %v5441 = vunpack.c.l.b16 %v5312
        %v5442 = vunpack.c.l.b16 %v5313
        %v5443 = vunpack.c.l.b16 %v5314
        %v5444 = vunpack.c.l.b16 %v5315
        %v5445 = vunpack.c.l.b16 %v5316
        %v5446 = vunpack.c.l.b16 %v5317
        %v5447 = vunpack.c.l.b16 %v5318
        %v5448 = vunpack.c.l.b16 %v5319
        %v5449 = vunpack.c.l.b16 %v5320
        %v5450 = vunpack.c.l.b16 %v5321
        %v5451 = vunpack.c.l.b16 %v5322
        %v5452 = vunpack.c.l.b16 %v5323
        %v5453 = vunpack.c.l.b16 %v5324
        %v5454 = vunpack.c.l.b16 %v5325
        %v5455 = vunpack.c.l.b16 %v5326
        %v5456 = vunpack.c.l.b16 %v5327
        %v5457 = vunpack.c.l.b16 %v5328
        %v5458 = vunpack.c.l.b16 %v5329
        %v5459 = vunpack.c.l.b16 %v5330
        %v5460 = vunpack.c.l.b16 %v5331
        %v5461 = vunpack.c.l.b16 %v5332
        %v5462 = vunpack.c.l.b16 %v5333
        %v5463 = vunpack.c.l.b16 %v5334
        %v5464 = vunpack.c.l.b16 %v5335
        %v5465 = vunpack.c.l.b16 %v5336
        %v5466 = vunpack.c.l.b16 %v5337
        %v5467 = vunpack.c.l.b16 %v5338
        %v5468 = vunpack.c.l.b16 %v5339
        %v5469 = vunpack.c.l.b16 %v5340
        %v5470 = vunpack.c.l.b16 %v5341
        %v5471 = vunpack.c.l.b16 %v5342
        %v5472 = vunpack.c.l.b16 %v5343
        %v5473 = vunpack.c.l.b16 %v5344
        %v5474 = vunpack.c.l.b16 %v5345
        %v5475 = vunpack.c.l.b16 %v5346
        %v5476 = vunpack.c.l.b16 %v5347
        %v5477 = vunpack.c.l.b16 %v5348
        %v5478 = vunpack.c.l.b16 %v5349
        %v5479 = vunpack.c.l.b16 %v5350
        %v5480 = vunpack.c.l.b16 %v5351
        %v5481 = vunpack.c.l.b16 %v5352
        %v5482 = vunpack.c.l.b16 %v5353
        %v5483 = vunpack.c.l.b16 %v5354
        %v5484 = vpack.c.b16 %v5421, %v5420
        %v5485 = vpack.c.b16 %v5423, %v5422
        %v5486 = vpack.c.b16 %v5425, %v5424
        %v5487 = vpack.c.b16 %v5427, %v5426
        %v5488 = vpack.c.b16 %v5429, %v5428
        %v5489 = vpack.c.b16 %v5431, %v5430
        %v5490 = vpack.c.b16 %v5433, %v5432
        %v5491 = vpack.c.b16 %v5435, %v5434
        %v5492 = vpack.c.b16 %v5437, %v5436
        %v5493 = vpack.c.b16 %v5439, %v5438
        %v5494 = vpack.c.b16 %v5441, %v5440
        %v5495 = vpack.c.b16 %v5443, %v5442
        %v5496 = vpack.c.b16 %v5445, %v5444
        %v5497 = vpack.c.b16 %v5447, %v5446
        %v5498 = vpack.c.b16 %v5449, %v5448
        %v5499 = vpack.c.b16 %v5451, %v5450
        %v5500 = vpack.c.b16 %v5453, %v5452
        %v5501 = vpack.c.b16 %v5455, %v5454
        %v5502 = vpack.c.b16 %v5457, %v5456
        %v5503 = vpack.c.b16 %v5459, %v5458
        %v5504 = vpack.c.b16 %v5461, %v5460
        %v5505 = vpack.c.b16 %v5463, %v5462
        %v5506 = vpack.c.b16 %v5465, %v5464
        %v5507 = vpack.c.b16 %v5467, %v5466
        %v5508 = vpack.c.b16 %v5469, %v5468
        %v5509 = vpack.c.b16 %v5471, %v5470
        %v5510 = vpack.c.b16 %v5473, %v5472
        %v5511 = vpack.c.b16 %v5475, %v5474
        %v5512 = vpack.c.b16 %v5477, %v5476
        %v5513 = vpack.c.b16 %v5479, %v5478
        %v5514 = vpack.c.b16 %v5481, %v5480
        %v5515 = vpack.c.b16 %v5483, %v5482
        %5548 = vmatprep.subr.bf16.mxu0 0
        %5549 = vmatpush1.bf16.msra.mxu0 %v5491
        %5550 = vmatprep.subr.bf16.mxu0 0
        %5551 = vmatpush1.bf16.msra.mxu0 %v5490
        %5552 = vmatprep.subr.bf16.mxu0 0
        %5553 = vmatpush1.bf16.msra.mxu0 %v5489
        %5554 = vmatprep.subr.bf16.mxu0 0
        %5555 = vmatpush1.bf16.msra.mxu0 %v5488
        %5556 = vmatprep.subr.bf16.mxu0 0
        %5557 = vmatpush1.bf16.msra.mxu0 %v5487
        %5558 = vmatprep.subr.bf16.mxu0 0
        %5559 = vmatpush1.bf16.msra.mxu0 %v5486
        %5560 = vmatprep.subr.bf16.mxu0 0
        %5561 = vmatpush1.bf16.msra.mxu0 %v5485
        %5562 = vmatprep.subr.bf16.mxu0 0
        %5563 = vmatpush1.bf16.msra.mxu0 %v5484
        %5564 = vmatprep.subr.bf16.mxu0 0
        %5565 = vmatpush2.bf16.msra.mxu0 %v5499
        %5566 = vmatprep.subr.bf16.mxu0 0
        %5567 = vmatpush2.bf16.msra.mxu0 %v5498
        %5568 = vmatprep.subr.bf16.mxu0 0
        %5569 = vmatpush2.bf16.msra.mxu0 %v5497
        %5570 = vmatprep.subr.bf16.mxu0 0
        %5571 = vmatpush2.bf16.msra.mxu0 %v5496
        %5572 = vmatprep.subr.bf16.mxu0 0
        %5573 = vmatpush2.bf16.msra.mxu0 %v5495
        %5574 = vmatprep.subr.bf16.mxu0 0
        %5575 = vmatpush2.bf16.msra.mxu0 %v5494
        %5576 = vmatprep.subr.bf16.mxu0 0
        %5577 = vmatpush2.bf16.msra.mxu0 %v5493
        %5578 = vmatprep.subr.bf16.mxu0 0
        %5579 = vmatpush2.bf16.msra.mxu0 %v5492
        %5580 = vmatprep.mubr.bf16.mxu0 %v5288
        %5581 = vmatmul.mubr.bf16.gmra.mxu0 %v5287
        %v5582 = vpop.f32.mrf.mxu0
        %v5583 = vadd.f32 %v5355, %v5582
        %v5584 = vpop.f32.mrf.mxu0
        %v5585 = vpop.f32.mrf.mxu0
        %v5586 = vpop.f32.mrf.mxu0
        %5587 = vdwg.mxu0
        %5588 = vmatprep.subr.bf16.mxu0 0
        %5589 = vmatpush1.bf16.msra.mxu0 %v5507
        %5590 = vmatprep.subr.bf16.mxu0 0
        %5591 = vmatpush1.bf16.msra.mxu0 %v5506
        %5592 = vmatprep.subr.bf16.mxu0 0
        %5593 = vmatpush1.bf16.msra.mxu0 %v5505
        %5594 = vmatprep.subr.bf16.mxu0 0
        %5595 = vmatpush1.bf16.msra.mxu0 %v5504
        %5596 = vmatprep.subr.bf16.mxu0 0
        %5597 = vmatpush1.bf16.msra.mxu0 %v5503
        %5598 = vmatprep.subr.bf16.mxu0 0
        %5599 = vmatpush1.bf16.msra.mxu0 %v5502
        %5600 = vmatprep.subr.bf16.mxu0 0
        %5601 = vmatpush1.bf16.msra.mxu0 %v5501
        %5602 = vmatprep.subr.bf16.mxu0 0
        %5603 = vmatpush1.bf16.msra.mxu0 %v5500
        %5604 = vmatprep.subr.bf16.mxu0 0
        %5605 = vmatpush2.bf16.msra.mxu0 %v5515
        %5606 = vmatprep.subr.bf16.mxu0 0
        %5607 = vmatpush2.bf16.msra.mxu0 %v5514
        %5608 = vmatprep.subr.bf16.mxu0 0
        %5609 = vmatpush2.bf16.msra.mxu0 %v5513
        %5610 = vmatprep.subr.bf16.mxu0 0
        %5611 = vmatpush2.bf16.msra.mxu0 %v5512
        %5612 = vmatprep.subr.bf16.mxu0 0
        %5613 = vmatpush2.bf16.msra.mxu0 %v5511
        %5614 = vmatprep.subr.bf16.mxu0 0
        %5615 = vmatpush2.bf16.msra.mxu0 %v5510
        %5616 = vmatprep.subr.bf16.mxu0 0
        %5617 = vmatpush2.bf16.msra.mxu0 %v5509
        %5618 = vmatprep.subr.bf16.mxu0 0
        %5619 = vmatpush2.bf16.msra.mxu0 %v5508
        %5620 = vmatprep.mubr.bf16.mxu0 %v5290
        %5621 = vmatmul.mubr.bf16.gmra.mxu0 %v5289
        %v5622 = vpop.f32.mrf.mxu0
        %v5623 = vadd.f32 %v5583, %v5622
        %v5624 = vpop.f32.mrf.mxu0
        %v5625 = vpop.f32.mrf.mxu0
        %v5626 = vpop.f32.mrf.mxu0
        %5627 = vdwg.mxu0
        %5628 = vst [vmem:[%s545] sm:$0x1] %v5623
        %s5629 = sand.u32 %s342, 1
        %s5630 = scalar_lea.sflag [#allocation5], %s5629
        %s5631 = sand.u32 %s342, 1
        %s5632 = scalar_lea.vmem [#allocation12], %s5631
        // Predicated region
        $region97: #{tpu_custom_call.1} parent=75 // pred_check
          %p5633 = pneg %p352
        $region98: #{tpu_custom_call.1} parent=75 // pred_check_branch
          %5635 = sbr.rel (%p5633) target = $region100
        $region99: #{tpu_custom_call.1} parent=75 // pred_region
          %s5637 = ssub.s32 16, 16
          %5638 = vsyncadd %s5630, %s5637
          %s5639 = smul.addr %s35, 16
          %s5640 = scalar_lea.hbm %s14, %s5639
          %s5642 = sshll.u32 %s5632, 4
          %s5643 = int_to_ptr.vmem [resolvable:$true] %s5642
          %5645 = dma.vmem_to_hbm [thread:$0]  %s5643, 16, %s5640, %s5630
        $region100: #{tpu_custom_call.1} parent=75 // pred_fallthru
          _
      $region76: #{tpu_custom_call.1} parent=5 // pred_fallthru
        _
      %p5646 = scmp.le.s32.totalorder 2, %s30
      // Predicated region
      $region101: #{tpu_custom_call.1} parent=5 // pred_check
        %p5647 = pneg %p5646
      $region102: #{tpu_custom_call.1} parent=5 // pred_check_branch
        %5649 = sbr.rel (%p5647) target = $region104
      $region103: #{tpu_custom_call.1} parent=5 // pred_region
        %s5650 = ssub.s32 %s30, 2
        // Predicated region
        $region105: #{tpu_custom_call.1} parent=103 // pred_check
          %p5651 = pneg %p358
        $region106: #{tpu_custom_call.1} parent=103 // pred_check_branch
          %5653 = sbr.rel (%p5651) target = $region108
        $region107: #{tpu_custom_call.1} parent=103 // pred_region
          %s5654 = sand.u32 %s343, 1
          %s5655 = scalar_lea.sflag [#allocation5], %s5654
          %s5656 = sand.u32 %s343, 1
          %s5657 = scalar_lea.vmem [#allocation12], %s5656
          %5658 = dma.done %s5655, 16
        $region108: #{tpu_custom_call.1} parent=103 // pred_fallthru
          _
      $region104: #{tpu_custom_call.1} parent=5 // pred_fallthru
        _
    $region6: #{tpu_custom_call.1} parent=1 // loop_footer
      %s34 = sadd.s32 1, %s30
    $region7: #{tpu_custom_call.1} parent=1 // loop_footer_branch
      %29 = sbr.rel target = $region3
    $region8: #{tpu_custom_call.1} parent=1 // loop_exit
      _
    %5659 = vsyncpa [#allocation4], 1
    %s5660 = scalar_lea.sflag [#allocation4], 1
    %5661 = vsyncpa %s5660, 1
    %5662 = vsyncpa [#allocation7], 1
    %5663 = vsyncpa [#allocation10], 1
    %5664 = vsyncpa [#allocation5], 1
    %s5665 = scalar_lea.sflag [#allocation5], 1
    %5666 = vsyncpa %s5665, 1

</llo_original>
